<compile_context>
chip_gen: v7x
topology: tpu7x:2x2x1
jax: 0.10.0
libtpu: 0.0.40
codegen_flags: <defaults>
</compile_context>

<pallas_src>
import functools
import math

import jax
import jax.numpy as jnp
from jax.experimental import pallas as pl
from jax.experimental.pallas import tpu as pltpu


def _mm_t(a, b):
    # a @ b.T (PyTorch nn.Linear weight layout), f32 accumulation on the MXU.
    return jax.lax.dot_general(
        a, b, (((1,), (1,)), ((), ())), preferred_element_type=jnp.float32)


def _layernorm(x, w, b, eps=1e-5):
    mu = jnp.mean(x, axis=-1, keepdims=True)
    var = jnp.mean((x - mu) ** 2, axis=-1, keepdims=True)
    return (x - mu) * jax.lax.rsqrt(var + eps) * w + b


def transformer_kernel(x_ref, emb_w_ref, emb_b_ref,
                       qw_ref, qb_ref, kw_ref, kb_ref, vw_ref, vb_ref,
                       ow_ref, ob_ref,
                       ln1w_ref, ln1b_ref,
                       ff1w_ref, ff1b_ref, ff2w_ref, ff2b_ref,
                       ln2w_ref, ln2b_ref,
                       fcw_ref, fcb_ref,
                       o_ref,
                       h_ref,
                       *, num_heads, compute_dtype):
    layer = pl.program_id(0)
    num_layers = pl.num_programs(0)

    # Layer 0: embedding projection seeds the residual stream in VMEM scratch.
    @pl.when(layer == 0)
    def _():
        x = x_ref[...].astype(compute_dtype)
        h_ref[...] = _mm_t(x, emb_w_ref[...]) + emb_b_ref[...]

    h = h_ref[...]                                   # (S, E) f32 residual stream
    S, E = h.shape
    Dh = E // num_heads
    scale = 1.0 / math.sqrt(Dh)

    hb = h.astype(compute_dtype)
    # Broadcast once over the head axis so every attention matmul is a clean
    # batched (H, S, *) MXU matmul -- no lane-sliced (S, 8) operands.
    hb_b = jnp.broadcast_to(hb, (num_heads, S, E))   # (H, S, E)

    # ---- fused multi-head self-attention (all heads in batched einsums) ----
    q3 = jnp.einsum("hse,hde->hsd", hb_b, qw_ref[0],
                    preferred_element_type=jnp.float32) + qb_ref[0]   # (H,S,Dh)
    k3 = jnp.einsum("hse,hde->hsd", hb_b, kw_ref[0],
                    preferred_element_type=jnp.float32) + kb_ref[0]
    v3 = jnp.einsum("hse,hde->hsd", hb_b, vw_ref[0],
                    preferred_element_type=jnp.float32) + vb_ref[0]

    scores = jnp.einsum("hsd,htd->hst", q3.astype(compute_dtype),
                        k3.astype(compute_dtype),
                        preferred_element_type=jnp.float32) * scale    # (H,S,S)
    m = jnp.max(scores, axis=-1, keepdims=True)
    e = jnp.exp(scores - m)
    denom = jnp.sum(e, axis=-1, keepdims=True)
    p = e * pl.reciprocal(denom, approx=True)        # softmax; divide on EUP

    o3 = jnp.einsum("hst,htd->hsd", p.astype(compute_dtype),
                    v3.astype(compute_dtype),
                    preferred_element_type=jnp.float32)                # (H,S,Dh)

    # concat(heads) @ Wo.T  ==  sum_h  o_h @ Wo[:, h].T  (batched, then reduce).
    contrib = jnp.einsum("hsd,hed->hse", o3.astype(compute_dtype), ow_ref[0],
                         preferred_element_type=jnp.float32)           # (H,S,E)
    attn = jnp.sum(contrib, axis=0) + ob_ref[0]                        # (S,E)

    # TODO(synk): dropout (p=0.1, training mode) omitted; eval/inference semantics.
    h1 = _layernorm(h + attn, ln1w_ref[0], ln1b_ref[0])

    # ---- feed-forward (Linear -> ReLU -> Linear), post-LN residual ----
    ff = _mm_t(h1.astype(compute_dtype), ff1w_ref[0]) + ff1b_ref[0]    # (S,F)
    ff = jnp.maximum(ff, 0.0)
    ff = _mm_t(ff.astype(compute_dtype), ff2w_ref[0]) + ff2b_ref[0]    # (S,E)
    h2 = _layernorm(h1 + ff, ln2w_ref[0], ln2b_ref[0])

    h_ref[...] = h2

    # Last layer: final projection into the lane-padded (128-wide) output slab.
    @pl.when(layer == num_layers - 1)
    def _():
        o_ref[...] = _mm_t(h2.astype(compute_dtype), fcw_ref[...]) + fcb_ref[...]


def transformer_forward(x, params, *, num_heads, num_layers,
                        compute_dtype=jnp.bfloat16):
    """x: (S, 1, state_dim) f32 -> (S, output_dim) f32."""
    seq_len, batch, state_dim = x.shape
    assert batch == 1, "kernel implements the module's batch=1 (squeeze(dim=1)) path"
    x2d = x[:, 0, :]

    E = params["emb_w"].shape[0]
    F = params["ff1_w"].shape[1]
    L = num_layers
    output_dim = params["fc_w"].shape[0]
    assert E % num_heads == 0
    Dh = E // num_heads
    out_pad = ((output_dim + 127) // 128) * 128      # lane-dense output store

    cdt = compute_dtype
    f32 = jnp.float32

    # Weight pre-layout done in plain JAX (outside the kernel): split heads on
    # q/k/v/out-proj weights and lane-pad the final fc projection.
    def per_head_w(w):          # (L, E, E) -> (L, H, Dh, E)
        return w.reshape(L, num_heads, Dh, E)

    def per_head_b(b):          # (L, 1, E) -> (L, H, 1, Dh)
        return b.reshape(L, num_heads, Dh)[:, :, None, :]

    ow_r = params["attn_ow"].reshape(L, E, num_heads, Dh).transpose(0, 2, 1, 3)

    fc_w = jnp.zeros((out_pad, E), f32).at[:output_dim].set(params["fc_w"])
    fc_b = jnp.zeros((1, out_pad), f32).at[:, :output_dim].set(params["fc_b"])

    # (array, per_layer?) -- matmul weights in compute dtype, bias/LN in f32.
    inputs = [
        (x2d.astype(f32), False),
        (params["emb_w"].astype(cdt), False),
        (params["emb_b"].astype(f32), False),
        (per_head_w(params["q_w"]).astype(cdt), True),
        (per_head_b(params["q_b"]).astype(f32), True),
        (per_head_w(params["k_w"]).astype(cdt), True),
        (per_head_b(params["k_b"]).astype(f32), True),
        (per_head_w(params["v_w"]).astype(cdt), True),
        (per_head_b(params["v_b"]).astype(f32), True),
        (ow_r.astype(cdt), True),
        (params["attn_ob"].astype(f32), True),
        (params["ln1_w"].astype(f32), True),
        (params["ln1_b"].astype(f32), True),
        (params["ff1_w"].astype(cdt), True),
        (params["ff1_b"].astype(f32), True),
        (params["ff2_w"].astype(cdt), True),
        (params["ff2_b"].astype(f32), True),
        (params["ln2_w"].astype(f32), True),
        (params["ln2_b"].astype(f32), True),
        (fc_w.astype(cdt), False),
        (fc_b.astype(f32), False),
    ]

    args, in_specs = [], []
    resident_bytes = 0
    for arr, per_layer in inputs:
        if per_layer:
            block = (1,) + arr.shape[1:]
            n = arr.ndim - 1
            spec = pl.BlockSpec(block, lambda l, n=n: (l,) + (0,) * n)
        else:
            block = arr.shape
            n = arr.ndim
            spec = pl.BlockSpec(block, lambda l, n=n: (0,) * n)
        args.append(arr)
        in_specs.append(spec)
        resident_bytes += 2 * math.prod(block) * arr.dtype.itemsize  # double buf

    out_bytes = 2 * seq_len * out_pad * 4
    scratch_bytes = seq_len * E * 4
    # Actual resident footprint + headroom, capped well below v7x's 64 MiB.
    vmem_limit = int(min(48 * 1024 * 1024,
                         resident_bytes + out_bytes + scratch_bytes
                         + 16 * 1024 * 1024))

    kern = functools.partial(transformer_kernel,
                             num_heads=num_heads, compute_dtype=cdt)

    out_padded = pl.pallas_call(
        kern,
        out_shape=jax.ShapeDtypeStruct((seq_len, out_pad), jnp.float32),
        grid=(num_layers,),
        in_specs=in_specs,
        out_specs=pl.BlockSpec((seq_len, out_pad), lambda l: (0, 0)),
        scratch_shapes=[pltpu.VMEM((seq_len, E), jnp.float32)],
        compiler_params=pltpu.CompilerParams(
            dimension_semantics=("arbitrary",),   # h carries across layers
            vmem_limit_bytes=vmem_limit),
    )(*args)

    return out_padded[:, :output_dim]


def init_params(key, state_dim, embedding_dim, num_heads, num_layers,
                output_dim, dim_feedforward=2048):
    """Deterministic synthetic init; shapes mirror the PyTorch module."""
    del num_heads
    E, F, L = embedding_dim, dim_feedforward, num_layers
    keys = jax.random.split(key, 8)

    def w(k, shape, scale=0.02):
        return (scale * jax.random.normal(k, shape)).astype(jnp.float32)

    return {
        "emb_w": w(keys[0], (E, state_dim)),          # nn.Linear(state_dim, E)
        "emb_b": jnp.zeros((1, E), jnp.float32),
        # MHA in_proj split into q/k/v (out_features, in_features) per layer.
        "q_w": w(keys[1], (L, E, E)),
        "q_b": jnp.zeros((L, 1, E), jnp.float32),
        "k_w": w(keys[2], (L, E, E)),
        "k_b": jnp.zeros((L, 1, E), jnp.float32),
        "v_w": w(keys[3], (L, E, E)),
        "v_b": jnp.zeros((L, 1, E), jnp.float32),
        "attn_ow": w(keys[4], (L, E, E)),             # MHA out_proj
        "attn_ob": jnp.zeros((L, 1, E), jnp.float32),
        "ln1_w": jnp.ones((L, 1, E), jnp.float32),
        "ln1_b": jnp.zeros((L, 1, E), jnp.float32),
        "ff1_w": w(keys[5], (L, F, E)),               # linear1 (E -> F)
        "ff1_b": jnp.zeros((L, 1, F), jnp.float32),
        "ff2_w": w(keys[6], (L, E, F)),               # linear2 (F -> E)
        "ff2_b": jnp.zeros((L, 1, E), jnp.float32),
        "ln2_w": jnp.ones((L, 1, E), jnp.float32),
        "ln2_b": jnp.zeros((L, 1, E), jnp.float32),
        "fc_w": w(keys[7], (output_dim, E)),          # nn.Linear(E, output_dim)
        "fc_b": jnp.zeros((1, output_dim), jnp.float32),
    }


if __name__ == "__main__":
    state_dim = 6
    embedding_dim = 32
    num_heads = 4
    num_layers = 2
    output_dim = 4
    seq_len = 8

    key = jax.random.PRNGKey(0)
    k_x, k_p = jax.random.split(key)
    # PyTorch module expects (S, 1, state_dim): squeeze(dim=1) after the encoder.
    x = jax.random.normal(k_x, (seq_len, 1, state_dim), dtype=jnp.float32)
    params = init_params(k_p, state_dim, embedding_dim, num_heads,
                         num_layers, output_dim)

    out = transformer_forward(x, params, num_heads=num_heads,
                              num_layers=num_layers)
    out = jax.block_until_ready(out)
    assert out.shape == (seq_len, output_dim)
    assert bool(jnp.all(jnp.isfinite(out)))
    print("KERNEL_OK")
</pallas_src>

<mosaic_0001>
module attributes {stable_mosaic.version = 11 : i64} {
  func.func @transformer_kernel(%arg0: i32, %arg1: memref<8x6xf32, #tpu.memory_space<vmem>>, %arg2: memref<32x6xbf16, #tpu.memory_space<vmem>>, %arg3: memref<1x32xf32, #tpu.memory_space<vmem>>, %arg4: memref<1x4x8x32xbf16, #tpu.memory_space<vmem>>, %arg5: memref<1x4x1x8xf32, #tpu.memory_space<vmem>>, %arg6: memref<1x4x8x32xbf16, #tpu.memory_space<vmem>>, %arg7: memref<1x4x1x8xf32, #tpu.memory_space<vmem>>, %arg8: memref<1x4x8x32xbf16, #tpu.memory_space<vmem>>, %arg9: memref<1x4x1x8xf32, #tpu.memory_space<vmem>>, %arg10: memref<1x4x32x8xbf16, #tpu.memory_space<vmem>>, %arg11: memref<1x1x32xf32, #tpu.memory_space<vmem>>, %arg12: memref<1x1x32xf32, #tpu.memory_space<vmem>>, %arg13: memref<1x1x32xf32, #tpu.memory_space<vmem>>, %arg14: memref<1x2048x32xbf16, #tpu.memory_space<vmem>>, %arg15: memref<1x1x2048xf32, #tpu.memory_space<vmem>>, %arg16: memref<1x32x2048xbf16, #tpu.memory_space<vmem>>, %arg17: memref<1x1x32xf32, #tpu.memory_space<vmem>>, %arg18: memref<1x1x32xf32, #tpu.memory_space<vmem>>, %arg19: memref<1x1x32xf32, #tpu.memory_space<vmem>>, %arg20: memref<128x32xbf16, #tpu.memory_space<vmem>>, %arg21: memref<1x128xf32, #tpu.memory_space<vmem>>, %arg22: memref<8x128xf32, #tpu.memory_space<vmem>>, %arg23: memref<8x32xf32, #tpu.memory_space<vmem>>) attributes {dimension_semantics = [#tpu.dimension_semantics<arbitrary>], iteration_bounds = array<i64: 2>, scalar_prefetch = 0 : i64, scratch_operands = 1 : i64, tpu.core_type = #tpu.core_type<tc>, window_params = [{pipeline_mode = #tpu.pipeline_mode<synchronous>, transform_indices = @transform_0, window_bounds = array<i64: 8, 6>}, {pipeline_mode = #tpu.pipeline_mode<synchronous>, transform_indices = @transform_1, window_bounds = array<i64: 32, 6>}, {pipeline_mode = #tpu.pipeline_mode<synchronous>, transform_indices = @transform_2, window_bounds = array<i64: 1, 32>}, {transform_indices = @transform_3, window_bounds = array<i64: 1, 4, 8, 32>}, {transform_indices = @transform_4, window_bounds = array<i64: 1, 4, 1, 8>}, {transform_indices = @transform_5, window_bounds = array<i64: 1, 4, 8, 32>}, {transform_indices = @transform_6, window_bounds = array<i64: 1, 4, 1, 8>}, {transform_indices = @transform_7, window_bounds = array<i64: 1, 4, 8, 32>}, {transform_indices = @transform_8, window_bounds = array<i64: 1, 4, 1, 8>}, {transform_indices = @transform_9, window_bounds = array<i64: 1, 4, 32, 8>}, {transform_indices = @transform_10, window_bounds = array<i64: 1, 1, 32>}, {transform_indices = @transform_11, window_bounds = array<i64: 1, 1, 32>}, {transform_indices = @transform_12, window_bounds = array<i64: 1, 1, 32>}, {transform_indices = @transform_13, window_bounds = array<i64: 1, 2048, 32>}, {transform_indices = @transform_14, window_bounds = array<i64: 1, 1, 2048>}, {transform_indices = @transform_15, window_bounds = array<i64: 1, 32, 2048>}, {transform_indices = @transform_16, window_bounds = array<i64: 1, 1, 32>}, {transform_indices = @transform_17, window_bounds = array<i64: 1, 1, 32>}, {transform_indices = @transform_18, window_bounds = array<i64: 1, 1, 32>}, {pipeline_mode = #tpu.pipeline_mode<synchronous>, transform_indices = @transform_19, window_bounds = array<i64: 128, 32>}, {pipeline_mode = #tpu.pipeline_mode<synchronous>, transform_indices = @transform_20, window_bounds = array<i64: 1, 128>}, {pipeline_mode = #tpu.pipeline_mode<synchronous>, transform_indices = @transform_21, window_bounds = array<i64: 8, 128>}]} {
    %c0_i32 = arith.constant 0 : i32
    %0 = arith.cmpi eq, %arg0, %c0_i32 : i32
    %1 = arith.extui %0 : i1 to i32
    %c0_i32_0 = arith.constant 0 : i32
    %2 = arith.cmpi ne, %1, %c0_i32_0 : i32
    scf.if %2 {
      %c0_82 = arith.constant 0 : index
      %c0_83 = arith.constant 0 : index
      %131 = vector.load %arg1[%c0_82, %c0_83] : memref<8x6xf32, #tpu.memory_space<vmem>>, vector<8x6xf32>
      %132 = arith.truncf %131 : vector<8x6xf32> to vector<8x6xbf16>
      %c0_84 = arith.constant 0 : index
      %c0_85 = arith.constant 0 : index
      %133 = vector.load %arg2[%c0_84, %c0_85] : memref<32x6xbf16, #tpu.memory_space<vmem>>, vector<32x6xbf16>
      %cst_86 = arith.constant dense<0.000000e+00> : vector<8x32xf32>
      %134 = tpu.matmul %132, %133, %cst_86 {dimension_numbers = #tpu.dot_dimension_numbers<[1], [1], [0], [0], [0, 0, 1, 0], [], []>} : vector<8x6xbf16>, vector<32x6xbf16>, vector<8x32xf32> -> vector<8x32xf32>
      %c0_87 = arith.constant 0 : index
      %c0_88 = arith.constant 0 : index
      %135 = vector.load %arg3[%c0_87, %c0_88] : memref<1x32xf32, #tpu.memory_space<vmem>>, vector<1x32xf32>
      %136 = vector.broadcast %135 : vector<1x32xf32> to vector<8x32xf32>
      %137 = arith.addf %134, %136 : vector<8x32xf32>
      %c0_89 = arith.constant 0 : index
      %c0_90 = arith.constant 0 : index
      %138 = vector.load %arg23[%c0_89, %c0_90] : memref<8x32xf32, #tpu.memory_space<vmem>>, vector<8x32xf32>
      tpu.vector_store %arg23[%c0_89, %c0_90], %137 {strides = array<i32>} : memref<8x32xf32, #tpu.memory_space<vmem>>, vector<8x32xf32>,
    } else {
    }
    %c0 = arith.constant 0 : index
    %c0_1 = arith.constant 0 : index
    %3 = vector.load %arg23[%c0, %c0_1] : memref<8x32xf32, #tpu.memory_space<vmem>>, vector<8x32xf32>
    %4 = arith.truncf %3 : vector<8x32xf32> to vector<8x32xbf16>
    %5 = vector.shape_cast %4 : vector<8x32xbf16> to vector<1x8x32xbf16>
    %6 = vector.broadcast %5 : vector<1x8x32xbf16> to vector<4x8x32xbf16>
    %c0_2 = arith.constant 0 : index
    %c0_3 = arith.constant 0 : index
    %c0_4 = arith.constant 0 : index
    %c0_5 = arith.constant 0 : index
    %7 = vector.load %arg4[%c0_2, %c0_3, %c0_4, %c0_5] : memref<1x4x8x32xbf16, #tpu.memory_space<vmem>>, vector<1x4x8x32xbf16>
    %8 = vector.shape_cast %7 : vector<1x4x8x32xbf16> to vector<4x8x32xbf16>
    "tpu.trace_start"() <{level = 10 : i32, message = "hse,hde->hsd"}> : () -> ()
    %cst = arith.constant dense<0.000000e+00> : vector<4x8x8xf32>
    %9 = tpu.matmul %6, %8, %cst {dimension_numbers = #tpu.dot_dimension_numbers<[2], [2], [1], [1], [0, 0, 0, 1, 1, 1], [0], [0]>} : vector<4x8x32xbf16>, vector<4x8x32xbf16>, vector<4x8x8xf32> -> vector<4x8x8xf32>
    "tpu.trace_stop"() : () -> ()
    %c0_6 = arith.constant 0 : index
    %c0_7 = arith.constant 0 : index
    %c0_8 = arith.constant 0 : index
    %c0_9 = arith.constant 0 : index
    %10 = vector.load %arg5[%c0_6, %c0_7, %c0_8, %c0_9] : memref<1x4x1x8xf32, #tpu.memory_space<vmem>>, vector<1x4x1x8xf32>
    %11 = vector.shape_cast %10 : vector<1x4x1x8xf32> to vector<4x1x8xf32>
    %12 = vector.broadcast %11 : vector<4x1x8xf32> to vector<4x8x8xf32>
    %13 = arith.addf %9, %12 : vector<4x8x8xf32>
    %c0_10 = arith.constant 0 : index
    %c0_11 = arith.constant 0 : index
    %c0_12 = arith.constant 0 : index
    %c0_13 = arith.constant 0 : index
    %14 = vector.load %arg6[%c0_10, %c0_11, %c0_12, %c0_13] : memref<1x4x8x32xbf16, #tpu.memory_space<vmem>>, vector<1x4x8x32xbf16>
    %15 = vector.shape_cast %14 : vector<1x4x8x32xbf16> to vector<4x8x32xbf16>
    "tpu.trace_start"() <{level = 10 : i32, message = "hse,hde->hsd"}> : () -> ()
    %cst_14 = arith.constant dense<0.000000e+00> : vector<4x8x8xf32>
    %16 = tpu.matmul %6, %15, %cst_14 {dimension_numbers = #tpu.dot_dimension_numbers<[2], [2], [1], [1], [0, 0, 0, 1, 1, 1], [0], [0]>} : vector<4x8x32xbf16>, vector<4x8x32xbf16>, vector<4x8x8xf32> -> vector<4x8x8xf32>
    "tpu.trace_stop"() : () -> ()
    %c0_15 = arith.constant 0 : index
    %c0_16 = arith.constant 0 : index
    %c0_17 = arith.constant 0 : index
    %c0_18 = arith.constant 0 : index
    %17 = vector.load %arg7[%c0_15, %c0_16, %c0_17, %c0_18] : memref<1x4x1x8xf32, #tpu.memory_space<vmem>>, vector<1x4x1x8xf32>
    %18 = vector.shape_cast %17 : vector<1x4x1x8xf32> to vector<4x1x8xf32>
    %19 = vector.broadcast %18 : vector<4x1x8xf32> to vector<4x8x8xf32>
    %20 = arith.addf %16, %19 : vector<4x8x8xf32>
    %c0_19 = arith.constant 0 : index
    %c0_20 = arith.constant 0 : index
    %c0_21 = arith.constant 0 : index
    %c0_22 = arith.constant 0 : index
    %21 = vector.load %arg8[%c0_19, %c0_20, %c0_21, %c0_22] : memref<1x4x8x32xbf16, #tpu.memory_space<vmem>>, vector<1x4x8x32xbf16>
    %22 = vector.shape_cast %21 : vector<1x4x8x32xbf16> to vector<4x8x32xbf16>
    "tpu.trace_start"() <{level = 10 : i32, message = "hse,hde->hsd"}> : () -> ()
    %cst_23 = arith.constant dense<0.000000e+00> : vector<4x8x8xf32>
    %23 = tpu.matmul %6, %22, %cst_23 {dimension_numbers = #tpu.dot_dimension_numbers<[2], [2], [1], [1], [0, 0, 0, 1, 1, 1], [0], [0]>} : vector<4x8x32xbf16>, vector<4x8x32xbf16>, vector<4x8x8xf32> -> vector<4x8x8xf32>
    "tpu.trace_stop"() : () -> ()
    %c0_24 = arith.constant 0 : index
    %c0_25 = arith.constant 0 : index
    %c0_26 = arith.constant 0 : index
    %c0_27 = arith.constant 0 : index
    %24 = vector.load %arg9[%c0_24, %c0_25, %c0_26, %c0_27] : memref<1x4x1x8xf32, #tpu.memory_space<vmem>>, vector<1x4x1x8xf32>
    %25 = vector.shape_cast %24 : vector<1x4x1x8xf32> to vector<4x1x8xf32>
    %26 = vector.broadcast %25 : vector<4x1x8xf32> to vector<4x8x8xf32>
    %27 = arith.addf %23, %26 : vector<4x8x8xf32>
    %28 = arith.truncf %13 : vector<4x8x8xf32> to vector<4x8x8xbf16>
    %29 = arith.truncf %20 : vector<4x8x8xf32> to vector<4x8x8xbf16>
    "tpu.trace_start"() <{level = 10 : i32, message = "hsd,htd->hst"}> : () -> ()
    %cst_28 = arith.constant dense<0.000000e+00> : vector<4x8x8xf32>
    %30 = tpu.matmul %28, %29, %cst_28 {dimension_numbers = #tpu.dot_dimension_numbers<[2], [2], [1], [1], [0, 0, 0, 1, 1, 1], [0], [0]>} : vector<4x8x8xbf16>, vector<4x8x8xbf16>, vector<4x8x8xf32> -> vector<4x8x8xf32>
    "tpu.trace_stop"() : () -> ()
    %cst_29 = arith.constant 0.353553385 : f32
    %31 = vector.broadcast %cst_29 : f32 to vector<4x8x8xf32>
    %32 = arith.mulf %30, %31 : vector<4x8x8xf32>
    %cst_30 = arith.constant dense<0xFF800000> : vector<4x8xf32>
    %33 = vector.multi_reduction <maximumf>, %32, %cst_30 [2] : vector<4x8x8xf32> to vector<4x8xf32>
    %34 = vector.shape_cast %33 : vector<4x8xf32> to vector<4x8x1xf32>
    %35 = vector.broadcast %34 : vector<4x8x1xf32> to vector<4x8x8xf32>
    %36 = arith.subf %32, %35 : vector<4x8x8xf32>
    %37 = math.exp %36 : vector<4x8x8xf32>
    %cst_31 = arith.constant dense<0.000000e+00> : vector<4x8xf32>
    %38 = vector.multi_reduction <add>, %37, %cst_31 [2] : vector<4x8x8xf32> to vector<4x8xf32>
    %39 = vector.shape_cast %38 : vector<4x8xf32> to vector<4x8x1xf32>
    %40 = tpu.reciprocal %39 {approx = true} : vector<4x8x1xf32> -> vector<4x8x1xf32>
    %41 = vector.broadcast %40 : vector<4x8x1xf32> to vector<4x8x8xf32>
    %42 = arith.mulf %37, %41 : vector<4x8x8xf32>
    %43 = arith.truncf %42 : vector<4x8x8xf32> to vector<4x8x8xbf16>
    %44 = arith.truncf %27 : vector<4x8x8xf32> to vector<4x8x8xbf16>
    "tpu.trace_start"() <{level = 10 : i32, message = "hst,htd->hsd"}> : () -> ()
    %cst_32 = arith.constant dense<0.000000e+00> : vector<4x8x8xf32>
    %45 = tpu.matmul %43, %44, %cst_32 {dimension_numbers = #tpu.dot_dimension_numbers<[2], [1], [1], [2], [0, 0, 0, 1, 1, 2], [0], [0]>} : vector<4x8x8xbf16>, vector<4x8x8xbf16>, vector<4x8x8xf32> -> vector<4x8x8xf32>
    "tpu.trace_stop"() : () -> ()
    %46 = arith.truncf %45 : vector<4x8x8xf32> to vector<4x8x8xbf16>
    %c0_33 = arith.constant 0 : index
    %c0_34 = arith.constant 0 : index
    %c0_35 = arith.constant 0 : index
    %c0_36 = arith.constant 0 : index
    %47 = vector.load %arg10[%c0_33, %c0_34, %c0_35, %c0_36] : memref<1x4x32x8xbf16, #tpu.memory_space<vmem>>, vector<1x4x32x8xbf16>
    %48 = vector.shape_cast %47 : vector<1x4x32x8xbf16> to vector<4x32x8xbf16>
    "tpu.trace_start"() <{level = 10 : i32, message = "hsd,hed->hse"}> : () -> ()
    %cst_37 = arith.constant dense<0.000000e+00> : vector<4x8x32xf32>
    %49 = tpu.matmul %46, %48, %cst_37 {dimension_numbers = #tpu.dot_dimension_numbers<[2], [2], [1], [1], [0, 0, 0, 1, 1, 1], [0], [0]>} : vector<4x8x8xbf16>, vector<4x32x8xbf16>, vector<4x8x32xf32> -> vector<4x8x32xf32>
    "tpu.trace_stop"() : () -> ()
    %cst_38 = arith.constant dense<0.000000e+00> : vector<8x32xf32>
    %50 = vector.multi_reduction <add>, %49, %cst_38 [0] : vector<4x8x32xf32> to vector<8x32xf32>
    %c0_39 = arith.constant 0 : index
    %c0_40 = arith.constant 0 : index
    %c0_41 = arith.constant 0 : index
    %51 = vector.load %arg11[%c0_39, %c0_40, %c0_41] : memref<1x1x32xf32, #tpu.memory_space<vmem>>, vector<1x1x32xf32>
    %52 = vector.shape_cast %51 : vector<1x1x32xf32> to vector<1x32xf32>
    %53 = vector.broadcast %52 : vector<1x32xf32> to vector<8x32xf32>
    %54 = arith.addf %50, %53 : vector<8x32xf32>
    %55 = arith.addf %3, %54 : vector<8x32xf32>
    %c0_42 = arith.constant 0 : index
    %c0_43 = arith.constant 0 : index
    %c0_44 = arith.constant 0 : index
    %56 = vector.load %arg12[%c0_42, %c0_43, %c0_44] : memref<1x1x32xf32, #tpu.memory_space<vmem>>, vector<1x1x32xf32>
    %57 = vector.shape_cast %56 : vector<1x1x32xf32> to vector<1x32xf32>
    %c0_45 = arith.constant 0 : index
    %c0_46 = arith.constant 0 : index
    %c0_47 = arith.constant 0 : index
    %58 = vector.load %arg13[%c0_45, %c0_46, %c0_47] : memref<1x1x32xf32, #tpu.memory_space<vmem>>, vector<1x1x32xf32>
    %59 = vector.shape_cast %58 : vector<1x1x32xf32> to vector<1x32xf32>
    %cst_48 = arith.constant dense<0.000000e+00> : vector<8xf32>
    %60 = vector.multi_reduction <add>, %55, %cst_48 [1] : vector<8x32xf32> to vector<8xf32>
    %61 = vector.shape_cast %60 : vector<8xf32> to vector<8x1xf32>
    %cst_49 = arith.constant 3.200000e+01 : f32
    %62 = vector.broadcast %cst_49 : f32 to vector<8x1xf32>
    %63 = arith.divf %61, %62 : vector<8x1xf32>
    %64 = vector.broadcast %63 : vector<8x1xf32> to vector<8x32xf32>
    %65 = arith.subf %55, %64 : vector<8x32xf32>
    %66 = arith.mulf %65, %65 : vector<8x32xf32>
    %cst_50 = arith.constant dense<0.000000e+00> : vector<8xf32>
    %67 = vector.multi_reduction <add>, %66, %cst_50 [1] : vector<8x32xf32> to vector<8xf32>
    %68 = vector.shape_cast %67 : vector<8xf32> to vector<8x1xf32>
    %cst_51 = arith.constant 3.200000e+01 : f32
    %69 = vector.broadcast %cst_51 : f32 to vector<8x1xf32>
    %70 = arith.divf %68, %69 : vector<8x1xf32>
    %71 = vector.broadcast %63 : vector<8x1xf32> to vector<8x32xf32>
    %72 = arith.subf %55, %71 : vector<8x32xf32>
    %cst_52 = arith.constant 9.99999974E-6 : f32
    %73 = vector.broadcast %cst_52 : f32 to vector<8x1xf32>
    %74 = arith.addf %70, %73 : vector<8x1xf32>
    %75 = math.rsqrt %74 : vector<8x1xf32>
    %76 = vector.broadcast %75 : vector<8x1xf32> to vector<8x32xf32>
    %77 = arith.mulf %72, %76 : vector<8x32xf32>
    %78 = vector.broadcast %57 : vector<1x32xf32> to vector<8x32xf32>
    %79 = arith.mulf %77, %78 : vector<8x32xf32>
    %80 = vector.broadcast %59 : vector<1x32xf32> to vector<8x32xf32>
    %81 = arith.addf %79, %80 : vector<8x32xf32>
    %82 = arith.truncf %81 : vector<8x32xf32> to vector<8x32xbf16>
    %c0_53 = arith.constant 0 : index
    %c0_54 = arith.constant 0 : index
    %c0_55 = arith.constant 0 : index
    %83 = vector.load %arg14[%c0_53, %c0_54, %c0_55] : memref<1x2048x32xbf16, #tpu.memory_space<vmem>>, vector<1x2048x32xbf16>
    %84 = vector.shape_cast %83 : vector<1x2048x32xbf16> to vector<2048x32xbf16>
    %cst_56 = arith.constant dense<0.000000e+00> : vector<8x2048xf32>
    %85 = tpu.matmul %82, %84, %cst_56 {dimension_numbers = #tpu.dot_dimension_numbers<[1], [1], [0], [0], [0, 0, 1, 0], [], []>} : vector<8x32xbf16>, vector<2048x32xbf16>, vector<8x2048xf32> -> vector<8x2048xf32>
    %c0_57 = arith.constant 0 : index
    %c0_58 = arith.constant 0 : index
    %c0_59 = arith.constant 0 : index
    %86 = vector.load %arg15[%c0_57, %c0_58, %c0_59] : memref<1x1x2048xf32, #tpu.memory_space<vmem>>, vector<1x1x2048xf32>
    %87 = vector.shape_cast %86 : vector<1x1x2048xf32> to vector<1x2048xf32>
    %88 = vector.broadcast %87 : vector<1x2048xf32> to vector<8x2048xf32>
    %89 = arith.addf %85, %88 : vector<8x2048xf32>
    %cst_60 = arith.constant 0.000000e+00 : f32
    %90 = vector.broadcast %cst_60 : f32 to vector<8x2048xf32>
    %91 = arith.maximumf %89, %90 : vector<8x2048xf32>
    %92 = arith.truncf %91 : vector<8x2048xf32> to vector<8x2048xbf16>
    %c0_61 = arith.constant 0 : index
    %c0_62 = arith.constant 0 : index
    %c0_63 = arith.constant 0 : index
    %93 = vector.load %arg16[%c0_61, %c0_62, %c0_63] : memref<1x32x2048xbf16, #tpu.memory_space<vmem>>, vector<1x32x2048xbf16>
    %94 = vector.shape_cast %93 : vector<1x32x2048xbf16> to vector<32x2048xbf16>
    %cst_64 = arith.constant dense<0.000000e+00> : vector<8x32xf32>
    %95 = tpu.matmul %92, %94, %cst_64 {dimension_numbers = #tpu.dot_dimension_numbers<[1], [1], [0], [0], [0, 0, 1, 0], [], []>} : vector<8x2048xbf16>, vector<32x2048xbf16>, vector<8x32xf32> -> vector<8x32xf32>
    %c0_65 = arith.constant 0 : index
    %c0_66 = arith.constant 0 : index
    %c0_67 = arith.constant 0 : index
    %96 = vector.load %arg17[%c0_65, %c0_66, %c0_67] : memref<1x1x32xf32, #tpu.memory_space<vmem>>, vector<1x1x32xf32>
    %97 = vector.shape_cast %96 : vector<1x1x32xf32> to vector<1x32xf32>
    %98 = vector.broadcast %97 : vector<1x32xf32> to vector<8x32xf32>
    %99 = arith.addf %95, %98 : vector<8x32xf32>
    %100 = arith.addf %81, %99 : vector<8x32xf32>
    %c0_68 = arith.constant 0 : index
    %c0_69 = arith.constant 0 : index
    %c0_70 = arith.constant 0 : index
    %101 = vector.load %arg18[%c0_68, %c0_69, %c0_70] : memref<1x1x32xf32, #tpu.memory_space<vmem>>, vector<1x1x32xf32>
    %102 = vector.shape_cast %101 : vector<1x1x32xf32> to vector<1x32xf32>
    %c0_71 = arith.constant 0 : index
    %c0_72 = arith.constant 0 : index
    %c0_73 = arith.constant 0 : index
    %103 = vector.load %arg19[%c0_71, %c0_72, %c0_73] : memref<1x1x32xf32, #tpu.memory_space<vmem>>, vector<1x1x32xf32>
    %104 = vector.shape_cast %103 : vector<1x1x32xf32> to vector<1x32xf32>
    %cst_74 = arith.constant dense<0.000000e+00> : vector<8xf32>
    %105 = vector.multi_reduction <add>, %100, %cst_74 [1] : vector<8x32xf32> to vector<8xf32>
    %106 = vector.shape_cast %105 : vector<8xf32> to vector<8x1xf32>
    %cst_75 = arith.constant 3.200000e+01 : f32
    %107 = vector.broadcast %cst_75 : f32 to vector<8x1xf32>
    %108 = arith.divf %106, %107 : vector<8x1xf32>
    %109 = vector.broadcast %108 : vector<8x1xf32> to vector<8x32xf32>
    %110 = arith.subf %100, %109 : vector<8x32xf32>
    %111 = arith.mulf %110, %110 : vector<8x32xf32>
    %cst_76 = arith.constant dense<0.000000e+00> : vector<8xf32>
    %112 = vector.multi_reduction <add>, %111, %cst_76 [1] : vector<8x32xf32> to vector<8xf32>
    %113 = vector.shape_cast %112 : vector<8xf32> to vector<8x1xf32>
    %cst_77 = arith.constant 3.200000e+01 : f32
    %114 = vector.broadcast %cst_77 : f32 to vector<8x1xf32>
    %115 = arith.divf %113, %114 : vector<8x1xf32>
    %116 = vector.broadcast %108 : vector<8x1xf32> to vector<8x32xf32>
    %117 = arith.subf %100, %116 : vector<8x32xf32>
    %cst_78 = arith.constant 9.99999974E-6 : f32
    %118 = vector.broadcast %cst_78 : f32 to vector<8x1xf32>
    %119 = arith.addf %115, %118 : vector<8x1xf32>
    %120 = math.rsqrt %119 : vector<8x1xf32>
    %121 = vector.broadcast %120 : vector<8x1xf32> to vector<8x32xf32>
    %122 = arith.mulf %117, %121 : vector<8x32xf32>
    %123 = vector.broadcast %102 : vector<1x32xf32> to vector<8x32xf32>
    %124 = arith.mulf %122, %123 : vector<8x32xf32>
    %125 = vector.broadcast %104 : vector<1x32xf32> to vector<8x32xf32>
    %126 = arith.addf %124, %125 : vector<8x32xf32>
    %c0_79 = arith.constant 0 : index
    %c0_80 = arith.constant 0 : index
    %127 = vector.load %arg23[%c0_79, %c0_80] : memref<8x32xf32, #tpu.memory_space<vmem>>, vector<8x32xf32>
    tpu.vector_store %arg23[%c0_79, %c0_80], %126 {strides = array<i32>} : memref<8x32xf32, #tpu.memory_space<vmem>>, vector<8x32xf32>,
    %c1_i32 = arith.constant 1 : i32
    %128 = arith.cmpi eq, %arg0, %c1_i32 : i32
    %129 = arith.extui %128 : i1 to i32
    %c0_i32_81 = arith.constant 0 : i32
    %130 = arith.cmpi ne, %129, %c0_i32_81 : i32
    scf.if %130 {
      %131 = arith.truncf %126 : vector<8x32xf32> to vector<8x32xbf16>
      %c0_82 = arith.constant 0 : index
      %c0_83 = arith.constant 0 : index
      %132 = vector.load %arg20[%c0_82, %c0_83] : memref<128x32xbf16, #tpu.memory_space<vmem>>, vector<128x32xbf16>
      %cst_84 = arith.constant dense<0.000000e+00> : vector<8x128xf32>
      %133 = tpu.matmul %131, %132, %cst_84 {dimension_numbers = #tpu.dot_dimension_numbers<[1], [1], [0], [0], [0, 0, 1, 0], [], []>} : vector<8x32xbf16>, vector<128x32xbf16>, vector<8x128xf32> -> vector<8x128xf32>
      %c0_85 = arith.constant 0 : index
      %c0_86 = arith.constant 0 : index
      %134 = vector.load %arg21[%c0_85, %c0_86] : memref<1x128xf32, #tpu.memory_space<vmem>>, vector<1x128xf32>
      %135 = vector.broadcast %134 : vector<1x128xf32> to vector<8x128xf32>
      %136 = arith.addf %133, %135 : vector<8x128xf32>
      %c0_87 = arith.constant 0 : index
      %c0_88 = arith.constant 0 : index
      %137 = vector.load %arg22[%c0_87, %c0_88] : memref<8x128xf32, #tpu.memory_space<vmem>>, vector<8x128xf32>
      tpu.vector_store %arg22[%c0_87, %c0_88], %136 {strides = array<i32>} : memref<8x128xf32, #tpu.memory_space<vmem>>, vector<8x128xf32>,
    } else {
    }
    return
  }
  func.func @transform_0(%arg0: i32) -> (i32, i32) {
    %c0_i32 = arith.constant 0 : i32
    %c0_i32_0 = arith.constant 0 : i32
    %c0_i32_1 = arith.constant 0 : i32
    return %c0_i32, %c0_i32_0 : i32, i32
  }
  func.func @transform_1(%arg0: i32) -> (i32, i32) {
    %c0_i32 = arith.constant 0 : i32
    %c0_i32_0 = arith.constant 0 : i32
    %c0_i32_1 = arith.constant 0 : i32
    return %c0_i32, %c0_i32_0 : i32, i32
  }
  func.func @transform_2(%arg0: i32) -> (i32, i32) {
    %c0_i32 = arith.constant 0 : i32
    %c0_i32_0 = arith.constant 0 : i32
    %c0_i32_1 = arith.constant 0 : i32
    return %c0_i32, %c0_i32_0 : i32, i32
  }
  func.func @transform_3(%arg0: i32) -> (i32, i32, i32, i32) {
    %c0_i32 = arith.constant 0 : i32
    %c0_i32_0 = arith.constant 0 : i32
    %c0_i32_1 = arith.constant 0 : i32
    %c0_i32_2 = arith.constant 0 : i32
    return %arg0, %c0_i32, %c0_i32_0, %c0_i32_1 : i32, i32, i32, i32
  }
  func.func @transform_4(%arg0: i32) -> (i32, i32, i32, i32) {
    %c0_i32 = arith.constant 0 : i32
    %c0_i32_0 = arith.constant 0 : i32
    %c0_i32_1 = arith.constant 0 : i32
    %c0_i32_2 = arith.constant 0 : i32
    return %arg0, %c0_i32, %c0_i32_0, %c0_i32_1 : i32, i32, i32, i32
  }
  func.func @transform_5(%arg0: i32) -> (i32, i32, i32, i32) {
    %c0_i32 = arith.constant 0 : i32
    %c0_i32_0 = arith.constant 0 : i32
    %c0_i32_1 = arith.constant 0 : i32
    %c0_i32_2 = arith.constant 0 : i32
    return %arg0, %c0_i32, %c0_i32_0, %c0_i32_1 : i32, i32, i32, i32
  }
  func.func @transform_6(%arg0: i32) -> (i32, i32, i32, i32) {
    %c0_i32 = arith.constant 0 : i32
    %c0_i32_0 = arith.constant 0 : i32
    %c0_i32_1 = arith.constant 0 : i32
    %c0_i32_2 = arith.constant 0 : i32
    return %arg0, %c0_i32, %c0_i32_0, %c0_i32_1 : i32, i32, i32, i32
  }
  func.func @transform_7(%arg0: i32) -> (i32, i32, i32, i32) {
    %c0_i32 = arith.constant 0 : i32
    %c0_i32_0 = arith.constant 0 : i32
    %c0_i32_1 = arith.constant 0 : i32
    %c0_i32_2 = arith.constant 0 : i32
    return %arg0, %c0_i32, %c0_i32_0, %c0_i32_1 : i32, i32, i32, i32
  }
  func.func @transform_8(%arg0: i32) -> (i32, i32, i32, i32) {
    %c0_i32 = arith.constant 0 : i32
    %c0_i32_0 = arith.constant 0 : i32
    %c0_i32_1 = arith.constant 0 : i32
    %c0_i32_2 = arith.constant 0 : i32
    return %arg0, %c0_i32, %c0_i32_0, %c0_i32_1 : i32, i32, i32, i32
  }
  func.func @transform_9(%arg0: i32) -> (i32, i32, i32, i32) {
    %c0_i32 = arith.constant 0 : i32
    %c0_i32_0 = arith.constant 0 : i32
    %c0_i32_1 = arith.constant 0 : i32
    %c0_i32_2 = arith.constant 0 : i32
    return %arg0, %c0_i32, %c0_i32_0, %c0_i32_1 : i32, i32, i32, i32
  }
  func.func @transform_10(%arg0: i32) -> (i32, i32, i32) {
    %c0_i32 = arith.constant 0 : i32
    %c0_i32_0 = arith.constant 0 : i32
    %c0_i32_1 = arith.constant 0 : i32
    return %arg0, %c0_i32, %c0_i32_0 : i32, i32, i32
  }
  func.func @transform_11(%arg0: i32) -> (i32, i32, i32) {
    %c0_i32 = arith.constant 0 : i32
    %c0_i32_0 = arith.constant 0 : i32
    %c0_i32_1 = arith.constant 0 : i32
    return %arg0, %c0_i32, %c0_i32_0 : i32, i32, i32
  }
  func.func @transform_12(%arg0: i32) -> (i32, i32, i32) {
    %c0_i32 = arith.constant 0 : i32
    %c0_i32_0 = arith.constant 0 : i32
    %c0_i32_1 = arith.constant 0 : i32
    return %arg0, %c0_i32, %c0_i32_0 : i32, i32, i32
  }
  func.func @transform_13(%arg0: i32) -> (i32, i32, i32) {
    %c0_i32 = arith.constant 0 : i32
    %c0_i32_0 = arith.constant 0 : i32
    %c0_i32_1 = arith.constant 0 : i32
    return %arg0, %c0_i32, %c0_i32_0 : i32, i32, i32
  }
  func.func @transform_14(%arg0: i32) -> (i32, i32, i32) {
    %c0_i32 = arith.constant 0 : i32
    %c0_i32_0 = arith.constant 0 : i32
    %c0_i32_1 = arith.constant 0 : i32
    return %arg0, %c0_i32, %c0_i32_0 : i32, i32, i32
  }
  func.func @transform_15(%arg0: i32) -> (i32, i32, i32) {
    %c0_i32 = arith.constant 0 : i32
    %c0_i32_0 = arith.constant 0 : i32
    %c0_i32_1 = arith.constant 0 : i32
    return %arg0, %c0_i32, %c0_i32_0 : i32, i32, i32
  }
  func.func @transform_16(%arg0: i32) -> (i32, i32, i32) {
    %c0_i32 = arith.constant 0 : i32
    %c0_i32_0 = arith.constant 0 : i32
    %c0_i32_1 = arith.constant 0 : i32
    return %arg0, %c0_i32, %c0_i32_0 : i32, i32, i32
  }
  func.func @transform_17(%arg0: i32) -> (i32, i32, i32) {
    %c0_i32 = arith.constant 0 : i32
    %c0_i32_0 = arith.constant 0 : i32
    %c0_i32_1 = arith.constant 0 : i32
    return %arg0, %c0_i32, %c0_i32_0 : i32, i32, i32
  }
  func.func @transform_18(%arg0: i32) -> (i32, i32, i32) {
    %c0_i32 = arith.constant 0 : i32
    %c0_i32_0 = arith.constant 0 : i32
    %c0_i32_1 = arith.constant 0 : i32
    return %arg0, %c0_i32, %c0_i32_0 : i32, i32, i32
  }
  func.func @transform_19(%arg0: i32) -> (i32, i32) {
    %c0_i32 = arith.constant 0 : i32
    %c0_i32_0 = arith.constant 0 : i32
    %c0_i32_1 = arith.constant 0 : i32
    return %c0_i32, %c0_i32_0 : i32, i32
  }
  func.func @transform_20(%arg0: i32) -> (i32, i32) {
    %c0_i32 = arith.constant 0 : i32
    %c0_i32_0 = arith.constant 0 : i32
    %c0_i32_1 = arith.constant 0 : i32
    return %c0_i32, %c0_i32_0 : i32, i32
  }
  func.func @transform_21(%arg0: i32) -> (i32, i32) {
    %c0_i32 = arith.constant 0 : i32
    %c0_i32_0 = arith.constant 0 : i32
    %c0_i32_1 = arith.constant 0 : i32
    return %c0_i32, %c0_i32_0 : i32, i32
  }
}

</mosaic_0001>

<llo_original>
// kernel: tpu_custom_call.1
$region0: #{tpu_custom_call.1}
  #allocation0 [shape = 'u32[]', space=smem, size = 0x4, offset = 0x4, fixed_abs, tag = 'smem constant byte address 0x4 - core index']
  #allocation1 [shape = 'u32[144,128]{1,0:T(1,128)}', space=vmem, size = 0x12000, scoped, tag = 'internal scratch']
  #allocation2 [shape = 'f32[8,32]{1,0:T(8,128)}', space=vmem, size = 0x1000, scoped, tag = 'scratch operand']
  %s0 = inlined_call_operand.vmem [shape: f32[8,6], index: 0, kind: input, shape index: {}]
  %s1 = inlined_call_operand.vmem [shape: bf16[32,6], index: 1, kind: input, shape index: {}]
  %s2 = inlined_call_operand.vmem [shape: f32[1,32], index: 2, kind: input, shape index: {}]
  %s3 = inlined_call_operand.vmem [shape: bf16[2,4,8,32], index: 3, kind: input, shape index: {}]
  %s4 = inlined_call_operand.vmem [shape: f32[2,4,1,8], index: 4, kind: input, shape index: {}]
  %s5 = inlined_call_operand.vmem [shape: bf16[2,4,8,32], index: 5, kind: input, shape index: {}]
  %s6 = inlined_call_operand.vmem [shape: f32[2,4,1,8], index: 6, kind: input, shape index: {}]
  %s7 = inlined_call_operand.vmem [shape: bf16[2,4,8,32], index: 7, kind: input, shape index: {}]
  %s8 = inlined_call_operand.vmem [shape: f32[2,4,1,8], index: 8, kind: input, shape index: {}]
  %s9 = inlined_call_operand.vmem [shape: bf16[2,4,32,8], index: 9, kind: input, shape index: {}]
  %s10 = inlined_call_operand.vmem [shape: f32[2,1,32], index: 10, kind: input, shape index: {}]
  %s11 = inlined_call_operand.vmem [shape: f32[2,1,32], index: 11, kind: input, shape index: {}]
  %s12 = inlined_call_operand.vmem [shape: f32[2,1,32], index: 12, kind: input, shape index: {}]
  %s13 = inlined_call_operand.vmem [shape: bf16[2,2048,32], index: 13, kind: input, shape index: {}]
  %s14 = inlined_call_operand.vmem [shape: f32[2,1,2048], index: 14, kind: input, shape index: {}]
  %s15 = inlined_call_operand.vmem [shape: bf16[2,32,2048], index: 15, kind: input, shape index: {}]
  %s16 = inlined_call_operand.vmem [shape: f32[2,1,32], index: 16, kind: input, shape index: {}]
  %s17 = inlined_call_operand.vmem [shape: f32[2,1,32], index: 17, kind: input, shape index: {}]
  %s18 = inlined_call_operand.vmem [shape: f32[2,1,32], index: 18, kind: input, shape index: {}]
  %s19 = inlined_call_operand.vmem [shape: bf16[128,32], index: 19, kind: input, shape index: {}]
  %s20 = inlined_call_operand.vmem [shape: f32[1,128], index: 20, kind: input, shape index: {}]
  %s21 = inlined_call_operand.hbm [shape: f32[8,128], index: 21, kind: output, shape index: {}]
  %s22 = sld [smem:[#allocation0]]
  $region125: #{tpu_custom_call.1} parent=0
    _
  %s24 = ssub.s32 1, %s22
  %s25 = scalar_select 0, %s24, %s22
  $region1: #{tpu_custom_call.1} parent=0
    #allocation3 [shape = 'u8[4096]{0}', space=vmem, size = 0x1000, scoped, tag = 'output window, operand 0, single buffered']
    #allocation4 [shape = 's32[2]{0}', space=sflag, size = 0x8, scoped, tag = 'scoped memory for tpu_custom_call.1']
    %26 = vsyncpa [#allocation4], 0
    loop: start=0, step=1, limit=4
    $region2: #{tpu_custom_call.1} parent=1 // loop_pre_header
      _
    $region3: #{tpu_custom_call.1} parent=1 // loop_header
      %s28 = sphi 0, %s32
      %p29 = scmp.ge.s32.totalorder %s28, 4
      %s36 = sphi 0, %s36
      %s38 = sphi 0, %s36
      %s39 = sphi 0, %s38
      %s53 = sphi 0, %s39
      %s57 = sphi 0, %s57
      %s59 = sphi 0, %s57
      %s60 = sphi 0, %s59
      %s74 = sphi 0, %s60
      %s78 = sphi 0, %s78
      %s80 = sphi 0, %s78
      %s81 = sphi 0, %s80
      %s95 = sphi 0, %s81
      %s101 = sphi 0, %s103
      %s104 = sphi 0, %s101
      %s105 = sphi 0, %s104
      %s121 = sphi 0, %s105
      %s127 = sphi 0, %s129
      %s130 = sphi 0, %s127
      %s131 = sphi 0, %s130
      %s147 = sphi 0, %s131
      %s153 = sphi 0, %s155
      %s156 = sphi 0, %s153
      %s157 = sphi 0, %s156
      %s173 = sphi 0, %s157
      %s179 = sphi 0, %s181
      %s182 = sphi 0, %s179
      %s183 = sphi 0, %s182
      %s199 = sphi 0, %s183
      %s205 = sphi 0, %s207
      %s208 = sphi 0, %s205
      %s209 = sphi 0, %s208
      %s225 = sphi 0, %s209
      %s231 = sphi 0, %s233
      %s234 = sphi 0, %s231
      %s235 = sphi 0, %s234
      %s251 = sphi 0, %s235
      %s257 = sphi 0, %s259
      %s260 = sphi 0, %s257
      %s261 = sphi 0, %s260
      %s277 = sphi 0, %s261
      %s283 = sphi 0, %s285
      %s286 = sphi 0, %s283
      %s287 = sphi 0, %s286
      %s303 = sphi 0, %s287
      %s309 = sphi 0, %s311
      %s312 = sphi 0, %s309
      %s313 = sphi 0, %s312
      %s329 = sphi 0, %s313
      %s335 = sphi 0, %s337
      %s338 = sphi 0, %s335
      %s339 = sphi 0, %s338
      %s355 = sphi 0, %s339
      %s361 = sphi 0, %s363
      %s364 = sphi 0, %s361
      %s365 = sphi 0, %s364
      %s381 = sphi 0, %s365
      %s387 = sphi 0, %s389
      %s390 = sphi 0, %s387
      %s391 = sphi 0, %s390
      %s407 = sphi 0, %s391
      %s413 = sphi 0, %s415
      %s416 = sphi 0, %s413
      %s417 = sphi 0, %s416
      %s433 = sphi 0, %s417
      %s439 = sphi 0, %s441
      %s442 = sphi 0, %s439
      %s443 = sphi 0, %s442
      %s459 = sphi 0, %s443
      %s465 = sphi 0, %s467
      %s468 = sphi 0, %s465
      %s469 = sphi 0, %s468
      %s485 = sphi 0, %s469
      %s491 = sphi 0, %s493
      %s494 = sphi 0, %s491
      %s495 = sphi 0, %s494
      %s511 = sphi 0, %s495
      %s515 = sphi 0, %s515
      %s517 = sphi 0, %s515
      %s518 = sphi 0, %s517
      %s532 = sphi 0, %s518
      %s536 = sphi 0, %s536
      %s538 = sphi 0, %s536
      %s539 = sphi 0, %s538
      %s553 = sphi 0, %s539
      %s557 = sphi 0, %s557
      %s559 = sphi 0, %s557
      %s560 = sphi 0, %s559
      %s574 = sphi 0, %s560
    $region4: #{tpu_custom_call.1} parent=1 // loop_header_branch
      %31 = sbr.rel (%p29) target = $region8
    $region5: #{tpu_custom_call.1} parent=1 // loop_body
      %s33 = ssub.s32 %s28, 1
      %s34 = ssub.s32 %s28, 2
      %s35 = sadd.s32 %s28, 1
      %s37 = sadd.s32 %s36, 1
      %p40 = scmp.eq.s32.totalorder %s28, 1
      %p41 = scmp.ne.s32.totalorder %s36, %s38
      %p42 = scmp.eq.s32.totalorder %s28, 0
      %p43 = por %p41, %p42
      %p44 = scmp.ne.s32.totalorder %s36, %s38
      %p45 = scmp.eq.s32.totalorder %s33, 1
      %p46 = por %p44, %p45
      %p47 = scmp.ne.s32.totalorder %s38, %s39
      %p48 = scmp.eq.s32.totalorder %s33, 0
      %p49 = por %p47, %p48
      %p50 = scmp.ne.s32.totalorder %s38, %s39
      %p51 = scmp.eq.s32.totalorder %s34, 1
      %p52 = por %p50, %p51
      %p54 = scmp.ne.s32.totalorder %s39, %s53
      %p55 = scmp.eq.s32.totalorder %s34, 0
      %p56 = por %p54, %p55
      %s58 = sadd.s32 %s57, 1
      %p61 = scmp.eq.s32.totalorder %s28, 1
      %p62 = scmp.ne.s32.totalorder %s57, %s59
      %p63 = scmp.eq.s32.totalorder %s28, 0
      %p64 = por %p62, %p63
      %p65 = scmp.ne.s32.totalorder %s57, %s59
      %p66 = scmp.eq.s32.totalorder %s33, 1
      %p67 = por %p65, %p66
      %p68 = scmp.ne.s32.totalorder %s59, %s60
      %p69 = scmp.eq.s32.totalorder %s33, 0
      %p70 = por %p68, %p69
      %p71 = scmp.ne.s32.totalorder %s59, %s60
      %p72 = scmp.eq.s32.totalorder %s34, 1
      %p73 = por %p71, %p72
      %p75 = scmp.ne.s32.totalorder %s60, %s74
      %p76 = scmp.eq.s32.totalorder %s34, 0
      %p77 = por %p75, %p76
      %s79 = sadd.s32 %s78, 1
      %p82 = scmp.eq.s32.totalorder %s28, 1
      %p83 = scmp.ne.s32.totalorder %s78, %s80
      %p84 = scmp.eq.s32.totalorder %s28, 0
      %p85 = por %p83, %p84
      %p86 = scmp.ne.s32.totalorder %s78, %s80
      %p87 = scmp.eq.s32.totalorder %s33, 1
      %p88 = por %p86, %p87
      %p89 = scmp.ne.s32.totalorder %s80, %s81
      %p90 = scmp.eq.s32.totalorder %s33, 0
      %p91 = por %p89, %p90
      %p92 = scmp.ne.s32.totalorder %s80, %s81
      %p93 = scmp.eq.s32.totalorder %s34, 1
      %p94 = por %p92, %p93
      %p96 = scmp.ne.s32.totalorder %s81, %s95
      %p97 = scmp.eq.s32.totalorder %s34, 0
      %p98 = por %p96, %p97
      %s99 = ssub.s32 %s28, %s35
      %p100 = scmp.eq.s32.totalorder %s99, 0
      %s102 = sadd.s32 %s101, 1
      %s103 = scalar_select %p100, %s101, %s102
      %p106 = pneg %p100
      %p107 = scmp.eq.s32.totalorder %s28, 1
      %p108 = por %p106, %p107
      %p109 = scmp.ne.s32.totalorder %s101, %s104
      %p110 = scmp.eq.s32.totalorder %s28, 0
      %p111 = por %p109, %p110
      %p112 = scmp.ne.s32.totalorder %s101, %s104
      %p113 = scmp.eq.s32.totalorder %s33, 1
      %p114 = por %p112, %p113
      %p115 = scmp.ne.s32.totalorder %s104, %s105
      %p116 = scmp.eq.s32.totalorder %s33, 0
      %p117 = por %p115, %p116
      %p118 = scmp.ne.s32.totalorder %s104, %s105
      %p119 = scmp.eq.s32.totalorder %s34, 1
      %p120 = por %p118, %p119
      %p122 = scmp.ne.s32.totalorder %s105, %s121
      %p123 = scmp.eq.s32.totalorder %s34, 0
      %p124 = por %p122, %p123
      %s125 = ssub.s32 %s28, %s35
      %p126 = scmp.eq.s32.totalorder %s125, 0
      %s128 = sadd.s32 %s127, 1
      %s129 = scalar_select %p126, %s127, %s128
      %p132 = pneg %p126
      %p133 = scmp.eq.s32.totalorder %s28, 1
      %p134 = por %p132, %p133
      %p135 = scmp.ne.s32.totalorder %s127, %s130
      %p136 = scmp.eq.s32.totalorder %s28, 0
      %p137 = por %p135, %p136
      %p138 = scmp.ne.s32.totalorder %s127, %s130
      %p139 = scmp.eq.s32.totalorder %s33, 1
      %p140 = por %p138, %p139
      %p141 = scmp.ne.s32.totalorder %s130, %s131
      %p142 = scmp.eq.s32.totalorder %s33, 0
      %p143 = por %p141, %p142
      %p144 = scmp.ne.s32.totalorder %s130, %s131
      %p145 = scmp.eq.s32.totalorder %s34, 1
      %p146 = por %p144, %p145
      %p148 = scmp.ne.s32.totalorder %s131, %s147
      %p149 = scmp.eq.s32.totalorder %s34, 0
      %p150 = por %p148, %p149
      %s151 = ssub.s32 %s28, %s35
      %p152 = scmp.eq.s32.totalorder %s151, 0
      %s154 = sadd.s32 %s153, 1
      %s155 = scalar_select %p152, %s153, %s154
      %p158 = pneg %p152
      %p159 = scmp.eq.s32.totalorder %s28, 1
      %p160 = por %p158, %p159
      %p161 = scmp.ne.s32.totalorder %s153, %s156
      %p162 = scmp.eq.s32.totalorder %s28, 0
      %p163 = por %p161, %p162
      %p164 = scmp.ne.s32.totalorder %s153, %s156
      %p165 = scmp.eq.s32.totalorder %s33, 1
      %p166 = por %p164, %p165
      %p167 = scmp.ne.s32.totalorder %s156, %s157
      %p168 = scmp.eq.s32.totalorder %s33, 0
      %p169 = por %p167, %p168
      %p170 = scmp.ne.s32.totalorder %s156, %s157
      %p171 = scmp.eq.s32.totalorder %s34, 1
      %p172 = por %p170, %p171
      %p174 = scmp.ne.s32.totalorder %s157, %s173
      %p175 = scmp.eq.s32.totalorder %s34, 0
      %p176 = por %p174, %p175
      %s177 = ssub.s32 %s28, %s35
      %p178 = scmp.eq.s32.totalorder %s177, 0
      %s180 = sadd.s32 %s179, 1
      %s181 = scalar_select %p178, %s179, %s180
      %p184 = pneg %p178
      %p185 = scmp.eq.s32.totalorder %s28, 1
      %p186 = por %p184, %p185
      %p187 = scmp.ne.s32.totalorder %s179, %s182
      %p188 = scmp.eq.s32.totalorder %s28, 0
      %p189 = por %p187, %p188
      %p190 = scmp.ne.s32.totalorder %s179, %s182
      %p191 = scmp.eq.s32.totalorder %s33, 1
      %p192 = por %p190, %p191
      %p193 = scmp.ne.s32.totalorder %s182, %s183
      %p194 = scmp.eq.s32.totalorder %s33, 0
      %p195 = por %p193, %p194
      %p196 = scmp.ne.s32.totalorder %s182, %s183
      %p197 = scmp.eq.s32.totalorder %s34, 1
      %p198 = por %p196, %p197
      %p200 = scmp.ne.s32.totalorder %s183, %s199
      %p201 = scmp.eq.s32.totalorder %s34, 0
      %p202 = por %p200, %p201
      %s203 = ssub.s32 %s28, %s35
      %p204 = scmp.eq.s32.totalorder %s203, 0
      %s206 = sadd.s32 %s205, 1
      %s207 = scalar_select %p204, %s205, %s206
      %p210 = pneg %p204
      %p211 = scmp.eq.s32.totalorder %s28, 1
      %p212 = por %p210, %p211
      %p213 = scmp.ne.s32.totalorder %s205, %s208
      %p214 = scmp.eq.s32.totalorder %s28, 0
      %p215 = por %p213, %p214
      %p216 = scmp.ne.s32.totalorder %s205, %s208
      %p217 = scmp.eq.s32.totalorder %s33, 1
      %p218 = por %p216, %p217
      %p219 = scmp.ne.s32.totalorder %s208, %s209
      %p220 = scmp.eq.s32.totalorder %s33, 0
      %p221 = por %p219, %p220
      %p222 = scmp.ne.s32.totalorder %s208, %s209
      %p223 = scmp.eq.s32.totalorder %s34, 1
      %p224 = por %p222, %p223
      %p226 = scmp.ne.s32.totalorder %s209, %s225
      %p227 = scmp.eq.s32.totalorder %s34, 0
      %p228 = por %p226, %p227
      %s229 = ssub.s32 %s28, %s35
      %p230 = scmp.eq.s32.totalorder %s229, 0
      %s232 = sadd.s32 %s231, 1
      %s233 = scalar_select %p230, %s231, %s232
      %p236 = pneg %p230
      %p237 = scmp.eq.s32.totalorder %s28, 1
      %p238 = por %p236, %p237
      %p239 = scmp.ne.s32.totalorder %s231, %s234
      %p240 = scmp.eq.s32.totalorder %s28, 0
      %p241 = por %p239, %p240
      %p242 = scmp.ne.s32.totalorder %s231, %s234
      %p243 = scmp.eq.s32.totalorder %s33, 1
      %p244 = por %p242, %p243
      %p245 = scmp.ne.s32.totalorder %s234, %s235
      %p246 = scmp.eq.s32.totalorder %s33, 0
      %p247 = por %p245, %p246
      %p248 = scmp.ne.s32.totalorder %s234, %s235
      %p249 = scmp.eq.s32.totalorder %s34, 1
      %p250 = por %p248, %p249
      %p252 = scmp.ne.s32.totalorder %s235, %s251
      %p253 = scmp.eq.s32.totalorder %s34, 0
      %p254 = por %p252, %p253
      %s255 = ssub.s32 %s28, %s35
      %p256 = scmp.eq.s32.totalorder %s255, 0
      %s258 = sadd.s32 %s257, 1
      %s259 = scalar_select %p256, %s257, %s258
      %p262 = pneg %p256
      %p263 = scmp.eq.s32.totalorder %s28, 1
      %p264 = por %p262, %p263
      %p265 = scmp.ne.s32.totalorder %s257, %s260
      %p266 = scmp.eq.s32.totalorder %s28, 0
      %p267 = por %p265, %p266
      %p268 = scmp.ne.s32.totalorder %s257, %s260
      %p269 = scmp.eq.s32.totalorder %s33, 1
      %p270 = por %p268, %p269
      %p271 = scmp.ne.s32.totalorder %s260, %s261
      %p272 = scmp.eq.s32.totalorder %s33, 0
      %p273 = por %p271, %p272
      %p274 = scmp.ne.s32.totalorder %s260, %s261
      %p275 = scmp.eq.s32.totalorder %s34, 1
      %p276 = por %p274, %p275
      %p278 = scmp.ne.s32.totalorder %s261, %s277
      %p279 = scmp.eq.s32.totalorder %s34, 0
      %p280 = por %p278, %p279
      %s281 = ssub.s32 %s28, %s35
      %p282 = scmp.eq.s32.totalorder %s281, 0
      %s284 = sadd.s32 %s283, 1
      %s285 = scalar_select %p282, %s283, %s284
      %p288 = pneg %p282
      %p289 = scmp.eq.s32.totalorder %s28, 1
      %p290 = por %p288, %p289
      %p291 = scmp.ne.s32.totalorder %s283, %s286
      %p292 = scmp.eq.s32.totalorder %s28, 0
      %p293 = por %p291, %p292
      %p294 = scmp.ne.s32.totalorder %s283, %s286
      %p295 = scmp.eq.s32.totalorder %s33, 1
      %p296 = por %p294, %p295
      %p297 = scmp.ne.s32.totalorder %s286, %s287
      %p298 = scmp.eq.s32.totalorder %s33, 0
      %p299 = por %p297, %p298
      %p300 = scmp.ne.s32.totalorder %s286, %s287
      %p301 = scmp.eq.s32.totalorder %s34, 1
      %p302 = por %p300, %p301
      %p304 = scmp.ne.s32.totalorder %s287, %s303
      %p305 = scmp.eq.s32.totalorder %s34, 0
      %p306 = por %p304, %p305
      %s307 = ssub.s32 %s28, %s35
      %p308 = scmp.eq.s32.totalorder %s307, 0
      %s310 = sadd.s32 %s309, 1
      %s311 = scalar_select %p308, %s309, %s310
      %p314 = pneg %p308
      %p315 = scmp.eq.s32.totalorder %s28, 1
      %p316 = por %p314, %p315
      %p317 = scmp.ne.s32.totalorder %s309, %s312
      %p318 = scmp.eq.s32.totalorder %s28, 0
      %p319 = por %p317, %p318
      %p320 = scmp.ne.s32.totalorder %s309, %s312
      %p321 = scmp.eq.s32.totalorder %s33, 1
      %p322 = por %p320, %p321
      %p323 = scmp.ne.s32.totalorder %s312, %s313
      %p324 = scmp.eq.s32.totalorder %s33, 0
      %p325 = por %p323, %p324
      %p326 = scmp.ne.s32.totalorder %s312, %s313
      %p327 = scmp.eq.s32.totalorder %s34, 1
      %p328 = por %p326, %p327
      %p330 = scmp.ne.s32.totalorder %s313, %s329
      %p331 = scmp.eq.s32.totalorder %s34, 0
      %p332 = por %p330, %p331
      %s333 = ssub.s32 %s28, %s35
      %p334 = scmp.eq.s32.totalorder %s333, 0
      %s336 = sadd.s32 %s335, 1
      %s337 = scalar_select %p334, %s335, %s336
      %p340 = pneg %p334
      %p341 = scmp.eq.s32.totalorder %s28, 1
      %p342 = por %p340, %p341
      %p343 = scmp.ne.s32.totalorder %s335, %s338
      %p344 = scmp.eq.s32.totalorder %s28, 0
      %p345 = por %p343, %p344
      %p346 = scmp.ne.s32.totalorder %s335, %s338
      %p347 = scmp.eq.s32.totalorder %s33, 1
      %p348 = por %p346, %p347
      %p349 = scmp.ne.s32.totalorder %s338, %s339
      %p350 = scmp.eq.s32.totalorder %s33, 0
      %p351 = por %p349, %p350
      %p352 = scmp.ne.s32.totalorder %s338, %s339
      %p353 = scmp.eq.s32.totalorder %s34, 1
      %p354 = por %p352, %p353
      %p356 = scmp.ne.s32.totalorder %s339, %s355
      %p357 = scmp.eq.s32.totalorder %s34, 0
      %p358 = por %p356, %p357
      %s359 = ssub.s32 %s28, %s35
      %p360 = scmp.eq.s32.totalorder %s359, 0
      %s362 = sadd.s32 %s361, 1
      %s363 = scalar_select %p360, %s361, %s362
      %p366 = pneg %p360
      %p367 = scmp.eq.s32.totalorder %s28, 1
      %p368 = por %p366, %p367
      %p369 = scmp.ne.s32.totalorder %s361, %s364
      %p370 = scmp.eq.s32.totalorder %s28, 0
      %p371 = por %p369, %p370
      %p372 = scmp.ne.s32.totalorder %s361, %s364
      %p373 = scmp.eq.s32.totalorder %s33, 1
      %p374 = por %p372, %p373
      %p375 = scmp.ne.s32.totalorder %s364, %s365
      %p376 = scmp.eq.s32.totalorder %s33, 0
      %p377 = por %p375, %p376
      %p378 = scmp.ne.s32.totalorder %s364, %s365
      %p379 = scmp.eq.s32.totalorder %s34, 1
      %p380 = por %p378, %p379
      %p382 = scmp.ne.s32.totalorder %s365, %s381
      %p383 = scmp.eq.s32.totalorder %s34, 0
      %p384 = por %p382, %p383
      %s385 = ssub.s32 %s28, %s35
      %p386 = scmp.eq.s32.totalorder %s385, 0
      %s388 = sadd.s32 %s387, 1
      %s389 = scalar_select %p386, %s387, %s388
      %p392 = pneg %p386
      %p393 = scmp.eq.s32.totalorder %s28, 1
      %p394 = por %p392, %p393
      %p395 = scmp.ne.s32.totalorder %s387, %s390
      %p396 = scmp.eq.s32.totalorder %s28, 0
      %p397 = por %p395, %p396
      %p398 = scmp.ne.s32.totalorder %s387, %s390
      %p399 = scmp.eq.s32.totalorder %s33, 1
      %p400 = por %p398, %p399
      %p401 = scmp.ne.s32.totalorder %s390, %s391
      %p402 = scmp.eq.s32.totalorder %s33, 0
      %p403 = por %p401, %p402
      %p404 = scmp.ne.s32.totalorder %s390, %s391
      %p405 = scmp.eq.s32.totalorder %s34, 1
      %p406 = por %p404, %p405
      %p408 = scmp.ne.s32.totalorder %s391, %s407
      %p409 = scmp.eq.s32.totalorder %s34, 0
      %p410 = por %p408, %p409
      %s411 = ssub.s32 %s28, %s35
      %p412 = scmp.eq.s32.totalorder %s411, 0
      %s414 = sadd.s32 %s413, 1
      %s415 = scalar_select %p412, %s413, %s414
      %p418 = pneg %p412
      %p419 = scmp.eq.s32.totalorder %s28, 1
      %p420 = por %p418, %p419
      %p421 = scmp.ne.s32.totalorder %s413, %s416
      %p422 = scmp.eq.s32.totalorder %s28, 0
      %p423 = por %p421, %p422
      %p424 = scmp.ne.s32.totalorder %s413, %s416
      %p425 = scmp.eq.s32.totalorder %s33, 1
      %p426 = por %p424, %p425
      %p427 = scmp.ne.s32.totalorder %s416, %s417
      %p428 = scmp.eq.s32.totalorder %s33, 0
      %p429 = por %p427, %p428
      %p430 = scmp.ne.s32.totalorder %s416, %s417
      %p431 = scmp.eq.s32.totalorder %s34, 1
      %p432 = por %p430, %p431
      %p434 = scmp.ne.s32.totalorder %s417, %s433
      %p435 = scmp.eq.s32.totalorder %s34, 0
      %p436 = por %p434, %p435
      %s437 = ssub.s32 %s28, %s35
      %p438 = scmp.eq.s32.totalorder %s437, 0
      %s440 = sadd.s32 %s439, 1
      %s441 = scalar_select %p438, %s439, %s440
      %p444 = pneg %p438
      %p445 = scmp.eq.s32.totalorder %s28, 1
      %p446 = por %p444, %p445
      %p447 = scmp.ne.s32.totalorder %s439, %s442
      %p448 = scmp.eq.s32.totalorder %s28, 0
      %p449 = por %p447, %p448
      %p450 = scmp.ne.s32.totalorder %s439, %s442
      %p451 = scmp.eq.s32.totalorder %s33, 1
      %p452 = por %p450, %p451
      %p453 = scmp.ne.s32.totalorder %s442, %s443
      %p454 = scmp.eq.s32.totalorder %s33, 0
      %p455 = por %p453, %p454
      %p456 = scmp.ne.s32.totalorder %s442, %s443
      %p457 = scmp.eq.s32.totalorder %s34, 1
      %p458 = por %p456, %p457
      %p460 = scmp.ne.s32.totalorder %s443, %s459
      %p461 = scmp.eq.s32.totalorder %s34, 0
      %p462 = por %p460, %p461
      %s463 = ssub.s32 %s28, %s35
      %p464 = scmp.eq.s32.totalorder %s463, 0
      %s466 = sadd.s32 %s465, 1
      %s467 = scalar_select %p464, %s465, %s466
      %p470 = pneg %p464
      %p471 = scmp.eq.s32.totalorder %s28, 1
      %p472 = por %p470, %p471
      %p473 = scmp.ne.s32.totalorder %s465, %s468
      %p474 = scmp.eq.s32.totalorder %s28, 0
      %p475 = por %p473, %p474
      %p476 = scmp.ne.s32.totalorder %s465, %s468
      %p477 = scmp.eq.s32.totalorder %s33, 1
      %p478 = por %p476, %p477
      %p479 = scmp.ne.s32.totalorder %s468, %s469
      %p480 = scmp.eq.s32.totalorder %s33, 0
      %p481 = por %p479, %p480
      %p482 = scmp.ne.s32.totalorder %s468, %s469
      %p483 = scmp.eq.s32.totalorder %s34, 1
      %p484 = por %p482, %p483
      %p486 = scmp.ne.s32.totalorder %s469, %s485
      %p487 = scmp.eq.s32.totalorder %s34, 0
      %p488 = por %p486, %p487
      %s489 = ssub.s32 %s28, %s35
      %p490 = scmp.eq.s32.totalorder %s489, 0
      %s492 = sadd.s32 %s491, 1
      %s493 = scalar_select %p490, %s491, %s492
      %p496 = pneg %p490
      %p497 = scmp.eq.s32.totalorder %s28, 1
      %p498 = por %p496, %p497
      %p499 = scmp.ne.s32.totalorder %s491, %s494
      %p500 = scmp.eq.s32.totalorder %s28, 0
      %p501 = por %p499, %p500
      %p502 = scmp.ne.s32.totalorder %s491, %s494
      %p503 = scmp.eq.s32.totalorder %s33, 1
      %p504 = por %p502, %p503
      %p505 = scmp.ne.s32.totalorder %s494, %s495
      %p506 = scmp.eq.s32.totalorder %s33, 0
      %p507 = por %p505, %p506
      %p508 = scmp.ne.s32.totalorder %s494, %s495
      %p509 = scmp.eq.s32.totalorder %s34, 1
      %p510 = por %p508, %p509
      %p512 = scmp.ne.s32.totalorder %s495, %s511
      %p513 = scmp.eq.s32.totalorder %s34, 0
      %p514 = por %p512, %p513
      %s516 = sadd.s32 %s515, 1
      %p519 = scmp.eq.s32.totalorder %s28, 1
      %p520 = scmp.ne.s32.totalorder %s515, %s517
      %p521 = scmp.eq.s32.totalorder %s28, 0
      %p522 = por %p520, %p521
      %p523 = scmp.ne.s32.totalorder %s515, %s517
      %p524 = scmp.eq.s32.totalorder %s33, 1
      %p525 = por %p523, %p524
      %p526 = scmp.ne.s32.totalorder %s517, %s518
      %p527 = scmp.eq.s32.totalorder %s33, 0
      %p528 = por %p526, %p527
      %p529 = scmp.ne.s32.totalorder %s517, %s518
      %p530 = scmp.eq.s32.totalorder %s34, 1
      %p531 = por %p529, %p530
      %p533 = scmp.ne.s32.totalorder %s518, %s532
      %p534 = scmp.eq.s32.totalorder %s34, 0
      %p535 = por %p533, %p534
      %s537 = sadd.s32 %s536, 1
      %p540 = scmp.eq.s32.totalorder %s28, 1
      %p541 = scmp.ne.s32.totalorder %s536, %s538
      %p542 = scmp.eq.s32.totalorder %s28, 0
      %p543 = por %p541, %p542
      %p544 = scmp.ne.s32.totalorder %s536, %s538
      %p545 = scmp.eq.s32.totalorder %s33, 1
      %p546 = por %p544, %p545
      %p547 = scmp.ne.s32.totalorder %s538, %s539
      %p548 = scmp.eq.s32.totalorder %s33, 0
      %p549 = por %p547, %p548
      %p550 = scmp.ne.s32.totalorder %s538, %s539
      %p551 = scmp.eq.s32.totalorder %s34, 1
      %p552 = por %p550, %p551
      %p554 = scmp.ne.s32.totalorder %s539, %s553
      %p555 = scmp.eq.s32.totalorder %s34, 0
      %p556 = por %p554, %p555
      %s558 = sadd.s32 %s557, 1
      %p561 = scmp.eq.s32.totalorder %s28, 1
      %p562 = scmp.ne.s32.totalorder %s557, %s559
      %p563 = scmp.eq.s32.totalorder %s28, 0
      %p564 = por %p562, %p563
      %p565 = scmp.ne.s32.totalorder %s557, %s559
      %p566 = scmp.eq.s32.totalorder %s33, 1
      %p567 = por %p565, %p566
      %p568 = scmp.ne.s32.totalorder %s559, %s560
      %p569 = scmp.eq.s32.totalorder %s33, 0
      %p570 = por %p568, %p569
      %p571 = scmp.ne.s32.totalorder %s559, %s560
      %p572 = scmp.eq.s32.totalorder %s34, 1
      %p573 = por %p571, %p572
      %p575 = scmp.ne.s32.totalorder %s560, %s574
      %p576 = scmp.eq.s32.totalorder %s34, 0
      %p577 = por %p575, %p576
      %p578 = scmp.le.s32.totalorder 1, %s28
      %p579 = scmp.lt.s32.totalorder %s28, 3
      %p580 = pnand %p578, %p579
      %p581 = pneg %p580
      // Predicated region
      $region9: #{tpu_custom_call.1} parent=5 // pred_check
        _
      $region10: #{tpu_custom_call.1} parent=5 // pred_check_branch
        %583 = sbr.rel (%p580) target = $region12
      $region11: #{tpu_custom_call.1} parent=5 // pred_region
        %s584 = ssub.s32 %s28, 1
        // Predicated region
        $region13: #{tpu_custom_call.1} parent=11 // pred_check
          %p585 = pneg %p49
        $region14: #{tpu_custom_call.1} parent=11 // pred_check_branch
          %587 = sbr.rel (%p585) target = $region16
        $region15: #{tpu_custom_call.1} parent=11 // pred_region
          _
        $region16: #{tpu_custom_call.1} parent=11 // pred_fallthru
          _
        // Predicated region
        $region17: #{tpu_custom_call.1} parent=11 // pred_check
          %p588 = pneg %p70
        $region18: #{tpu_custom_call.1} parent=11 // pred_check_branch
          %590 = sbr.rel (%p588) target = $region20
        $region19: #{tpu_custom_call.1} parent=11 // pred_region
          _
        $region20: #{tpu_custom_call.1} parent=11 // pred_fallthru
          _
        // Predicated region
        $region21: #{tpu_custom_call.1} parent=11 // pred_check
          %p591 = pneg %p91
        $region22: #{tpu_custom_call.1} parent=11 // pred_check_branch
          %593 = sbr.rel (%p591) target = $region24
        $region23: #{tpu_custom_call.1} parent=11 // pred_region
          _
        $region24: #{tpu_custom_call.1} parent=11 // pred_fallthru
          _
        // Predicated region
        $region25: #{tpu_custom_call.1} parent=11 // pred_check
          %p594 = pneg %p528
        $region26: #{tpu_custom_call.1} parent=11 // pred_check_branch
          %596 = sbr.rel (%p594) target = $region28
        $region27: #{tpu_custom_call.1} parent=11 // pred_region
          _
        $region28: #{tpu_custom_call.1} parent=11 // pred_fallthru
          _
        // Predicated region
        $region29: #{tpu_custom_call.1} parent=11 // pred_check
          %p597 = pneg %p549
        $region30: #{tpu_custom_call.1} parent=11 // pred_check_branch
          %599 = sbr.rel (%p597) target = $region32
        $region31: #{tpu_custom_call.1} parent=11 // pred_region
          _
        $region32: #{tpu_custom_call.1} parent=11 // pred_fallthru
          _
      $region12: #{tpu_custom_call.1} parent=5 // pred_fallthru
        _
      %p600 = scmp.lt.s32.totalorder %s28, 2
      // Predicated region
      $region33: #{tpu_custom_call.1} parent=5 // pred_check
        %p601 = pneg %p600
      $region34: #{tpu_custom_call.1} parent=5 // pred_check_branch
        %603 = sbr.rel (%p601) target = $region36
      $region35: #{tpu_custom_call.1} parent=5 // pred_region
        // Predicated region
        $region37: #{tpu_custom_call.1} parent=35 // pred_check
          %p604 = pneg %p111
        $region38: #{tpu_custom_call.1} parent=35 // pred_check_branch
          %606 = sbr.rel (%p604) target = $region40
        $region39: #{tpu_custom_call.1} parent=35 // pred_region
          %p607 = scmp.lt.s32.totalorder %s28, 1
          %s608 = scalar_select %p607, %s28, 1
          %s609 = smul.addr %s608, 4
          %s610 = smul.addr %s609, 4
          %s611 = scalar_lea.vmem %s3, %s610
        $region40: #{tpu_custom_call.1} parent=35 // pred_fallthru
          _
        // Predicated region
        $region41: #{tpu_custom_call.1} parent=35 // pred_check
          %p612 = pneg %p137
        $region42: #{tpu_custom_call.1} parent=35 // pred_check_branch
          %614 = sbr.rel (%p612) target = $region44
        $region43: #{tpu_custom_call.1} parent=35 // pred_region
          %p615 = scmp.lt.s32.totalorder %s28, 1
          %s616 = scalar_select %p615, %s28, 1
          %s617 = smul.addr %s616, 4
          %s618 = scalar_lea.vmem %s4, %s617
        $region44: #{tpu_custom_call.1} parent=35 // pred_fallthru
          _
        // Predicated region
        $region45: #{tpu_custom_call.1} parent=35 // pred_check
          %p619 = pneg %p163
        $region46: #{tpu_custom_call.1} parent=35 // pred_check_branch
          %621 = sbr.rel (%p619) target = $region48
        $region47: #{tpu_custom_call.1} parent=35 // pred_region
          %p622 = scmp.lt.s32.totalorder %s28, 1
          %s623 = scalar_select %p622, %s28, 1
          %s624 = smul.addr %s623, 4
          %s625 = smul.addr %s624, 4
          %s626 = scalar_lea.vmem %s5, %s625
        $region48: #{tpu_custom_call.1} parent=35 // pred_fallthru
          _
        // Predicated region
        $region49: #{tpu_custom_call.1} parent=35 // pred_check
          %p627 = pneg %p189
        $region50: #{tpu_custom_call.1} parent=35 // pred_check_branch
          %629 = sbr.rel (%p627) target = $region52
        $region51: #{tpu_custom_call.1} parent=35 // pred_region
          %p630 = scmp.lt.s32.totalorder %s28, 1
          %s631 = scalar_select %p630, %s28, 1
          %s632 = smul.addr %s631, 4
          %s633 = scalar_lea.vmem %s6, %s632
        $region52: #{tpu_custom_call.1} parent=35 // pred_fallthru
          _
        // Predicated region
        $region53: #{tpu_custom_call.1} parent=35 // pred_check
          %p634 = pneg %p215
        $region54: #{tpu_custom_call.1} parent=35 // pred_check_branch
          %636 = sbr.rel (%p634) target = $region56
        $region55: #{tpu_custom_call.1} parent=35 // pred_region
          %p637 = scmp.lt.s32.totalorder %s28, 1
          %s638 = scalar_select %p637, %s28, 1
          %s639 = smul.addr %s638, 4
          %s640 = smul.addr %s639, 4
          %s641 = scalar_lea.vmem %s7, %s640
        $region56: #{tpu_custom_call.1} parent=35 // pred_fallthru
          _
        // Predicated region
        $region57: #{tpu_custom_call.1} parent=35 // pred_check
          %p642 = pneg %p241
        $region58: #{tpu_custom_call.1} parent=35 // pred_check_branch
          %644 = sbr.rel (%p642) target = $region60
        $region59: #{tpu_custom_call.1} parent=35 // pred_region
          %p645 = scmp.lt.s32.totalorder %s28, 1
          %s646 = scalar_select %p645, %s28, 1
          %s647 = smul.addr %s646, 4
          %s648 = scalar_lea.vmem %s8, %s647
        $region60: #{tpu_custom_call.1} parent=35 // pred_fallthru
          _
        // Predicated region
        $region61: #{tpu_custom_call.1} parent=35 // pred_check
          %p649 = pneg %p267
        $region62: #{tpu_custom_call.1} parent=35 // pred_check_branch
          %651 = sbr.rel (%p649) target = $region64
        $region63: #{tpu_custom_call.1} parent=35 // pred_region
          %p652 = scmp.lt.s32.totalorder %s28, 1
          %s653 = scalar_select %p652, %s28, 1
          %s654 = smul.addr %s653, 16
          %s655 = smul.addr %s654, 4
          %s656 = scalar_lea.vmem %s9, %s655
        $region64: #{tpu_custom_call.1} parent=35 // pred_fallthru
          _
        // Predicated region
        $region65: #{tpu_custom_call.1} parent=35 // pred_check
          %p657 = pneg %p293
        $region66: #{tpu_custom_call.1} parent=35 // pred_check_branch
          %659 = sbr.rel (%p657) target = $region68
        $region67: #{tpu_custom_call.1} parent=35 // pred_region
          %p660 = scmp.lt.s32.totalorder %s28, 1
          %s661 = scalar_select %p660, %s28, 1
          %s662 = scalar_lea.vmem %s10, %s661
        $region68: #{tpu_custom_call.1} parent=35 // pred_fallthru
          _
        // Predicated region
        $region69: #{tpu_custom_call.1} parent=35 // pred_check
          %p663 = pneg %p319
        $region70: #{tpu_custom_call.1} parent=35 // pred_check_branch
          %665 = sbr.rel (%p663) target = $region72
        $region71: #{tpu_custom_call.1} parent=35 // pred_region
          %p666 = scmp.lt.s32.totalorder %s28, 1
          %s667 = scalar_select %p666, %s28, 1
          %s668 = scalar_lea.vmem %s11, %s667
        $region72: #{tpu_custom_call.1} parent=35 // pred_fallthru
          _
        // Predicated region
        $region73: #{tpu_custom_call.1} parent=35 // pred_check
          %p669 = pneg %p345
        $region74: #{tpu_custom_call.1} parent=35 // pred_check_branch
          %671 = sbr.rel (%p669) target = $region76
        $region75: #{tpu_custom_call.1} parent=35 // pred_region
          %p672 = scmp.lt.s32.totalorder %s28, 1
          %s673 = scalar_select %p672, %s28, 1
          %s674 = scalar_lea.vmem %s12, %s673
        $region76: #{tpu_custom_call.1} parent=35 // pred_fallthru
          _
        // Predicated region
        $region77: #{tpu_custom_call.1} parent=35 // pred_check
          %p675 = pneg %p371
        $region78: #{tpu_custom_call.1} parent=35 // pred_check_branch
          %677 = sbr.rel (%p675) target = $region80
        $region79: #{tpu_custom_call.1} parent=35 // pred_region
          %p678 = scmp.lt.s32.totalorder %s28, 1
          %s679 = scalar_select %p678, %s28, 1
          %s680 = smul.addr %s679, 256
          %s681 = smul.addr %s680, 4
          %s682 = scalar_lea.vmem %s13, %s681
        $region80: #{tpu_custom_call.1} parent=35 // pred_fallthru
          _
        // Predicated region
        $region81: #{tpu_custom_call.1} parent=35 // pred_check
          %p683 = pneg %p397
        $region82: #{tpu_custom_call.1} parent=35 // pred_check_branch
          %685 = sbr.rel (%p683) target = $region84
        $region83: #{tpu_custom_call.1} parent=35 // pred_region
          %p686 = scmp.lt.s32.totalorder %s28, 1
          %s687 = scalar_select %p686, %s28, 1
          %s688 = smul.addr %s687, 16
          %s689 = scalar_lea.vmem %s14, %s688
        $region84: #{tpu_custom_call.1} parent=35 // pred_fallthru
          _
        // Predicated region
        $region85: #{tpu_custom_call.1} parent=35 // pred_check
          %p690 = pneg %p423
        $region86: #{tpu_custom_call.1} parent=35 // pred_check_branch
          %692 = sbr.rel (%p690) target = $region88
        $region87: #{tpu_custom_call.1} parent=35 // pred_region
          %p693 = scmp.lt.s32.totalorder %s28, 1
          %s694 = scalar_select %p693, %s28, 1
          %s695 = smul.addr %s694, 64
          %s696 = smul.addr %s695, 4
          %s697 = scalar_lea.vmem %s15, %s696
        $region88: #{tpu_custom_call.1} parent=35 // pred_fallthru
          _
        // Predicated region
        $region89: #{tpu_custom_call.1} parent=35 // pred_check
          %p698 = pneg %p449
        $region90: #{tpu_custom_call.1} parent=35 // pred_check_branch
          %700 = sbr.rel (%p698) target = $region92
        $region91: #{tpu_custom_call.1} parent=35 // pred_region
          %p701 = scmp.lt.s32.totalorder %s28, 1
          %s702 = scalar_select %p701, %s28, 1
          %s703 = scalar_lea.vmem %s16, %s702
        $region92: #{tpu_custom_call.1} parent=35 // pred_fallthru
          _
        // Predicated region
        $region93: #{tpu_custom_call.1} parent=35 // pred_check
          %p704 = pneg %p475
        $region94: #{tpu_custom_call.1} parent=35 // pred_check_branch
          %706 = sbr.rel (%p704) target = $region96
        $region95: #{tpu_custom_call.1} parent=35 // pred_region
          %p707 = scmp.lt.s32.totalorder %s28, 1
          %s708 = scalar_select %p707, %s28, 1
          %s709 = scalar_lea.vmem %s17, %s708
        $region96: #{tpu_custom_call.1} parent=35 // pred_fallthru
          _
        // Predicated region
        $region97: #{tpu_custom_call.1} parent=35 // pred_check
          %p710 = pneg %p501
        $region98: #{tpu_custom_call.1} parent=35 // pred_check_branch
          %712 = sbr.rel (%p710) target = $region100
        $region99: #{tpu_custom_call.1} parent=35 // pred_region
          %p713 = scmp.lt.s32.totalorder %s28, 1
          %s714 = scalar_select %p713, %s28, 1
          %s715 = scalar_lea.vmem %s18, %s714
        $region100: #{tpu_custom_call.1} parent=35 // pred_fallthru
          _
      $region36: #{tpu_custom_call.1} parent=5 // pred_fallthru
        _
      %p716 = scmp.le.s32.totalorder 1, %s28
      %p717 = scmp.lt.s32.totalorder %s28, 3
      %p718 = pnand %p716, %p717
      %p719 = pneg %p718
      // Predicated region
      $region101: #{tpu_custom_call.1} parent=5 // pred_check
        _
      $region102: #{tpu_custom_call.1} parent=5 // pred_check_branch
        %721 = sbr.rel (%p718) target = $region104
      $region103: #{tpu_custom_call.1} parent=5 // pred_region
        %s722 = ssub.s32 %s28, 1
        %p723 = pneg %p49
        %p724 = pneg %p46
        %p725 = pneg %p70
        %p726 = pneg %p67
        %p727 = pneg %p91
        %p728 = pneg %p88
        %p729 = scmp.lt.s32.totalorder %s33, 1
        %s730 = scalar_select %p729, %s33, 1
        %s731 = smul.addr %s730, 4
        %s732 = smul.addr %s731, 4
        %s733 = scalar_lea.vmem %s3, %s732
        %p734 = pneg %p117
        %p735 = pneg %p114
        %p736 = scmp.lt.s32.totalorder %s33, 1
        %s737 = scalar_select %p736, %s33, 1
        %s738 = smul.addr %s737, 4
        %s739 = scalar_lea.vmem %s4, %s738
        %p740 = pneg %p143
        %p741 = pneg %p140
        %p742 = scmp.lt.s32.totalorder %s33, 1
        %s743 = scalar_select %p742, %s33, 1
        %s744 = smul.addr %s743, 4
        %s745 = smul.addr %s744, 4
        %s746 = scalar_lea.vmem %s5, %s745
        %p747 = pneg %p169
        %p748 = pneg %p166
        %p749 = scmp.lt.s32.totalorder %s33, 1
        %s750 = scalar_select %p749, %s33, 1
        %s751 = smul.addr %s750, 4
        %s752 = scalar_lea.vmem %s6, %s751
        %p753 = pneg %p195
        %p754 = pneg %p192
        %p755 = scmp.lt.s32.totalorder %s33, 1
        %s756 = scalar_select %p755, %s33, 1
        %s757 = smul.addr %s756, 4
        %s758 = smul.addr %s757, 4
        %s759 = scalar_lea.vmem %s7, %s758
        %p760 = pneg %p221
        %p761 = pneg %p218
        %p762 = scmp.lt.s32.totalorder %s33, 1
        %s763 = scalar_select %p762, %s33, 1
        %s764 = smul.addr %s763, 4
        %s765 = scalar_lea.vmem %s8, %s764
        %p766 = pneg %p247
        %p767 = pneg %p244
        %p768 = scmp.lt.s32.totalorder %s33, 1
        %s769 = scalar_select %p768, %s33, 1
        %s770 = smul.addr %s769, 16
        %s771 = smul.addr %s770, 4
        %s772 = scalar_lea.vmem %s9, %s771
        %p773 = pneg %p273
        %p774 = pneg %p270
        %p775 = scmp.lt.s32.totalorder %s33, 1
        %s776 = scalar_select %p775, %s33, 1
        %s777 = scalar_lea.vmem %s10, %s776
        %p778 = pneg %p299
        %p779 = pneg %p296
        %p780 = scmp.lt.s32.totalorder %s33, 1
        %s781 = scalar_select %p780, %s33, 1
        %s782 = scalar_lea.vmem %s11, %s781
        %p783 = pneg %p325
        %p784 = pneg %p322
        %p785 = scmp.lt.s32.totalorder %s33, 1
        %s786 = scalar_select %p785, %s33, 1
        %s787 = scalar_lea.vmem %s12, %s786
        %p788 = pneg %p351
        %p789 = pneg %p348
        %p790 = scmp.lt.s32.totalorder %s33, 1
        %s791 = scalar_select %p790, %s33, 1
        %s792 = smul.addr %s791, 256
        %s793 = smul.addr %s792, 4
        %s794 = scalar_lea.vmem %s13, %s793
        %p795 = pneg %p377
        %p796 = pneg %p374
        %p797 = scmp.lt.s32.totalorder %s33, 1
        %s798 = scalar_select %p797, %s33, 1
        %s799 = smul.addr %s798, 16
        %s800 = scalar_lea.vmem %s14, %s799
        %p801 = pneg %p403
        %p802 = pneg %p400
        %p803 = scmp.lt.s32.totalorder %s33, 1
        %s804 = scalar_select %p803, %s33, 1
        %s805 = smul.addr %s804, 64
        %s806 = smul.addr %s805, 4
        %s807 = scalar_lea.vmem %s15, %s806
        %p808 = pneg %p429
        %p809 = pneg %p426
        %p810 = scmp.lt.s32.totalorder %s33, 1
        %s811 = scalar_select %p810, %s33, 1
        %s812 = scalar_lea.vmem %s16, %s811
        %p813 = pneg %p455
        %p814 = pneg %p452
        %p815 = scmp.lt.s32.totalorder %s33, 1
        %s816 = scalar_select %p815, %s33, 1
        %s817 = scalar_lea.vmem %s17, %s816
        %p818 = pneg %p481
        %p819 = pneg %p478
        %p820 = scmp.lt.s32.totalorder %s33, 1
        %s821 = scalar_select %p820, %s33, 1
        %s822 = scalar_lea.vmem %s18, %s821
        %p823 = pneg %p507
        %p824 = pneg %p504
        %p825 = pneg %p528
        %p826 = pneg %p525
        %p827 = pneg %p549
        %p828 = pneg %p546
        %p829 = pneg %p570
        %p830 = pneg %p567
        %p831 = scmp.lt.s32.totalorder %s33, 1
        %s832 = scalar_select %p831, %s33, 1
        %s833 = smul.addr %s832, 4
        %s834 = smul.addr %s833, 4
        %s835 = scalar_lea.vmem %s3, %s834
        %p836 = scmp.lt.s32.totalorder %s33, 1
        %s837 = scalar_select %p836, %s33, 1
        %s838 = smul.addr %s837, 4
        %s839 = scalar_lea.vmem %s4, %s838
        %p840 = scmp.lt.s32.totalorder %s33, 1
        %s841 = scalar_select %p840, %s33, 1
        %s842 = smul.addr %s841, 4
        %s843 = smul.addr %s842, 4
        %s844 = scalar_lea.vmem %s5, %s843
        %p845 = scmp.lt.s32.totalorder %s33, 1
        %s846 = scalar_select %p845, %s33, 1
        %s847 = smul.addr %s846, 4
        %s848 = scalar_lea.vmem %s6, %s847
        %p849 = scmp.lt.s32.totalorder %s33, 1
        %s850 = scalar_select %p849, %s33, 1
        %s851 = smul.addr %s850, 4
        %s852 = smul.addr %s851, 4
        %s853 = scalar_lea.vmem %s7, %s852
        %p854 = scmp.lt.s32.totalorder %s33, 1
        %s855 = scalar_select %p854, %s33, 1
        %s856 = smul.addr %s855, 4
        %s857 = scalar_lea.vmem %s8, %s856
        %p858 = scmp.lt.s32.totalorder %s33, 1
        %s859 = scalar_select %p858, %s33, 1
        %s860 = smul.addr %s859, 16
        %s861 = smul.addr %s860, 4
        %s862 = scalar_lea.vmem %s9, %s861
        %p863 = scmp.lt.s32.totalorder %s33, 1
        %s864 = scalar_select %p863, %s33, 1
        %s865 = scalar_lea.vmem %s10, %s864
        %p866 = scmp.lt.s32.totalorder %s33, 1
        %s867 = scalar_select %p866, %s33, 1
        %s868 = scalar_lea.vmem %s11, %s867
        %p869 = scmp.lt.s32.totalorder %s33, 1
        %s870 = scalar_select %p869, %s33, 1
        %s871 = scalar_lea.vmem %s12, %s870
        %p872 = scmp.lt.s32.totalorder %s33, 1
        %s873 = scalar_select %p872, %s33, 1
        %s874 = smul.addr %s873, 256
        %s875 = smul.addr %s874, 4
        %s876 = scalar_lea.vmem %s13, %s875
        %p877 = scmp.lt.s32.totalorder %s33, 1
        %s878 = scalar_select %p877, %s33, 1
        %s879 = smul.addr %s878, 16
        %s880 = scalar_lea.vmem %s14, %s879
        %p881 = scmp.lt.s32.totalorder %s33, 1
        %s882 = scalar_select %p881, %s33, 1
        %s883 = smul.addr %s882, 64
        %s884 = smul.addr %s883, 4
        %s885 = scalar_lea.vmem %s15, %s884
        %p886 = scmp.lt.s32.totalorder %s33, 1
        %s887 = scalar_select %p886, %s33, 1
        %s888 = scalar_lea.vmem %s16, %s887
        %p889 = scmp.lt.s32.totalorder %s33, 1
        %s890 = scalar_select %p889, %s33, 1
        %s891 = scalar_lea.vmem %s17, %s890
        %p892 = scmp.lt.s32.totalorder %s33, 1
        %s893 = scalar_select %p892, %s33, 1
        %s894 = scalar_lea.vmem %s18, %s893
        %p896 = scmp.eq.s32.totalorder %s33, 0
        // Predicated region
        $region105: #{tpu_custom_call.1} parent=103 // pred_check
          %p897 = pneg %p896
        $region106: #{tpu_custom_call.1} parent=103 // pred_check_branch
          %899 = sbr.rel (%p897) target = $region108
        $region107: #{tpu_custom_call.1} parent=103 // pred_region
          %v900 = vld [vmem:[%s0] sm:$0xff]
          %v901 = vpack.c.bf16 %v900, %v900
          %v902 = vld [vmem:[%s1] sm:$0xf]
          %v903 = vld [vmem:[%s1 + $0x4] sm:$0xf]
          %v904 = vld [vmem:[%s1 + $0x8] sm:$0xf]
          %v905 = vld [vmem:[%s1 + $0xc] sm:$0xf]
          %v906 = vld [vmem:[%s2] sm:$0x1]
          %v908 = vlaneseq
          %v909 = vshrl.u32 %v908, 7
          %v910 = vsub.s32 0, %v909
          %v911 = vrot.slane %v906, %v910
          %v917 = vunpack.c.l.b16 %v902
          %v918 = vunpack.c.l.b16 %v903
          %v919 = vunpack.c.l.b16 %v904
          %v920 = vunpack.c.l.b16 %v905
          %v921 = vpack.c.b16 %v918, %v917
          %v922 = vpack.c.b16 %v920, %v919
          %vm923 = vcmask 48128
          %v925 = vsel %vm923, %v901, 0
          %v928 = vsel %vm923, %v921, 0
          %v931 = vsel %vm923, %v922, 0
          %933 = vmatprep.subr.bf16.mxu0 0
          %934 = vmatpush1.bf16.xpose.msra.mxu0 %v928
          %935 = vmatprep.subr.bf16.mxu0 0
          %936 = vmatpush1.bf16.xpose.msra.mxu0 %v931
          %937 = vmatprep.subr.bf16.mxu0 0
          %938 = vmatpush1.bf16.xpose.msra.mxu0 0
          %939 = vmatprep.subr.bf16.mxu0 0
          %940 = vmatpush1.bf16.xpose.msra.mxu0 0
          %941 = vmatprep.subr.bf16.mxu0 0
          %942 = vmatpush1.bf16.xpose.msra.mxu0 0
          %943 = vmatprep.subr.bf16.mxu0 0
          %944 = vmatpush1.bf16.xpose.msra.mxu0 0
          %945 = vmatprep.subr.bf16.mxu0 0
          %946 = vmatpush1.bf16.xpose.msra.mxu0 0
          %947 = vmatprep.subr.bf16.mxu0 0
          %948 = vmatpush1.bf16.xpose.msra.mxu0 0
          %949 = vmatprep.subr.bf16.mxu0 0
          %950 = vmatpush1.bf16.xpose.msra.mxu0 0
          %951 = vmatprep.subr.bf16.mxu0 0
          %952 = vmatpush1.bf16.xpose.msra.mxu0 0
          %953 = vmatprep.subr.bf16.mxu0 0
          %954 = vmatpush1.bf16.xpose.msra.mxu0 0
          %955 = vmatprep.subr.bf16.mxu0 0
          %956 = vmatpush1.bf16.xpose.msra.mxu0 0
          %957 = vmatprep.subr.bf16.mxu0 0
          %958 = vmatpush1.bf16.xpose.msra.mxu0 0
          %959 = vmatprep.subr.bf16.mxu0 0
          %960 = vmatpush1.bf16.xpose.msra.mxu0 0
          %961 = vmatprep.subr.bf16.mxu0 0
          %962 = vmatpush1.bf16.xpose.msra.mxu0 0
          %963 = vmatprep.subr.bf16.mxu0 0
          %964 = vmatpush1.bf16.xpose.msra.mxu0 0
          %965 = vmatprep.mubr.bf16.mxu0 0
          %966 = vmatmul.mubr.bf16.gmra.mrb[0].mxu0 %v925
          %v967 = vpop.f32.mrb[0].mxu0
          %v968 = vadd.f32 %v911, %v967
          %v969 = vpop.f32.mrb[0].mxu0
          %v970 = vpop.f32.mrb[0].mxu0
          %v971 = vpop.f32.mrb[0].mxu0
          %972 = vdwg.mxu0
          %vm973 = vcmask 261120
          %974 = vst.msk [vmem:[#allocation2] sm:$0xff] %vm973, %v968
        $region108: #{tpu_custom_call.1} parent=103 // pred_fallthru
          _
        %v975 = vld [vmem:[#allocation2] sm:$0xff]
        %v976 = vpack.c.bf16 %v975, %v975
        %v977 = vld [vmem:[%s835] sm:$0xf]
        %v978 = vld [vmem:[%s835 + $0x4] sm:$0xf]
        %v979 = vld [vmem:[%s835 + $0x8] sm:$0xf]
        %v980 = vld [vmem:[%s835 + $0xc] sm:$0xf]
        %v981 = vld [vmem:[%s839] sm:$0x1]
        %v982 = vld [vmem:[%s839 + $0x1] sm:$0x1]
        %v983 = vld [vmem:[%s839 + $0x2] sm:$0x1]
        %v984 = vld [vmem:[%s839 + $0x3] sm:$0x1]
        %v989 = vlaneseq
        %v990 = vshrl.u32 %v989, 7
        %v991 = vsub.s32 0, %v990
        %v992 = vrot.slane %v981, %v991
        %v993 = vlaneseq
        %v994 = vshrl.u32 %v993, 7
        %v995 = vsub.s32 0, %v994
        %v996 = vrot.slane %v982, %v995
        %v997 = vlaneseq
        %v998 = vshrl.u32 %v997, 7
        %v999 = vsub.s32 0, %v998
        %v1000 = vrot.slane %v983, %v999
        %v1001 = vlaneseq
        %v1002 = vshrl.u32 %v1001, 7
        %v1003 = vsub.s32 0, %v1002
        %v1004 = vrot.slane %v984, %v1003
        %vm1009 = vcmask 261120
        %v1011 = vsel %vm1009, %v976, 0
        %v1014 = vsel %vm1009, %v977, 0
        %1016 = vmatprep.subr.bf16.mxu0 0
        %1017 = vmatpush1.bf16.xpose.msra.mxu0 %v1014
        %1018 = vmatprep.subr.bf16.mxu0 0
        %1019 = vmatpush1.bf16.xpose.msra.mxu0 0
        %1020 = vmatprep.subr.bf16.mxu0 0
        %1021 = vmatpush1.bf16.xpose.msra.mxu0 0
        %1022 = vmatprep.subr.bf16.mxu0 0
        %1023 = vmatpush1.bf16.xpose.msra.mxu0 0
        %1024 = vmatprep.subr.bf16.mxu0 0
        %1025 = vmatpush1.bf16.xpose.msra.mxu0 0
        %1026 = vmatprep.subr.bf16.mxu0 0
        %1027 = vmatpush1.bf16.xpose.msra.mxu0 0
        %1028 = vmatprep.subr.bf16.mxu0 0
        %1029 = vmatpush1.bf16.xpose.msra.mxu0 0
        %1030 = vmatprep.subr.bf16.mxu0 0
        %1031 = vmatpush1.bf16.xpose.msra.mxu0 0
        %1032 = vmatprep.subr.bf16.mxu0 0
        %1033 = vmatpush1.bf16.xpose.msra.mxu0 0
        %1034 = vmatprep.subr.bf16.mxu0 0
        %1035 = vmatpush1.bf16.xpose.msra.mxu0 0
        %1036 = vmatprep.subr.bf16.mxu0 0
        %1037 = vmatpush1.bf16.xpose.msra.mxu0 0
        %1038 = vmatprep.subr.bf16.mxu0 0
        %1039 = vmatpush1.bf16.xpose.msra.mxu0 0
        %1040 = vmatprep.subr.bf16.mxu0 0
        %1041 = vmatpush1.bf16.xpose.msra.mxu0 0
        %1042 = vmatprep.subr.bf16.mxu0 0
        %1043 = vmatpush1.bf16.xpose.msra.mxu0 0
        %1044 = vmatprep.subr.bf16.mxu0 0
        %1045 = vmatpush1.bf16.xpose.msra.mxu0 0
        %1046 = vmatprep.subr.bf16.mxu0 0
        %1047 = vmatpush1.bf16.xpose.msra.mxu0 0
        %1048 = vmatprep.mubr.bf16.mxu0 0
        %1049 = vmatmul.mubr.bf16.gmra.mrb[0].mxu0 %v1011
        %v1050 = vpop.f32.mrb[0].mxu0
        %v1051 = vadd.f32 %v992, %v1050
        %v1052 = vpop.f32.mrb[0].mxu0
        %v1053 = vpop.f32.mrb[0].mxu0
        %v1054 = vpop.f32.mrb[0].mxu0
        %1055 = vdwg.mxu0
        %v1057 = vsel %vm1009, %v978, 0
        %1059 = vmatprep.subr.bf16.mxu0 0
        %1060 = vmatpush1.bf16.xpose.msra.mxu0 %v1057
        %1061 = vmatprep.subr.bf16.mxu0 0
        %1062 = vmatpush1.bf16.xpose.msra.mxu0 0
        %1063 = vmatprep.subr.bf16.mxu0 0
        %1064 = vmatpush1.bf16.xpose.msra.mxu0 0
        %1065 = vmatprep.subr.bf16.mxu0 0
        %1066 = vmatpush1.bf16.xpose.msra.mxu0 0
        %1067 = vmatprep.subr.bf16.mxu0 0
        %1068 = vmatpush1.bf16.xpose.msra.mxu0 0
        %1069 = vmatprep.subr.bf16.mxu0 0
        %1070 = vmatpush1.bf16.xpose.msra.mxu0 0
        %1071 = vmatprep.subr.bf16.mxu0 0
        %1072 = vmatpush1.bf16.xpose.msra.mxu0 0
        %1073 = vmatprep.subr.bf16.mxu0 0
        %1074 = vmatpush1.bf16.xpose.msra.mxu0 0
        %1075 = vmatprep.subr.bf16.mxu0 0
        %1076 = vmatpush1.bf16.xpose.msra.mxu0 0
        %1077 = vmatprep.subr.bf16.mxu0 0
        %1078 = vmatpush1.bf16.xpose.msra.mxu0 0
        %1079 = vmatprep.subr.bf16.mxu0 0
        %1080 = vmatpush1.bf16.xpose.msra.mxu0 0
        %1081 = vmatprep.subr.bf16.mxu0 0
        %1082 = vmatpush1.bf16.xpose.msra.mxu0 0
        %1083 = vmatprep.subr.bf16.mxu0 0
        %1084 = vmatpush1.bf16.xpose.msra.mxu0 0
        %1085 = vmatprep.subr.bf16.mxu0 0
        %1086 = vmatpush1.bf16.xpose.msra.mxu0 0
        %1087 = vmatprep.subr.bf16.mxu0 0
        %1088 = vmatpush1.bf16.xpose.msra.mxu0 0
        %1089 = vmatprep.subr.bf16.mxu0 0
        %1090 = vmatpush1.bf16.xpose.msra.mxu0 0
        %1091 = vmatprep.mubr.bf16.mxu0 0
        %1092 = vmatmul.mubr.bf16.gmra.mrb[0].mxu0 %v1011
        %v1093 = vpop.f32.mrb[0].mxu0
        %v1094 = vadd.f32 %v996, %v1093
        %v1095 = vpop.f32.mrb[0].mxu0
        %v1096 = vpop.f32.mrb[0].mxu0
        %v1097 = vpop.f32.mrb[0].mxu0
        %1098 = vdwg.mxu0
        %v1100 = vsel %vm1009, %v979, 0
        %1102 = vmatprep.subr.bf16.mxu0 0
        %1103 = vmatpush1.bf16.xpose.msra.mxu0 %v1100
        %1104 = vmatprep.subr.bf16.mxu0 0
        %1105 = vmatpush1.bf16.xpose.msra.mxu0 0
        %1106 = vmatprep.subr.bf16.mxu0 0
        %1107 = vmatpush1.bf16.xpose.msra.mxu0 0
        %1108 = vmatprep.subr.bf16.mxu0 0
        %1109 = vmatpush1.bf16.xpose.msra.mxu0 0
        %1110 = vmatprep.subr.bf16.mxu0 0
        %1111 = vmatpush1.bf16.xpose.msra.mxu0 0
        %1112 = vmatprep.subr.bf16.mxu0 0
        %1113 = vmatpush1.bf16.xpose.msra.mxu0 0
        %1114 = vmatprep.subr.bf16.mxu0 0
        %1115 = vmatpush1.bf16.xpose.msra.mxu0 0
        %1116 = vmatprep.subr.bf16.mxu0 0
        %1117 = vmatpush1.bf16.xpose.msra.mxu0 0
        %1118 = vmatprep.subr.bf16.mxu0 0
        %1119 = vmatpush1.bf16.xpose.msra.mxu0 0
        %1120 = vmatprep.subr.bf16.mxu0 0
        %1121 = vmatpush1.bf16.xpose.msra.mxu0 0
        %1122 = vmatprep.subr.bf16.mxu0 0
        %1123 = vmatpush1.bf16.xpose.msra.mxu0 0
        %1124 = vmatprep.subr.bf16.mxu0 0
        %1125 = vmatpush1.bf16.xpose.msra.mxu0 0
        %1126 = vmatprep.subr.bf16.mxu0 0
        %1127 = vmatpush1.bf16.xpose.msra.mxu0 0
        %1128 = vmatprep.subr.bf16.mxu0 0
        %1129 = vmatpush1.bf16.xpose.msra.mxu0 0
        %1130 = vmatprep.subr.bf16.mxu0 0
        %1131 = vmatpush1.bf16.xpose.msra.mxu0 0
        %1132 = vmatprep.subr.bf16.mxu0 0
        %1133 = vmatpush1.bf16.xpose.msra.mxu0 0
        %1134 = vmatprep.mubr.bf16.mxu0 0
        %1135 = vmatmul.mubr.bf16.gmra.mrb[0].mxu0 %v1011
        %v1136 = vpop.f32.mrb[0].mxu0
        %v1137 = vadd.f32 %v1000, %v1136
        %v1138 = vpop.f32.mrb[0].mxu0
        %v1139 = vpop.f32.mrb[0].mxu0
        %v1140 = vpop.f32.mrb[0].mxu0
        %1141 = vdwg.mxu0
        %v1143 = vsel %vm1009, %v980, 0
        %1145 = vmatprep.subr.bf16.mxu0 0
        %1146 = vmatpush1.bf16.xpose.msra.mxu0 %v1143
        %1147 = vmatprep.subr.bf16.mxu0 0
        %1148 = vmatpush1.bf16.xpose.msra.mxu0 0
        %1149 = vmatprep.subr.bf16.mxu0 0
        %1150 = vmatpush1.bf16.xpose.msra.mxu0 0
        %1151 = vmatprep.subr.bf16.mxu0 0
        %1152 = vmatpush1.bf16.xpose.msra.mxu0 0
        %1153 = vmatprep.subr.bf16.mxu0 0
        %1154 = vmatpush1.bf16.xpose.msra.mxu0 0
        %1155 = vmatprep.subr.bf16.mxu0 0
        %1156 = vmatpush1.bf16.xpose.msra.mxu0 0
        %1157 = vmatprep.subr.bf16.mxu0 0
        %1158 = vmatpush1.bf16.xpose.msra.mxu0 0
        %1159 = vmatprep.subr.bf16.mxu0 0
        %1160 = vmatpush1.bf16.xpose.msra.mxu0 0
        %1161 = vmatprep.subr.bf16.mxu0 0
        %1162 = vmatpush1.bf16.xpose.msra.mxu0 0
        %1163 = vmatprep.subr.bf16.mxu0 0
        %1164 = vmatpush1.bf16.xpose.msra.mxu0 0
        %1165 = vmatprep.subr.bf16.mxu0 0
        %1166 = vmatpush1.bf16.xpose.msra.mxu0 0
        %1167 = vmatprep.subr.bf16.mxu0 0
        %1168 = vmatpush1.bf16.xpose.msra.mxu0 0
        %1169 = vmatprep.subr.bf16.mxu0 0
        %1170 = vmatpush1.bf16.xpose.msra.mxu0 0
        %1171 = vmatprep.subr.bf16.mxu0 0
        %1172 = vmatpush1.bf16.xpose.msra.mxu0 0
        %1173 = vmatprep.subr.bf16.mxu0 0
        %1174 = vmatpush1.bf16.xpose.msra.mxu0 0
        %1175 = vmatprep.subr.bf16.mxu0 0
        %1176 = vmatpush1.bf16.xpose.msra.mxu0 0
        %1177 = vmatprep.mubr.bf16.mxu0 0
        %1178 = vmatmul.mubr.bf16.gmra.mrb[0].mxu0 %v1011
        %v1179 = vpop.f32.mrb[0].mxu0
        %v1180 = vadd.f32 %v1004, %v1179
        %v1181 = vpop.f32.mrb[0].mxu0
        %v1182 = vpop.f32.mrb[0].mxu0
        %v1183 = vpop.f32.mrb[0].mxu0
        %1184 = vdwg.mxu0
        %v1185 = vld [vmem:[%s844] sm:$0xf]
        %v1186 = vld [vmem:[%s844 + $0x4] sm:$0xf]
        %v1187 = vld [vmem:[%s844 + $0x8] sm:$0xf]
        %v1188 = vld [vmem:[%s844 + $0xc] sm:$0xf]
        %v1189 = vld [vmem:[%s848] sm:$0x1]
        %v1190 = vld [vmem:[%s848 + $0x1] sm:$0x1]
        %v1191 = vld [vmem:[%s848 + $0x2] sm:$0x1]
        %v1192 = vld [vmem:[%s848 + $0x3] sm:$0x1]
        %v1197 = vlaneseq
        %v1198 = vshrl.u32 %v1197, 7
        %v1199 = vsub.s32 0, %v1198
        %v1200 = vrot.slane %v1189, %v1199
        %v1201 = vlaneseq
        %v1202 = vshrl.u32 %v1201, 7
        %v1203 = vsub.s32 0, %v1202
        %v1204 = vrot.slane %v1190, %v1203
        %v1205 = vlaneseq
        %v1206 = vshrl.u32 %v1205, 7
        %v1207 = vsub.s32 0, %v1206
        %v1208 = vrot.slane %v1191, %v1207
        %v1209 = vlaneseq
        %v1210 = vshrl.u32 %v1209, 7
        %v1211 = vsub.s32 0, %v1210
        %v1212 = vrot.slane %v1192, %v1211
        %v1218 = vsel %vm1009, %v1185, 0
        %1220 = vmatprep.subr.bf16.mxu0 0
        %1221 = vmatpush1.bf16.xpose.msra.mxu0 %v1218
        %1222 = vmatprep.subr.bf16.mxu0 0
        %1223 = vmatpush1.bf16.xpose.msra.mxu0 0
        %1224 = vmatprep.subr.bf16.mxu0 0
        %1225 = vmatpush1.bf16.xpose.msra.mxu0 0
        %1226 = vmatprep.subr.bf16.mxu0 0
        %1227 = vmatpush1.bf16.xpose.msra.mxu0 0
        %1228 = vmatprep.subr.bf16.mxu0 0
        %1229 = vmatpush1.bf16.xpose.msra.mxu0 0
        %1230 = vmatprep.subr.bf16.mxu0 0
        %1231 = vmatpush1.bf16.xpose.msra.mxu0 0
        %1232 = vmatprep.subr.bf16.mxu0 0
        %1233 = vmatpush1.bf16.xpose.msra.mxu0 0
        %1234 = vmatprep.subr.bf16.mxu0 0
        %1235 = vmatpush1.bf16.xpose.msra.mxu0 0
        %1236 = vmatprep.subr.bf16.mxu0 0
        %1237 = vmatpush1.bf16.xpose.msra.mxu0 0
        %1238 = vmatprep.subr.bf16.mxu0 0
        %1239 = vmatpush1.bf16.xpose.msra.mxu0 0
        %1240 = vmatprep.subr.bf16.mxu0 0
        %1241 = vmatpush1.bf16.xpose.msra.mxu0 0
        %1242 = vmatprep.subr.bf16.mxu0 0
        %1243 = vmatpush1.bf16.xpose.msra.mxu0 0
        %1244 = vmatprep.subr.bf16.mxu0 0
        %1245 = vmatpush1.bf16.xpose.msra.mxu0 0
        %1246 = vmatprep.subr.bf16.mxu0 0
        %1247 = vmatpush1.bf16.xpose.msra.mxu0 0
        %1248 = vmatprep.subr.bf16.mxu0 0
        %1249 = vmatpush1.bf16.xpose.msra.mxu0 0
        %1250 = vmatprep.subr.bf16.mxu0 0
        %1251 = vmatpush1.bf16.xpose.msra.mxu0 0
        %1252 = vmatprep.mubr.bf16.mxu0 0
        %1253 = vmatmul.mubr.bf16.gmra.mrb[0].mxu0 %v1011
        %v1254 = vpop.f32.mrb[0].mxu0
        %v1255 = vadd.f32 %v1200, %v1254
        %v1256 = vpop.f32.mrb[0].mxu0
        %v1257 = vpop.f32.mrb[0].mxu0
        %v1258 = vpop.f32.mrb[0].mxu0
        %1259 = vdwg.mxu0
        %v1261 = vsel %vm1009, %v1186, 0
        %1263 = vmatprep.subr.bf16.mxu0 0
        %1264 = vmatpush1.bf16.xpose.msra.mxu0 %v1261
        %1265 = vmatprep.subr.bf16.mxu0 0
        %1266 = vmatpush1.bf16.xpose.msra.mxu0 0
        %1267 = vmatprep.subr.bf16.mxu0 0
        %1268 = vmatpush1.bf16.xpose.msra.mxu0 0
        %1269 = vmatprep.subr.bf16.mxu0 0
        %1270 = vmatpush1.bf16.xpose.msra.mxu0 0
        %1271 = vmatprep.subr.bf16.mxu0 0
        %1272 = vmatpush1.bf16.xpose.msra.mxu0 0
        %1273 = vmatprep.subr.bf16.mxu0 0
        %1274 = vmatpush1.bf16.xpose.msra.mxu0 0
        %1275 = vmatprep.subr.bf16.mxu0 0
        %1276 = vmatpush1.bf16.xpose.msra.mxu0 0
        %1277 = vmatprep.subr.bf16.mxu0 0
        %1278 = vmatpush1.bf16.xpose.msra.mxu0 0
        %1279 = vmatprep.subr.bf16.mxu0 0
        %1280 = vmatpush1.bf16.xpose.msra.mxu0 0
        %1281 = vmatprep.subr.bf16.mxu0 0
        %1282 = vmatpush1.bf16.xpose.msra.mxu0 0
        %1283 = vmatprep.subr.bf16.mxu0 0
        %1284 = vmatpush1.bf16.xpose.msra.mxu0 0
        %1285 = vmatprep.subr.bf16.mxu0 0
        %1286 = vmatpush1.bf16.xpose.msra.mxu0 0
        %1287 = vmatprep.subr.bf16.mxu0 0
        %1288 = vmatpush1.bf16.xpose.msra.mxu0 0
        %1289 = vmatprep.subr.bf16.mxu0 0
        %1290 = vmatpush1.bf16.xpose.msra.mxu0 0
        %1291 = vmatprep.subr.bf16.mxu0 0
        %1292 = vmatpush1.bf16.xpose.msra.mxu0 0
        %1293 = vmatprep.subr.bf16.mxu0 0
        %1294 = vmatpush1.bf16.xpose.msra.mxu0 0
        %1295 = vmatprep.mubr.bf16.mxu0 0
        %1296 = vmatmul.mubr.bf16.gmra.mrb[0].mxu0 %v1011
        %v1297 = vpop.f32.mrb[0].mxu0
        %v1298 = vadd.f32 %v1204, %v1297
        %v1299 = vpop.f32.mrb[0].mxu0
        %v1300 = vpop.f32.mrb[0].mxu0
        %v1301 = vpop.f32.mrb[0].mxu0
        %1302 = vdwg.mxu0
        %v1304 = vsel %vm1009, %v1187, 0
        %1306 = vmatprep.subr.bf16.mxu0 0
        %1307 = vmatpush1.bf16.xpose.msra.mxu0 %v1304
        %1308 = vmatprep.subr.bf16.mxu0 0
        %1309 = vmatpush1.bf16.xpose.msra.mxu0 0
        %1310 = vmatprep.subr.bf16.mxu0 0
        %1311 = vmatpush1.bf16.xpose.msra.mxu0 0
        %1312 = vmatprep.subr.bf16.mxu0 0
        %1313 = vmatpush1.bf16.xpose.msra.mxu0 0
        %1314 = vmatprep.subr.bf16.mxu0 0
        %1315 = vmatpush1.bf16.xpose.msra.mxu0 0
        %1316 = vmatprep.subr.bf16.mxu0 0
        %1317 = vmatpush1.bf16.xpose.msra.mxu0 0
        %1318 = vmatprep.subr.bf16.mxu0 0
        %1319 = vmatpush1.bf16.xpose.msra.mxu0 0
        %1320 = vmatprep.subr.bf16.mxu0 0
        %1321 = vmatpush1.bf16.xpose.msra.mxu0 0
        %1322 = vmatprep.subr.bf16.mxu0 0
        %1323 = vmatpush1.bf16.xpose.msra.mxu0 0
        %1324 = vmatprep.subr.bf16.mxu0 0
        %1325 = vmatpush1.bf16.xpose.msra.mxu0 0
        %1326 = vmatprep.subr.bf16.mxu0 0
        %1327 = vmatpush1.bf16.xpose.msra.mxu0 0
        %1328 = vmatprep.subr.bf16.mxu0 0
        %1329 = vmatpush1.bf16.xpose.msra.mxu0 0
        %1330 = vmatprep.subr.bf16.mxu0 0
        %1331 = vmatpush1.bf16.xpose.msra.mxu0 0
        %1332 = vmatprep.subr.bf16.mxu0 0
        %1333 = vmatpush1.bf16.xpose.msra.mxu0 0
        %1334 = vmatprep.subr.bf16.mxu0 0
        %1335 = vmatpush1.bf16.xpose.msra.mxu0 0
        %1336 = vmatprep.subr.bf16.mxu0 0
        %1337 = vmatpush1.bf16.xpose.msra.mxu0 0
        %1338 = vmatprep.mubr.bf16.mxu0 0
        %1339 = vmatmul.mubr.bf16.gmra.mrb[0].mxu0 %v1011
        %v1340 = vpop.f32.mrb[0].mxu0
        %v1341 = vadd.f32 %v1208, %v1340
        %v1342 = vpop.f32.mrb[0].mxu0
        %v1343 = vpop.f32.mrb[0].mxu0
        %v1344 = vpop.f32.mrb[0].mxu0
        %1345 = vdwg.mxu0
        %v1347 = vsel %vm1009, %v1188, 0
        %1349 = vmatprep.subr.bf16.mxu0 0
        %1350 = vmatpush1.bf16.xpose.msra.mxu0 %v1347
        %1351 = vmatprep.subr.bf16.mxu0 0
        %1352 = vmatpush1.bf16.xpose.msra.mxu0 0
        %1353 = vmatprep.subr.bf16.mxu0 0
        %1354 = vmatpush1.bf16.xpose.msra.mxu0 0
        %1355 = vmatprep.subr.bf16.mxu0 0
        %1356 = vmatpush1.bf16.xpose.msra.mxu0 0
        %1357 = vmatprep.subr.bf16.mxu0 0
        %1358 = vmatpush1.bf16.xpose.msra.mxu0 0
        %1359 = vmatprep.subr.bf16.mxu0 0
        %1360 = vmatpush1.bf16.xpose.msra.mxu0 0
        %1361 = vmatprep.subr.bf16.mxu0 0
        %1362 = vmatpush1.bf16.xpose.msra.mxu0 0
        %1363 = vmatprep.subr.bf16.mxu0 0
        %1364 = vmatpush1.bf16.xpose.msra.mxu0 0
        %1365 = vmatprep.subr.bf16.mxu0 0
        %1366 = vmatpush1.bf16.xpose.msra.mxu0 0
        %1367 = vmatprep.subr.bf16.mxu0 0
        %1368 = vmatpush1.bf16.xpose.msra.mxu0 0
        %1369 = vmatprep.subr.bf16.mxu0 0
        %1370 = vmatpush1.bf16.xpose.msra.mxu0 0
        %1371 = vmatprep.subr.bf16.mxu0 0
        %1372 = vmatpush1.bf16.xpose.msra.mxu0 0
        %1373 = vmatprep.subr.bf16.mxu0 0
        %1374 = vmatpush1.bf16.xpose.msra.mxu0 0
        %1375 = vmatprep.subr.bf16.mxu0 0
        %1376 = vmatpush1.bf16.xpose.msra.mxu0 0
        %1377 = vmatprep.subr.bf16.mxu0 0
        %1378 = vmatpush1.bf16.xpose.msra.mxu0 0
        %1379 = vmatprep.subr.bf16.mxu0 0
        %1380 = vmatpush1.bf16.xpose.msra.mxu0 0
        %1381 = vmatprep.mubr.bf16.mxu0 0
        %1382 = vmatmul.mubr.bf16.gmra.mrb[0].mxu0 %v1011
        %v1383 = vpop.f32.mrb[0].mxu0
        %v1384 = vadd.f32 %v1212, %v1383
        %v1385 = vpop.f32.mrb[0].mxu0
        %v1386 = vpop.f32.mrb[0].mxu0
        %v1387 = vpop.f32.mrb[0].mxu0
        %1388 = vdwg.mxu0
        %v1389 = vld [vmem:[%s853] sm:$0xf]
        %v1390 = vld [vmem:[%s853 + $0x4] sm:$0xf]
        %v1391 = vld [vmem:[%s853 + $0x8] sm:$0xf]
        %v1392 = vld [vmem:[%s853 + $0xc] sm:$0xf]
        %v1393 = vld [vmem:[%s857] sm:$0x1]
        %v1394 = vld [vmem:[%s857 + $0x1] sm:$0x1]
        %v1395 = vld [vmem:[%s857 + $0x2] sm:$0x1]
        %v1396 = vld [vmem:[%s857 + $0x3] sm:$0x1]
        %v1401 = vlaneseq
        %v1402 = vshrl.u32 %v1401, 7
        %v1403 = vsub.s32 0, %v1402
        %v1404 = vrot.slane %v1393, %v1403
        %v1405 = vlaneseq
        %v1406 = vshrl.u32 %v1405, 7
        %v1407 = vsub.s32 0, %v1406
        %v1408 = vrot.slane %v1394, %v1407
        %v1409 = vlaneseq
        %v1410 = vshrl.u32 %v1409, 7
        %v1411 = vsub.s32 0, %v1410
        %v1412 = vrot.slane %v1395, %v1411
        %v1413 = vlaneseq
        %v1414 = vshrl.u32 %v1413, 7
        %v1415 = vsub.s32 0, %v1414
        %v1416 = vrot.slane %v1396, %v1415
        %v1422 = vsel %vm1009, %v1389, 0
        %1424 = vmatprep.subr.bf16.mxu0 0
        %1425 = vmatpush1.bf16.xpose.msra.mxu0 %v1422
        %1426 = vmatprep.subr.bf16.mxu0 0
        %1427 = vmatpush1.bf16.xpose.msra.mxu0 0
        %1428 = vmatprep.subr.bf16.mxu0 0
        %1429 = vmatpush1.bf16.xpose.msra.mxu0 0
        %1430 = vmatprep.subr.bf16.mxu0 0
        %1431 = vmatpush1.bf16.xpose.msra.mxu0 0
        %1432 = vmatprep.subr.bf16.mxu0 0
        %1433 = vmatpush1.bf16.xpose.msra.mxu0 0
        %1434 = vmatprep.subr.bf16.mxu0 0
        %1435 = vmatpush1.bf16.xpose.msra.mxu0 0
        %1436 = vmatprep.subr.bf16.mxu0 0
        %1437 = vmatpush1.bf16.xpose.msra.mxu0 0
        %1438 = vmatprep.subr.bf16.mxu0 0
        %1439 = vmatpush1.bf16.xpose.msra.mxu0 0
        %1440 = vmatprep.subr.bf16.mxu0 0
        %1441 = vmatpush1.bf16.xpose.msra.mxu0 0
        %1442 = vmatprep.subr.bf16.mxu0 0
        %1443 = vmatpush1.bf16.xpose.msra.mxu0 0
        %1444 = vmatprep.subr.bf16.mxu0 0
        %1445 = vmatpush1.bf16.xpose.msra.mxu0 0
        %1446 = vmatprep.subr.bf16.mxu0 0
        %1447 = vmatpush1.bf16.xpose.msra.mxu0 0
        %1448 = vmatprep.subr.bf16.mxu0 0
        %1449 = vmatpush1.bf16.xpose.msra.mxu0 0
        %1450 = vmatprep.subr.bf16.mxu0 0
        %1451 = vmatpush1.bf16.xpose.msra.mxu0 0
        %1452 = vmatprep.subr.bf16.mxu0 0
        %1453 = vmatpush1.bf16.xpose.msra.mxu0 0
        %1454 = vmatprep.subr.bf16.mxu0 0
        %1455 = vmatpush1.bf16.xpose.msra.mxu0 0
        %1456 = vmatprep.mubr.bf16.mxu0 0
        %1457 = vmatmul.mubr.bf16.gmra.mrb[0].mxu0 %v1011
        %v1458 = vpop.f32.mrb[0].mxu0
        %v1459 = vadd.f32 %v1404, %v1458
        %v1460 = vpop.f32.mrb[0].mxu0
        %v1461 = vpop.f32.mrb[0].mxu0
        %v1462 = vpop.f32.mrb[0].mxu0
        %1463 = vdwg.mxu0
        %v1465 = vsel %vm1009, %v1390, 0
        %1467 = vmatprep.subr.bf16.mxu0 0
        %1468 = vmatpush1.bf16.xpose.msra.mxu0 %v1465
        %1469 = vmatprep.subr.bf16.mxu0 0
        %1470 = vmatpush1.bf16.xpose.msra.mxu0 0
        %1471 = vmatprep.subr.bf16.mxu0 0
        %1472 = vmatpush1.bf16.xpose.msra.mxu0 0
        %1473 = vmatprep.subr.bf16.mxu0 0
        %1474 = vmatpush1.bf16.xpose.msra.mxu0 0
        %1475 = vmatprep.subr.bf16.mxu0 0
        %1476 = vmatpush1.bf16.xpose.msra.mxu0 0
        %1477 = vmatprep.subr.bf16.mxu0 0
        %1478 = vmatpush1.bf16.xpose.msra.mxu0 0
        %1479 = vmatprep.subr.bf16.mxu0 0
        %1480 = vmatpush1.bf16.xpose.msra.mxu0 0
        %1481 = vmatprep.subr.bf16.mxu0 0
        %1482 = vmatpush1.bf16.xpose.msra.mxu0 0
        %1483 = vmatprep.subr.bf16.mxu0 0
        %1484 = vmatpush1.bf16.xpose.msra.mxu0 0
        %1485 = vmatprep.subr.bf16.mxu0 0
        %1486 = vmatpush1.bf16.xpose.msra.mxu0 0
        %1487 = vmatprep.subr.bf16.mxu0 0
        %1488 = vmatpush1.bf16.xpose.msra.mxu0 0
        %1489 = vmatprep.subr.bf16.mxu0 0
        %1490 = vmatpush1.bf16.xpose.msra.mxu0 0
        %1491 = vmatprep.subr.bf16.mxu0 0
        %1492 = vmatpush1.bf16.xpose.msra.mxu0 0
        %1493 = vmatprep.subr.bf16.mxu0 0
        %1494 = vmatpush1.bf16.xpose.msra.mxu0 0
        %1495 = vmatprep.subr.bf16.mxu0 0
        %1496 = vmatpush1.bf16.xpose.msra.mxu0 0
        %1497 = vmatprep.subr.bf16.mxu0 0
        %1498 = vmatpush1.bf16.xpose.msra.mxu0 0
        %1499 = vmatprep.mubr.bf16.mxu0 0
        %1500 = vmatmul.mubr.bf16.gmra.mrb[0].mxu0 %v1011
        %v1501 = vpop.f32.mrb[0].mxu0
        %v1502 = vadd.f32 %v1408, %v1501
        %v1503 = vpop.f32.mrb[0].mxu0
        %v1504 = vpop.f32.mrb[0].mxu0
        %v1505 = vpop.f32.mrb[0].mxu0
        %1506 = vdwg.mxu0
        %v1508 = vsel %vm1009, %v1391, 0
        %1510 = vmatprep.subr.bf16.mxu0 0
        %1511 = vmatpush1.bf16.xpose.msra.mxu0 %v1508
        %1512 = vmatprep.subr.bf16.mxu0 0
        %1513 = vmatpush1.bf16.xpose.msra.mxu0 0
        %1514 = vmatprep.subr.bf16.mxu0 0
        %1515 = vmatpush1.bf16.xpose.msra.mxu0 0
        %1516 = vmatprep.subr.bf16.mxu0 0
        %1517 = vmatpush1.bf16.xpose.msra.mxu0 0
        %1518 = vmatprep.subr.bf16.mxu0 0
        %1519 = vmatpush1.bf16.xpose.msra.mxu0 0
        %1520 = vmatprep.subr.bf16.mxu0 0
        %1521 = vmatpush1.bf16.xpose.msra.mxu0 0
        %1522 = vmatprep.subr.bf16.mxu0 0
        %1523 = vmatpush1.bf16.xpose.msra.mxu0 0
        %1524 = vmatprep.subr.bf16.mxu0 0
        %1525 = vmatpush1.bf16.xpose.msra.mxu0 0
        %1526 = vmatprep.subr.bf16.mxu0 0
        %1527 = vmatpush1.bf16.xpose.msra.mxu0 0
        %1528 = vmatprep.subr.bf16.mxu0 0
        %1529 = vmatpush1.bf16.xpose.msra.mxu0 0
        %1530 = vmatprep.subr.bf16.mxu0 0
        %1531 = vmatpush1.bf16.xpose.msra.mxu0 0
        %1532 = vmatprep.subr.bf16.mxu0 0
        %1533 = vmatpush1.bf16.xpose.msra.mxu0 0
        %1534 = vmatprep.subr.bf16.mxu0 0
        %1535 = vmatpush1.bf16.xpose.msra.mxu0 0
        %1536 = vmatprep.subr.bf16.mxu0 0
        %1537 = vmatpush1.bf16.xpose.msra.mxu0 0
        %1538 = vmatprep.subr.bf16.mxu0 0
        %1539 = vmatpush1.bf16.xpose.msra.mxu0 0
        %1540 = vmatprep.subr.bf16.mxu0 0
        %1541 = vmatpush1.bf16.xpose.msra.mxu0 0
        %1542 = vmatprep.mubr.bf16.mxu0 0
        %1543 = vmatmul.mubr.bf16.gmra.mrb[0].mxu0 %v1011
        %v1544 = vpop.f32.mrb[0].mxu0
        %v1545 = vadd.f32 %v1412, %v1544
        %v1546 = vpop.f32.mrb[0].mxu0
        %v1547 = vpop.f32.mrb[0].mxu0
        %v1548 = vpop.f32.mrb[0].mxu0
        %1549 = vdwg.mxu0
        %v1551 = vsel %vm1009, %v1392, 0
        %1553 = vmatprep.subr.bf16.mxu0 0
        %1554 = vmatpush1.bf16.xpose.msra.mxu0 %v1551
        %1555 = vmatprep.subr.bf16.mxu0 0
        %1556 = vmatpush1.bf16.xpose.msra.mxu0 0
        %1557 = vmatprep.subr.bf16.mxu0 0
        %1558 = vmatpush1.bf16.xpose.msra.mxu0 0
        %1559 = vmatprep.subr.bf16.mxu0 0
        %1560 = vmatpush1.bf16.xpose.msra.mxu0 0
        %1561 = vmatprep.subr.bf16.mxu0 0
        %1562 = vmatpush1.bf16.xpose.msra.mxu0 0
        %1563 = vmatprep.subr.bf16.mxu0 0
        %1564 = vmatpush1.bf16.xpose.msra.mxu0 0
        %1565 = vmatprep.subr.bf16.mxu0 0
        %1566 = vmatpush1.bf16.xpose.msra.mxu0 0
        %1567 = vmatprep.subr.bf16.mxu0 0
        %1568 = vmatpush1.bf16.xpose.msra.mxu0 0
        %1569 = vmatprep.subr.bf16.mxu0 0
        %1570 = vmatpush1.bf16.xpose.msra.mxu0 0
        %1571 = vmatprep.subr.bf16.mxu0 0
        %1572 = vmatpush1.bf16.xpose.msra.mxu0 0
        %1573 = vmatprep.subr.bf16.mxu0 0
        %1574 = vmatpush1.bf16.xpose.msra.mxu0 0
        %1575 = vmatprep.subr.bf16.mxu0 0
        %1576 = vmatpush1.bf16.xpose.msra.mxu0 0
        %1577 = vmatprep.subr.bf16.mxu0 0
        %1578 = vmatpush1.bf16.xpose.msra.mxu0 0
        %1579 = vmatprep.subr.bf16.mxu0 0
        %1580 = vmatpush1.bf16.xpose.msra.mxu0 0
        %1581 = vmatprep.subr.bf16.mxu0 0
        %1582 = vmatpush1.bf16.xpose.msra.mxu0 0
        %1583 = vmatprep.subr.bf16.mxu0 0
        %1584 = vmatpush1.bf16.xpose.msra.mxu0 0
        %1585 = vmatprep.mubr.bf16.mxu0 0
        %1586 = vmatmul.mubr.bf16.gmra.mrb[0].mxu0 %v1011
        %v1587 = vpop.f32.mrb[0].mxu0
        %v1588 = vadd.f32 %v1416, %v1587
        %v1589 = vpop.f32.mrb[0].mxu0
        %v1590 = vpop.f32.mrb[0].mxu0
        %v1591 = vpop.f32.mrb[0].mxu0
        %1592 = vdwg.mxu0
        %v1593 = vpack.c.bf16 %v1051, %v1051
        %v1594 = vpack.c.bf16 %v1094, %v1094
        %v1595 = vpack.c.bf16 %v1137, %v1137
        %v1596 = vpack.c.bf16 %v1180, %v1180
        %v1597 = vpack.c.bf16 %v1255, %v1255
        %v1598 = vpack.c.bf16 %v1298, %v1298
        %v1599 = vpack.c.bf16 %v1341, %v1341
        %v1600 = vpack.c.bf16 %v1384, %v1384
        %vm1601 = vcmask 64512
        %v1603 = vsel %vm1601, %v1593, 0
        %v1606 = vsel %vm1601, %v1597, 0
        %1608 = vmatprep.subr.bf16.mxu0 0
        %1609 = vmatpush1.bf16.xpose.msra.mxu0 %v1606
        %1610 = vmatprep.subr.bf16.mxu0 0
        %1611 = vmatpush1.bf16.xpose.msra.mxu0 0
        %1612 = vmatprep.subr.bf16.mxu0 0
        %1613 = vmatpush1.bf16.xpose.msra.mxu0 0
        %1614 = vmatprep.subr.bf16.mxu0 0
        %1615 = vmatpush1.bf16.xpose.msra.mxu0 0
        %1616 = vmatprep.subr.bf16.mxu0 0
        %1617 = vmatpush1.bf16.xpose.msra.mxu0 0
        %1618 = vmatprep.subr.bf16.mxu0 0
        %1619 = vmatpush1.bf16.xpose.msra.mxu0 0
        %1620 = vmatprep.subr.bf16.mxu0 0
        %1621 = vmatpush1.bf16.xpose.msra.mxu0 0
        %1622 = vmatprep.subr.bf16.mxu0 0
        %1623 = vmatpush1.bf16.xpose.msra.mxu0 0
        %1624 = vmatprep.subr.bf16.mxu0 0
        %1625 = vmatpush1.bf16.xpose.msra.mxu0 0
        %1626 = vmatprep.subr.bf16.mxu0 0
        %1627 = vmatpush1.bf16.xpose.msra.mxu0 0
        %1628 = vmatprep.subr.bf16.mxu0 0
        %1629 = vmatpush1.bf16.xpose.msra.mxu0 0
        %1630 = vmatprep.subr.bf16.mxu0 0
        %1631 = vmatpush1.bf16.xpose.msra.mxu0 0
        %1632 = vmatprep.subr.bf16.mxu0 0
        %1633 = vmatpush1.bf16.xpose.msra.mxu0 0
        %1634 = vmatprep.subr.bf16.mxu0 0
        %1635 = vmatpush1.bf16.xpose.msra.mxu0 0
        %1636 = vmatprep.subr.bf16.mxu0 0
        %1637 = vmatpush1.bf16.xpose.msra.mxu0 0
        %1638 = vmatprep.subr.bf16.mxu0 0
        %1639 = vmatpush1.bf16.xpose.msra.mxu0 0
        %1640 = vmatprep.mubr.bf16.mxu0 0
        %1641 = vmatmul.mubr.bf16.gmra.mrb[0].mxu0 %v1603
        %v1642 = vpop.f32.mrb[0].mxu0
        %v1643 = vadd.f32 0.0, %v1642
        %v1644 = vpop.f32.mrb[0].mxu0
        %v1645 = vpop.f32.mrb[0].mxu0
        %v1646 = vpop.f32.mrb[0].mxu0
        %1647 = vdwg.mxu0
        %v1649 = vsel %vm1601, %v1594, 0
        %v1652 = vsel %vm1601, %v1598, 0
        %1654 = vmatprep.subr.bf16.mxu0 0
        %1655 = vmatpush1.bf16.xpose.msra.mxu0 %v1652
        %1656 = vmatprep.subr.bf16.mxu0 0
        %1657 = vmatpush1.bf16.xpose.msra.mxu0 0
        %1658 = vmatprep.subr.bf16.mxu0 0
        %1659 = vmatpush1.bf16.xpose.msra.mxu0 0
        %1660 = vmatprep.subr.bf16.mxu0 0
        %1661 = vmatpush1.bf16.xpose.msra.mxu0 0
        %1662 = vmatprep.subr.bf16.mxu0 0
        %1663 = vmatpush1.bf16.xpose.msra.mxu0 0
        %1664 = vmatprep.subr.bf16.mxu0 0
        %1665 = vmatpush1.bf16.xpose.msra.mxu0 0
        %1666 = vmatprep.subr.bf16.mxu0 0
        %1667 = vmatpush1.bf16.xpose.msra.mxu0 0
        %1668 = vmatprep.subr.bf16.mxu0 0
        %1669 = vmatpush1.bf16.xpose.msra.mxu0 0
        %1670 = vmatprep.subr.bf16.mxu0 0
        %1671 = vmatpush1.bf16.xpose.msra.mxu0 0
        %1672 = vmatprep.subr.bf16.mxu0 0
        %1673 = vmatpush1.bf16.xpose.msra.mxu0 0
        %1674 = vmatprep.subr.bf16.mxu0 0
        %1675 = vmatpush1.bf16.xpose.msra.mxu0 0
        %1676 = vmatprep.subr.bf16.mxu0 0
        %1677 = vmatpush1.bf16.xpose.msra.mxu0 0
        %1678 = vmatprep.subr.bf16.mxu0 0
        %1679 = vmatpush1.bf16.xpose.msra.mxu0 0
        %1680 = vmatprep.subr.bf16.mxu0 0
        %1681 = vmatpush1.bf16.xpose.msra.mxu0 0
        %1682 = vmatprep.subr.bf16.mxu0 0
        %1683 = vmatpush1.bf16.xpose.msra.mxu0 0
        %1684 = vmatprep.subr.bf16.mxu0 0
        %1685 = vmatpush1.bf16.xpose.msra.mxu0 0
        %1686 = vmatprep.mubr.bf16.mxu0 0
        %1687 = vmatmul.mubr.bf16.gmra.mrb[0].mxu0 %v1649
        %v1688 = vpop.f32.mrb[0].mxu0
        %v1689 = vadd.f32 0.0, %v1688
        %v1690 = vpop.f32.mrb[0].mxu0
        %v1691 = vpop.f32.mrb[0].mxu0
        %v1692 = vpop.f32.mrb[0].mxu0
        %1693 = vdwg.mxu0
        %v1695 = vsel %vm1601, %v1595, 0
        %v1698 = vsel %vm1601, %v1599, 0
        %1700 = vmatprep.subr.bf16.mxu0 0
        %1701 = vmatpush1.bf16.xpose.msra.mxu0 %v1698
        %1702 = vmatprep.subr.bf16.mxu0 0
        %1703 = vmatpush1.bf16.xpose.msra.mxu0 0
        %1704 = vmatprep.subr.bf16.mxu0 0
        %1705 = vmatpush1.bf16.xpose.msra.mxu0 0
        %1706 = vmatprep.subr.bf16.mxu0 0
        %1707 = vmatpush1.bf16.xpose.msra.mxu0 0
        %1708 = vmatprep.subr.bf16.mxu0 0
        %1709 = vmatpush1.bf16.xpose.msra.mxu0 0
        %1710 = vmatprep.subr.bf16.mxu0 0
        %1711 = vmatpush1.bf16.xpose.msra.mxu0 0
        %1712 = vmatprep.subr.bf16.mxu0 0
        %1713 = vmatpush1.bf16.xpose.msra.mxu0 0
        %1714 = vmatprep.subr.bf16.mxu0 0
        %1715 = vmatpush1.bf16.xpose.msra.mxu0 0
        %1716 = vmatprep.subr.bf16.mxu0 0
        %1717 = vmatpush1.bf16.xpose.msra.mxu0 0
        %1718 = vmatprep.subr.bf16.mxu0 0
        %1719 = vmatpush1.bf16.xpose.msra.mxu0 0
        %1720 = vmatprep.subr.bf16.mxu0 0
        %1721 = vmatpush1.bf16.xpose.msra.mxu0 0
        %1722 = vmatprep.subr.bf16.mxu0 0
        %1723 = vmatpush1.bf16.xpose.msra.mxu0 0
        %1724 = vmatprep.subr.bf16.mxu0 0
        %1725 = vmatpush1.bf16.xpose.msra.mxu0 0
        %1726 = vmatprep.subr.bf16.mxu0 0
        %1727 = vmatpush1.bf16.xpose.msra.mxu0 0
        %1728 = vmatprep.subr.bf16.mxu0 0
        %1729 = vmatpush1.bf16.xpose.msra.mxu0 0
        %1730 = vmatprep.subr.bf16.mxu0 0
        %1731 = vmatpush1.bf16.xpose.msra.mxu0 0
        %1732 = vmatprep.mubr.bf16.mxu0 0
        %1733 = vmatmul.mubr.bf16.gmra.mrb[0].mxu0 %v1695
        %v1734 = vpop.f32.mrb[0].mxu0
        %v1735 = vadd.f32 0.0, %v1734
        %v1736 = vpop.f32.mrb[0].mxu0
        %v1737 = vpop.f32.mrb[0].mxu0
        %v1738 = vpop.f32.mrb[0].mxu0
        %1739 = vdwg.mxu0
        %v1741 = vsel %vm1601, %v1596, 0
        %v1744 = vsel %vm1601, %v1600, 0
        %1746 = vmatprep.subr.bf16.mxu0 0
        %1747 = vmatpush1.bf16.xpose.msra.mxu0 %v1744
        %1748 = vmatprep.subr.bf16.mxu0 0
        %1749 = vmatpush1.bf16.xpose.msra.mxu0 0
        %1750 = vmatprep.subr.bf16.mxu0 0
        %1751 = vmatpush1.bf16.xpose.msra.mxu0 0
        %1752 = vmatprep.subr.bf16.mxu0 0
        %1753 = vmatpush1.bf16.xpose.msra.mxu0 0
        %1754 = vmatprep.subr.bf16.mxu0 0
        %1755 = vmatpush1.bf16.xpose.msra.mxu0 0
        %1756 = vmatprep.subr.bf16.mxu0 0
        %1757 = vmatpush1.bf16.xpose.msra.mxu0 0
        %1758 = vmatprep.subr.bf16.mxu0 0
        %1759 = vmatpush1.bf16.xpose.msra.mxu0 0
        %1760 = vmatprep.subr.bf16.mxu0 0
        %1761 = vmatpush1.bf16.xpose.msra.mxu0 0
        %1762 = vmatprep.subr.bf16.mxu0 0
        %1763 = vmatpush1.bf16.xpose.msra.mxu0 0
        %1764 = vmatprep.subr.bf16.mxu0 0
        %1765 = vmatpush1.bf16.xpose.msra.mxu0 0
        %1766 = vmatprep.subr.bf16.mxu0 0
        %1767 = vmatpush1.bf16.xpose.msra.mxu0 0
        %1768 = vmatprep.subr.bf16.mxu0 0
        %1769 = vmatpush1.bf16.xpose.msra.mxu0 0
        %1770 = vmatprep.subr.bf16.mxu0 0
        %1771 = vmatpush1.bf16.xpose.msra.mxu0 0
        %1772 = vmatprep.subr.bf16.mxu0 0
        %1773 = vmatpush1.bf16.xpose.msra.mxu0 0
        %1774 = vmatprep.subr.bf16.mxu0 0
        %1775 = vmatpush1.bf16.xpose.msra.mxu0 0
        %1776 = vmatprep.subr.bf16.mxu0 0
        %1777 = vmatpush1.bf16.xpose.msra.mxu0 0
        %1778 = vmatprep.mubr.bf16.mxu0 0
        %1779 = vmatmul.mubr.bf16.gmra.mrb[0].mxu0 %v1741
        %v1780 = vpop.f32.mrb[0].mxu0
        %v1781 = vadd.f32 0.0, %v1780
        %v1782 = vpop.f32.mrb[0].mxu0
        %v1783 = vpop.f32.mrb[0].mxu0
        %v1784 = vpop.f32.mrb[0].mxu0
        %1785 = vdwg.mxu0
        %v1786 = vmul.f32 %v1643, 0.35355338
        %v1787 = vmul.f32 %v1689, 0.35355338
        %v1788 = vmul.f32 %v1735, 0.35355338
        %v1789 = vmul.f32 %v1781, 0.35355338
        %v1790 = vsel %vm1601, %v1786, -inf
        %1791 = vmax.xlane.f32.xlu0 %v1790
        %v1792 = vpop.xlane.xlu0 %1791
        %v1793 = vsel %vm1601, %v1787, -inf
        %1794 = vmax.xlane.f32.xlu0 %v1793
        %v1795 = vpop.xlane.xlu0 %1794
        %v1796 = vsel %vm1601, %v1788, -inf
        %1797 = vmax.xlane.f32.xlu0 %v1796
        %v1798 = vpop.xlane.xlu0 %1797
        %v1799 = vsel %vm1601, %v1789, -inf
        %1800 = vmax.xlane.f32.xlu0 %v1799
        %v1801 = vpop.xlane.xlu0 %1800
        %v1802 = vsub.f32 %v1786, %v1792
        %v1803 = vsub.f32 %v1787, %v1795
        %v1804 = vsub.f32 %v1788, %v1798
        %v1805 = vsub.f32 %v1789, %v1801
        %v1806 = vmul.f32 %v1802, 1.442695
        %v1807 = vpow.pop %v1806
        %v1808 = vmul.f32 %v1803, 1.442695
        %v1809 = vpow.pop %v1808
        %v1810 = vmul.f32 %v1804, 1.442695
        %v1811 = vpow.pop %v1810
        %v1812 = vmul.f32 %v1805, 1.442695
        %v1813 = vpow.pop %v1812
        %v1814 = vsel %vm1601, %v1807, 0.0
        %1815 = vadd.xlane.f32.xlu0 %v1814
        %v1816 = vpop.xlane.xlu0 %1815
        %v1817 = vsel %vm1601, %v1809, 0.0
        %1818 = vadd.xlane.f32.xlu0 %v1817
        %v1819 = vpop.xlane.xlu0 %1818
        %v1820 = vsel %vm1601, %v1811, 0.0
        %1821 = vadd.xlane.f32.xlu0 %v1820
        %v1822 = vpop.xlane.xlu0 %1821
        %v1823 = vsel %vm1601, %v1813, 0.0
        %1824 = vadd.xlane.f32.xlu0 %v1823
        %v1825 = vpop.xlane.xlu0 %1824
        %v1826 = vrcp.pop %v1816
        %v1827 = vrcp.pop %v1819
        %v1828 = vrcp.pop %v1822
        %v1829 = vrcp.pop %v1825
        %v1830 = vmul.f32 %v1807, %v1826
        %v1831 = vmul.f32 %v1809, %v1827
        %v1832 = vmul.f32 %v1811, %v1828
        %v1833 = vmul.f32 %v1813, %v1829
        %v1834 = vpack.c.bf16 %v1830, %v1830
        %v1835 = vpack.c.bf16 %v1831, %v1831
        %v1836 = vpack.c.bf16 %v1832, %v1832
        %v1837 = vpack.c.bf16 %v1833, %v1833
        %v1838 = vpack.c.bf16 %v1459, %v1459
        %v1839 = vpack.c.bf16 %v1502, %v1502
        %v1840 = vpack.c.bf16 %v1545, %v1545
        %v1841 = vpack.c.bf16 %v1588, %v1588
        %v1843 = vsel %vm1601, %v1834, 0
        %vm1845 = vcmask 1043456
        %v1847 = vsel %vm1845, %v1838, 0
        %1849 = vmatprep.subr.bf16.mxu0 0
        %1850 = vmatpush1.bf16.msra.mxu0 %v1847
        %1851 = vmatprep.subr.bf16.mxu0 0
        %1852 = vmatpush1.bf16.msra.mxu0 0
        %1853 = vmatprep.subr.bf16.mxu0 0
        %1854 = vmatpush1.bf16.msra.mxu0 0
        %1855 = vmatprep.subr.bf16.mxu0 0
        %1856 = vmatpush1.bf16.msra.mxu0 0
        %1857 = vmatprep.subr.bf16.mxu0 0
        %1858 = vmatpush1.bf16.msra.mxu0 0
        %1859 = vmatprep.subr.bf16.mxu0 0
        %1860 = vmatpush1.bf16.msra.mxu0 0
        %1861 = vmatprep.subr.bf16.mxu0 0
        %1862 = vmatpush1.bf16.msra.mxu0 0
        %1863 = vmatprep.subr.bf16.mxu0 0
        %1864 = vmatpush1.bf16.msra.mxu0 0
        %1865 = vmatprep.subr.bf16.mxu0 0
        %1866 = vmatpush1.bf16.msra.mxu0 0
        %1867 = vmatprep.subr.bf16.mxu0 0
        %1868 = vmatpush1.bf16.msra.mxu0 0
        %1869 = vmatprep.subr.bf16.mxu0 0
        %1870 = vmatpush1.bf16.msra.mxu0 0
        %1871 = vmatprep.subr.bf16.mxu0 0
        %1872 = vmatpush1.bf16.msra.mxu0 0
        %1873 = vmatprep.subr.bf16.mxu0 0
        %1874 = vmatpush1.bf16.msra.mxu0 0
        %1875 = vmatprep.subr.bf16.mxu0 0
        %1876 = vmatpush1.bf16.msra.mxu0 0
        %1877 = vmatprep.subr.bf16.mxu0 0
        %1878 = vmatpush1.bf16.msra.mxu0 0
        %1879 = vmatprep.subr.bf16.mxu0 0
        %1880 = vmatpush1.bf16.msra.mxu0 0
        %1881 = vmatprep.mubr.bf16.mxu0 0
        %1882 = vmatmul.mubr.bf16.gmra.mrb[0].mxu0 %v1843
        %v1883 = vpop.f32.mrb[0].mxu0
        %v1884 = vadd.f32 0.0, %v1883
        %v1885 = vpop.f32.mrb[0].mxu0
        %v1886 = vpop.f32.mrb[0].mxu0
        %v1887 = vpop.f32.mrb[0].mxu0
        %1888 = vdwg.mxu0
        %v1890 = vsel %vm1601, %v1835, 0
        %v1893 = vsel %vm1845, %v1839, 0
        %1895 = vmatprep.subr.bf16.mxu0 0
        %1896 = vmatpush1.bf16.msra.mxu0 %v1893
        %1897 = vmatprep.subr.bf16.mxu0 0
        %1898 = vmatpush1.bf16.msra.mxu0 0
        %1899 = vmatprep.subr.bf16.mxu0 0
        %1900 = vmatpush1.bf16.msra.mxu0 0
        %1901 = vmatprep.subr.bf16.mxu0 0
        %1902 = vmatpush1.bf16.msra.mxu0 0
        %1903 = vmatprep.subr.bf16.mxu0 0
        %1904 = vmatpush1.bf16.msra.mxu0 0
        %1905 = vmatprep.subr.bf16.mxu0 0
        %1906 = vmatpush1.bf16.msra.mxu0 0
        %1907 = vmatprep.subr.bf16.mxu0 0
        %1908 = vmatpush1.bf16.msra.mxu0 0
        %1909 = vmatprep.subr.bf16.mxu0 0
        %1910 = vmatpush1.bf16.msra.mxu0 0
        %1911 = vmatprep.subr.bf16.mxu0 0
        %1912 = vmatpush1.bf16.msra.mxu0 0
        %1913 = vmatprep.subr.bf16.mxu0 0
        %1914 = vmatpush1.bf16.msra.mxu0 0
        %1915 = vmatprep.subr.bf16.mxu0 0
        %1916 = vmatpush1.bf16.msra.mxu0 0
        %1917 = vmatprep.subr.bf16.mxu0 0
        %1918 = vmatpush1.bf16.msra.mxu0 0
        %1919 = vmatprep.subr.bf16.mxu0 0
        %1920 = vmatpush1.bf16.msra.mxu0 0
        %1921 = vmatprep.subr.bf16.mxu0 0
        %1922 = vmatpush1.bf16.msra.mxu0 0
        %1923 = vmatprep.subr.bf16.mxu0 0
        %1924 = vmatpush1.bf16.msra.mxu0 0
        %1925 = vmatprep.subr.bf16.mxu0 0
        %1926 = vmatpush1.bf16.msra.mxu0 0
        %1927 = vmatprep.mubr.bf16.mxu0 0
        %1928 = vmatmul.mubr.bf16.gmra.mrb[0].mxu0 %v1890
        %v1929 = vpop.f32.mrb[0].mxu0
        %v1930 = vadd.f32 0.0, %v1929
        %v1931 = vpop.f32.mrb[0].mxu0
        %v1932 = vpop.f32.mrb[0].mxu0
        %v1933 = vpop.f32.mrb[0].mxu0
        %1934 = vdwg.mxu0
        %v1936 = vsel %vm1601, %v1836, 0
        %v1939 = vsel %vm1845, %v1840, 0
        %1941 = vmatprep.subr.bf16.mxu0 0
        %1942 = vmatpush1.bf16.msra.mxu0 %v1939
        %1943 = vmatprep.subr.bf16.mxu0 0
        %1944 = vmatpush1.bf16.msra.mxu0 0
        %1945 = vmatprep.subr.bf16.mxu0 0
        %1946 = vmatpush1.bf16.msra.mxu0 0
        %1947 = vmatprep.subr.bf16.mxu0 0
        %1948 = vmatpush1.bf16.msra.mxu0 0
        %1949 = vmatprep.subr.bf16.mxu0 0
        %1950 = vmatpush1.bf16.msra.mxu0 0
        %1951 = vmatprep.subr.bf16.mxu0 0
        %1952 = vmatpush1.bf16.msra.mxu0 0
        %1953 = vmatprep.subr.bf16.mxu0 0
        %1954 = vmatpush1.bf16.msra.mxu0 0
        %1955 = vmatprep.subr.bf16.mxu0 0
        %1956 = vmatpush1.bf16.msra.mxu0 0
        %1957 = vmatprep.subr.bf16.mxu0 0
        %1958 = vmatpush1.bf16.msra.mxu0 0
        %1959 = vmatprep.subr.bf16.mxu0 0
        %1960 = vmatpush1.bf16.msra.mxu0 0
        %1961 = vmatprep.subr.bf16.mxu0 0
        %1962 = vmatpush1.bf16.msra.mxu0 0
        %1963 = vmatprep.subr.bf16.mxu0 0
        %1964 = vmatpush1.bf16.msra.mxu0 0
        %1965 = vmatprep.subr.bf16.mxu0 0
        %1966 = vmatpush1.bf16.msra.mxu0 0
        %1967 = vmatprep.subr.bf16.mxu0 0
        %1968 = vmatpush1.bf16.msra.mxu0 0
        %1969 = vmatprep.subr.bf16.mxu0 0
        %1970 = vmatpush1.bf16.msra.mxu0 0
        %1971 = vmatprep.subr.bf16.mxu0 0
        %1972 = vmatpush1.bf16.msra.mxu0 0
        %1973 = vmatprep.mubr.bf16.mxu0 0
        %1974 = vmatmul.mubr.bf16.gmra.mrb[0].mxu0 %v1936
        %v1975 = vpop.f32.mrb[0].mxu0
        %v1976 = vadd.f32 0.0, %v1975
        %v1977 = vpop.f32.mrb[0].mxu0
        %v1978 = vpop.f32.mrb[0].mxu0
        %v1979 = vpop.f32.mrb[0].mxu0
        %1980 = vdwg.mxu0
        %v1982 = vsel %vm1601, %v1837, 0
        %v1985 = vsel %vm1845, %v1841, 0
        %1987 = vmatprep.subr.bf16.mxu0 0
        %1988 = vmatpush1.bf16.msra.mxu0 %v1985
        %1989 = vmatprep.subr.bf16.mxu0 0
        %1990 = vmatpush1.bf16.msra.mxu0 0
        %1991 = vmatprep.subr.bf16.mxu0 0
        %1992 = vmatpush1.bf16.msra.mxu0 0
        %1993 = vmatprep.subr.bf16.mxu0 0
        %1994 = vmatpush1.bf16.msra.mxu0 0
        %1995 = vmatprep.subr.bf16.mxu0 0
        %1996 = vmatpush1.bf16.msra.mxu0 0
        %1997 = vmatprep.subr.bf16.mxu0 0
        %1998 = vmatpush1.bf16.msra.mxu0 0
        %1999 = vmatprep.subr.bf16.mxu0 0
        %2000 = vmatpush1.bf16.msra.mxu0 0
        %2001 = vmatprep.subr.bf16.mxu0 0
        %2002 = vmatpush1.bf16.msra.mxu0 0
        %2003 = vmatprep.subr.bf16.mxu0 0
        %2004 = vmatpush1.bf16.msra.mxu0 0
        %2005 = vmatprep.subr.bf16.mxu0 0
        %2006 = vmatpush1.bf16.msra.mxu0 0
        %2007 = vmatprep.subr.bf16.mxu0 0
        %2008 = vmatpush1.bf16.msra.mxu0 0
        %2009 = vmatprep.subr.bf16.mxu0 0
        %2010 = vmatpush1.bf16.msra.mxu0 0
        %2011 = vmatprep.subr.bf16.mxu0 0
        %2012 = vmatpush1.bf16.msra.mxu0 0
        %2013 = vmatprep.subr.bf16.mxu0 0
        %2014 = vmatpush1.bf16.msra.mxu0 0
        %2015 = vmatprep.subr.bf16.mxu0 0
        %2016 = vmatpush1.bf16.msra.mxu0 0
        %2017 = vmatprep.subr.bf16.mxu0 0
        %2018 = vmatpush1.bf16.msra.mxu0 0
        %2019 = vmatprep.mubr.bf16.mxu0 0
        %2020 = vmatmul.mubr.bf16.gmra.mrb[0].mxu0 %v1982
        %v2021 = vpop.f32.mrb[0].mxu0
        %v2022 = vadd.f32 0.0, %v2021
        %v2023 = vpop.f32.mrb[0].mxu0
        %v2024 = vpop.f32.mrb[0].mxu0
        %v2025 = vpop.f32.mrb[0].mxu0
        %2026 = vdwg.mxu0
        %v2027 = vpack.c.bf16 %v1884, %v1884
        %v2028 = vpack.c.bf16 %v1930, %v1930
        %v2029 = vpack.c.bf16 %v1976, %v1976
        %v2030 = vpack.c.bf16 %v2022, %v2022
        %v2031 = vld [vmem:[%s862] sm:$0xf]
        %v2032 = vld [vmem:[%s862 + $0x4] sm:$0xf]
        %v2033 = vld [vmem:[%s862 + $0x8] sm:$0xf]
        %v2034 = vld [vmem:[%s862 + $0xc] sm:$0xf]
        %v2035 = vld [vmem:[%s862 + $0x10] sm:$0xf]
        %v2036 = vld [vmem:[%s862 + $0x14] sm:$0xf]
        %v2037 = vld [vmem:[%s862 + $0x18] sm:$0xf]
        %v2038 = vld [vmem:[%s862 + $0x1c] sm:$0xf]
        %v2039 = vld [vmem:[%s862 + $0x20] sm:$0xf]
        %v2040 = vld [vmem:[%s862 + $0x24] sm:$0xf]
        %v2041 = vld [vmem:[%s862 + $0x28] sm:$0xf]
        %v2042 = vld [vmem:[%s862 + $0x2c] sm:$0xf]
        %v2043 = vld [vmem:[%s862 + $0x30] sm:$0xf]
        %v2044 = vld [vmem:[%s862 + $0x34] sm:$0xf]
        %v2045 = vld [vmem:[%s862 + $0x38] sm:$0xf]
        %v2046 = vld [vmem:[%s862 + $0x3c] sm:$0xf]
        %v2051 = vunpack.c.l.b16 %v2031
        %v2052 = vunpack.c.l.b16 %v2032
        %v2053 = vunpack.c.l.b16 %v2033
        %v2054 = vunpack.c.l.b16 %v2034
        %v2055 = vpack.c.b16 %v2052, %v2051
        %v2056 = vpack.c.b16 %v2054, %v2053
        %v2058 = vsel %vm1601, %v2027, 0
        %v2061 = vsel %vm1601, %v2055, 0
        %v2064 = vsel %vm1601, %v2056, 0
        %2066 = vmatprep.subr.bf16.mxu0 0
        %2067 = vmatpush1.bf16.xpose.msra.mxu0 %v2061
        %2068 = vmatprep.subr.bf16.mxu0 0
        %2069 = vmatpush1.bf16.xpose.msra.mxu0 %v2064
        %2070 = vmatprep.subr.bf16.mxu0 0
        %2071 = vmatpush1.bf16.xpose.msra.mxu0 0
        %2072 = vmatprep.subr.bf16.mxu0 0
        %2073 = vmatpush1.bf16.xpose.msra.mxu0 0
        %2074 = vmatprep.subr.bf16.mxu0 0
        %2075 = vmatpush1.bf16.xpose.msra.mxu0 0
        %2076 = vmatprep.subr.bf16.mxu0 0
        %2077 = vmatpush1.bf16.xpose.msra.mxu0 0
        %2078 = vmatprep.subr.bf16.mxu0 0
        %2079 = vmatpush1.bf16.xpose.msra.mxu0 0
        %2080 = vmatprep.subr.bf16.mxu0 0
        %2081 = vmatpush1.bf16.xpose.msra.mxu0 0
        %2082 = vmatprep.subr.bf16.mxu0 0
        %2083 = vmatpush1.bf16.xpose.msra.mxu0 0
        %2084 = vmatprep.subr.bf16.mxu0 0
        %2085 = vmatpush1.bf16.xpose.msra.mxu0 0
        %2086 = vmatprep.subr.bf16.mxu0 0
        %2087 = vmatpush1.bf16.xpose.msra.mxu0 0
        %2088 = vmatprep.subr.bf16.mxu0 0
        %2089 = vmatpush1.bf16.xpose.msra.mxu0 0
        %2090 = vmatprep.subr.bf16.mxu0 0
        %2091 = vmatpush1.bf16.xpose.msra.mxu0 0
        %2092 = vmatprep.subr.bf16.mxu0 0
        %2093 = vmatpush1.bf16.xpose.msra.mxu0 0
        %2094 = vmatprep.subr.bf16.mxu0 0
        %2095 = vmatpush1.bf16.xpose.msra.mxu0 0
        %2096 = vmatprep.subr.bf16.mxu0 0
        %2097 = vmatpush1.bf16.xpose.msra.mxu0 0
        %2098 = vmatprep.mubr.bf16.mxu0 0
        %2099 = vmatmul.mubr.bf16.gmra.mrb[0].mxu0 %v2058
        %v2100 = vpop.f32.mrb[0].mxu0
        %v2101 = vadd.f32 0.0, %v2100
        %v2102 = vpop.f32.mrb[0].mxu0
        %v2103 = vpop.f32.mrb[0].mxu0
        %v2104 = vpop.f32.mrb[0].mxu0
        %2105 = vdwg.mxu0
        %v2110 = vunpack.c.l.b16 %v2035
        %v2111 = vunpack.c.l.b16 %v2036
        %v2112 = vunpack.c.l.b16 %v2037
        %v2113 = vunpack.c.l.b16 %v2038
        %v2114 = vpack.c.b16 %v2111, %v2110
        %v2115 = vpack.c.b16 %v2113, %v2112
        %v2117 = vsel %vm1601, %v2028, 0
        %v2120 = vsel %vm1601, %v2114, 0
        %v2123 = vsel %vm1601, %v2115, 0
        %2125 = vmatprep.subr.bf16.mxu0 0
        %2126 = vmatpush1.bf16.xpose.msra.mxu0 %v2120
        %2127 = vmatprep.subr.bf16.mxu0 0
        %2128 = vmatpush1.bf16.xpose.msra.mxu0 %v2123
        %2129 = vmatprep.subr.bf16.mxu0 0
        %2130 = vmatpush1.bf16.xpose.msra.mxu0 0
        %2131 = vmatprep.subr.bf16.mxu0 0
        %2132 = vmatpush1.bf16.xpose.msra.mxu0 0
        %2133 = vmatprep.subr.bf16.mxu0 0
        %2134 = vmatpush1.bf16.xpose.msra.mxu0 0
        %2135 = vmatprep.subr.bf16.mxu0 0
        %2136 = vmatpush1.bf16.xpose.msra.mxu0 0
        %2137 = vmatprep.subr.bf16.mxu0 0
        %2138 = vmatpush1.bf16.xpose.msra.mxu0 0
        %2139 = vmatprep.subr.bf16.mxu0 0
        %2140 = vmatpush1.bf16.xpose.msra.mxu0 0
        %2141 = vmatprep.subr.bf16.mxu0 0
        %2142 = vmatpush1.bf16.xpose.msra.mxu0 0
        %2143 = vmatprep.subr.bf16.mxu0 0
        %2144 = vmatpush1.bf16.xpose.msra.mxu0 0
        %2145 = vmatprep.subr.bf16.mxu0 0
        %2146 = vmatpush1.bf16.xpose.msra.mxu0 0
        %2147 = vmatprep.subr.bf16.mxu0 0
        %2148 = vmatpush1.bf16.xpose.msra.mxu0 0
        %2149 = vmatprep.subr.bf16.mxu0 0
        %2150 = vmatpush1.bf16.xpose.msra.mxu0 0
        %2151 = vmatprep.subr.bf16.mxu0 0
        %2152 = vmatpush1.bf16.xpose.msra.mxu0 0
        %2153 = vmatprep.subr.bf16.mxu0 0
        %2154 = vmatpush1.bf16.xpose.msra.mxu0 0
        %2155 = vmatprep.subr.bf16.mxu0 0
        %2156 = vmatpush1.bf16.xpose.msra.mxu0 0
        %2157 = vmatprep.mubr.bf16.mxu0 0
        %2158 = vmatmul.mubr.bf16.gmra.mrb[0].mxu0 %v2117
        %v2159 = vpop.f32.mrb[0].mxu0
        %v2160 = vadd.f32 0.0, %v2159
        %v2161 = vpop.f32.mrb[0].mxu0
        %v2162 = vpop.f32.mrb[0].mxu0
        %v2163 = vpop.f32.mrb[0].mxu0
        %2164 = vdwg.mxu0
        %v2169 = vunpack.c.l.b16 %v2039
        %v2170 = vunpack.c.l.b16 %v2040
        %v2171 = vunpack.c.l.b16 %v2041
        %v2172 = vunpack.c.l.b16 %v2042
        %v2173 = vpack.c.b16 %v2170, %v2169
        %v2174 = vpack.c.b16 %v2172, %v2171
        %v2176 = vsel %vm1601, %v2029, 0
        %v2179 = vsel %vm1601, %v2173, 0
        %v2182 = vsel %vm1601, %v2174, 0
        %2184 = vmatprep.subr.bf16.mxu0 0
        %2185 = vmatpush1.bf16.xpose.msra.mxu0 %v2179
        %2186 = vmatprep.subr.bf16.mxu0 0
        %2187 = vmatpush1.bf16.xpose.msra.mxu0 %v2182
        %2188 = vmatprep.subr.bf16.mxu0 0
        %2189 = vmatpush1.bf16.xpose.msra.mxu0 0
        %2190 = vmatprep.subr.bf16.mxu0 0
        %2191 = vmatpush1.bf16.xpose.msra.mxu0 0
        %2192 = vmatprep.subr.bf16.mxu0 0
        %2193 = vmatpush1.bf16.xpose.msra.mxu0 0
        %2194 = vmatprep.subr.bf16.mxu0 0
        %2195 = vmatpush1.bf16.xpose.msra.mxu0 0
        %2196 = vmatprep.subr.bf16.mxu0 0
        %2197 = vmatpush1.bf16.xpose.msra.mxu0 0
        %2198 = vmatprep.subr.bf16.mxu0 0
        %2199 = vmatpush1.bf16.xpose.msra.mxu0 0
        %2200 = vmatprep.subr.bf16.mxu0 0
        %2201 = vmatpush1.bf16.xpose.msra.mxu0 0
        %2202 = vmatprep.subr.bf16.mxu0 0
        %2203 = vmatpush1.bf16.xpose.msra.mxu0 0
        %2204 = vmatprep.subr.bf16.mxu0 0
        %2205 = vmatpush1.bf16.xpose.msra.mxu0 0
        %2206 = vmatprep.subr.bf16.mxu0 0
        %2207 = vmatpush1.bf16.xpose.msra.mxu0 0
        %2208 = vmatprep.subr.bf16.mxu0 0
        %2209 = vmatpush1.bf16.xpose.msra.mxu0 0
        %2210 = vmatprep.subr.bf16.mxu0 0
        %2211 = vmatpush1.bf16.xpose.msra.mxu0 0
        %2212 = vmatprep.subr.bf16.mxu0 0
        %2213 = vmatpush1.bf16.xpose.msra.mxu0 0
        %2214 = vmatprep.subr.bf16.mxu0 0
        %2215 = vmatpush1.bf16.xpose.msra.mxu0 0
        %2216 = vmatprep.mubr.bf16.mxu0 0
        %2217 = vmatmul.mubr.bf16.gmra.mrb[0].mxu0 %v2176
        %v2218 = vpop.f32.mrb[0].mxu0
        %v2219 = vadd.f32 0.0, %v2218
        %v2220 = vpop.f32.mrb[0].mxu0
        %v2221 = vpop.f32.mrb[0].mxu0
        %v2222 = vpop.f32.mrb[0].mxu0
        %2223 = vdwg.mxu0
        %v2228 = vunpack.c.l.b16 %v2043
        %v2229 = vunpack.c.l.b16 %v2044
        %v2230 = vunpack.c.l.b16 %v2045
        %v2231 = vunpack.c.l.b16 %v2046
        %v2232 = vpack.c.b16 %v2229, %v2228
        %v2233 = vpack.c.b16 %v2231, %v2230
        %v2235 = vsel %vm1601, %v2030, 0
        %v2238 = vsel %vm1601, %v2232, 0
        %v2241 = vsel %vm1601, %v2233, 0
        %2243 = vmatprep.subr.bf16.mxu0 0
        %2244 = vmatpush1.bf16.xpose.msra.mxu0 %v2238
        %2245 = vmatprep.subr.bf16.mxu0 0
        %2246 = vmatpush1.bf16.xpose.msra.mxu0 %v2241
        %2247 = vmatprep.subr.bf16.mxu0 0
        %2248 = vmatpush1.bf16.xpose.msra.mxu0 0
        %2249 = vmatprep.subr.bf16.mxu0 0
        %2250 = vmatpush1.bf16.xpose.msra.mxu0 0
        %2251 = vmatprep.subr.bf16.mxu0 0
        %2252 = vmatpush1.bf16.xpose.msra.mxu0 0
        %2253 = vmatprep.subr.bf16.mxu0 0
        %2254 = vmatpush1.bf16.xpose.msra.mxu0 0
        %2255 = vmatprep.subr.bf16.mxu0 0
        %2256 = vmatpush1.bf16.xpose.msra.mxu0 0
        %2257 = vmatprep.subr.bf16.mxu0 0
        %2258 = vmatpush1.bf16.xpose.msra.mxu0 0
        %2259 = vmatprep.subr.bf16.mxu0 0
        %2260 = vmatpush1.bf16.xpose.msra.mxu0 0
        %2261 = vmatprep.subr.bf16.mxu0 0
        %2262 = vmatpush1.bf16.xpose.msra.mxu0 0
        %2263 = vmatprep.subr.bf16.mxu0 0
        %2264 = vmatpush1.bf16.xpose.msra.mxu0 0
        %2265 = vmatprep.subr.bf16.mxu0 0
        %2266 = vmatpush1.bf16.xpose.msra.mxu0 0
        %2267 = vmatprep.subr.bf16.mxu0 0
        %2268 = vmatpush1.bf16.xpose.msra.mxu0 0
        %2269 = vmatprep.subr.bf16.mxu0 0
        %2270 = vmatpush1.bf16.xpose.msra.mxu0 0
        %2271 = vmatprep.subr.bf16.mxu0 0
        %2272 = vmatpush1.bf16.xpose.msra.mxu0 0
        %2273 = vmatprep.subr.bf16.mxu0 0
        %2274 = vmatpush1.bf16.xpose.msra.mxu0 0
        %2275 = vmatprep.mubr.bf16.mxu0 0
        %2276 = vmatmul.mubr.bf16.gmra.mrb[0].mxu0 %v2235
        %v2277 = vpop.f32.mrb[0].mxu0
        %v2278 = vadd.f32 0.0, %v2277
        %v2279 = vpop.f32.mrb[0].mxu0
        %v2280 = vpop.f32.mrb[0].mxu0
        %v2281 = vpop.f32.mrb[0].mxu0
        %2282 = vdwg.mxu0
        %v2283 = vsel %vm1009, %v2101, 0.0
        %v2284 = vsel %vm1009, %v2160, 0.0
        %v2285 = vadd.f32 %v2283, %v2284
        %v2286 = vsel %vm1009, %v2219, 0.0
        %v2287 = vadd.f32 %v2285, %v2286
        %v2288 = vsel %vm1009, %v2278, 0.0
        %v2289 = vadd.f32 %v2287, %v2288
        %v2290 = vld [vmem:[%s865] sm:$0x1]
        %v2292 = vlaneseq
        %v2293 = vshrl.u32 %v2292, 7
        %v2294 = vsub.s32 0, %v2293
        %v2295 = vrot.slane %v2290, %v2294
        %v2297 = vadd.f32 %v2289, %v2295
        %v2298 = vadd.f32 %v975, %v2297
        %v2299 = vld [vmem:[%s868] sm:$0x1]
        %v2300 = vld [vmem:[%s871] sm:$0x1]
        %v2301 = vsel %vm1009, %v2298, 0.0
        %2302 = vadd.xlane.f32.xlu0 %v2301
        %v2303 = vpop.xlane.xlu0 %2302
        %v2304 = vrcp.pop 32.0
        %v2305 = vmul.f32 %v2303, %v2304
        %v2306 = vsub.f32 %v2298, %v2305
        %v2307 = vmul.f32 %v2306, %v2306
        %v2308 = vsel %vm1009, %v2307, 0.0
        %2309 = vadd.xlane.f32.xlu0 %v2308
        %v2310 = vpop.xlane.xlu0 %2309
        %v2311 = vmul.f32 %v2310, %v2304
        %v2312 = vadd.f32 %v2311, 1e-05
        %v2313 = vrsqrt.pop %v2312
        %v2314 = vmul.f32 %v2306, %v2313
        %v2316 = vlaneseq
        %v2317 = vshrl.u32 %v2316, 7
        %v2318 = vsub.s32 0, %v2317
        %v2319 = vrot.slane %v2299, %v2318
        %v2321 = vmul.f32 %v2314, %v2319
        %v2323 = vlaneseq
        %v2324 = vshrl.u32 %v2323, 7
        %v2325 = vsub.s32 0, %v2324
        %v2326 = vrot.slane %v2300, %v2325
        %v2328 = vadd.f32 %v2321, %v2326
        %v2329 = vpack.c.bf16 %v2328, %v2328
        %v2330 = vld [vmem:[%s876] sm:$0xf]
        %v2331 = vld [vmem:[%s876 + $0x4] sm:$0xf]
        %v2332 = vld [vmem:[%s876 + $0x8] sm:$0xf]
        %v2333 = vld [vmem:[%s876 + $0xc] sm:$0xf]
        %v2334 = vld [vmem:[%s876 + $0x10] sm:$0xf]
        %v2335 = vld [vmem:[%s876 + $0x14] sm:$0xf]
        %v2336 = vld [vmem:[%s876 + $0x18] sm:$0xf]
        %v2337 = vld [vmem:[%s876 + $0x1c] sm:$0xf]
        %v2338 = vld [vmem:[%s876 + $0x20] sm:$0xf]
        %v2339 = vld [vmem:[%s876 + $0x24] sm:$0xf]
        %v2340 = vld [vmem:[%s876 + $0x28] sm:$0xf]
        %v2341 = vld [vmem:[%s876 + $0x2c] sm:$0xf]
        %v2342 = vld [vmem:[%s876 + $0x30] sm:$0xf]
        %v2343 = vld [vmem:[%s876 + $0x34] sm:$0xf]
        %v2344 = vld [vmem:[%s876 + $0x38] sm:$0xf]
        %v2345 = vld [vmem:[%s876 + $0x3c] sm:$0xf]
        %v2346 = vld [vmem:[%s876 + $0x40] sm:$0xf]
        %v2347 = vld [vmem:[%s876 + $0x44] sm:$0xf]
        %v2348 = vld [vmem:[%s876 + $0x48] sm:$0xf]
        %v2349 = vld [vmem:[%s876 + $0x4c] sm:$0xf]
        %v2350 = vld [vmem:[%s876 + $0x50] sm:$0xf]
        %v2351 = vld [vmem:[%s876 + $0x54] sm:$0xf]
        %v2352 = vld [vmem:[%s876 + $0x58] sm:$0xf]
        %v2353 = vld [vmem:[%s876 + $0x5c] sm:$0xf]
        %v2354 = vld [vmem:[%s876 + $0x60] sm:$0xf]
        %v2355 = vld [vmem:[%s876 + $0x64] sm:$0xf]
        %v2356 = vld [vmem:[%s876 + $0x68] sm:$0xf]
        %v2357 = vld [vmem:[%s876 + $0x6c] sm:$0xf]
        %v2358 = vld [vmem:[%s876 + $0x70] sm:$0xf]
        %v2359 = vld [vmem:[%s876 + $0x74] sm:$0xf]
        %v2360 = vld [vmem:[%s876 + $0x78] sm:$0xf]
        %v2361 = vld [vmem:[%s876 + $0x7c] sm:$0xf]
        %v2362 = vld [vmem:[%s876 + $0x80] sm:$0xf]
        %v2363 = vld [vmem:[%s876 + $0x84] sm:$0xf]
        %v2364 = vld [vmem:[%s876 + $0x88] sm:$0xf]
        %v2365 = vld [vmem:[%s876 + $0x8c] sm:$0xf]
        %v2366 = vld [vmem:[%s876 + $0x90] sm:$0xf]
        %v2367 = vld [vmem:[%s876 + $0x94] sm:$0xf]
        %v2368 = vld [vmem:[%s876 + $0x98] sm:$0xf]
        %v2369 = vld [vmem:[%s876 + $0x9c] sm:$0xf]
        %v2370 = vld [vmem:[%s876 + $0xa0] sm:$0xf]
        %v2371 = vld [vmem:[%s876 + $0xa4] sm:$0xf]
        %v2372 = vld [vmem:[%s876 + $0xa8] sm:$0xf]
        %v2373 = vld [vmem:[%s876 + $0xac] sm:$0xf]
        %v2374 = vld [vmem:[%s876 + $0xb0] sm:$0xf]
        %v2375 = vld [vmem:[%s876 + $0xb4] sm:$0xf]
        %v2376 = vld [vmem:[%s876 + $0xb8] sm:$0xf]
        %v2377 = vld [vmem:[%s876 + $0xbc] sm:$0xf]
        %v2378 = vld [vmem:[%s876 + $0xc0] sm:$0xf]
        %v2379 = vld [vmem:[%s876 + $0xc4] sm:$0xf]
        %v2380 = vld [vmem:[%s876 + $0xc8] sm:$0xf]
        %v2381 = vld [vmem:[%s876 + $0xcc] sm:$0xf]
        %v2382 = vld [vmem:[%s876 + $0xd0] sm:$0xf]
        %v2383 = vld [vmem:[%s876 + $0xd4] sm:$0xf]
        %v2384 = vld [vmem:[%s876 + $0xd8] sm:$0xf]
        %v2385 = vld [vmem:[%s876 + $0xdc] sm:$0xf]
        %v2386 = vld [vmem:[%s876 + $0xe0] sm:$0xf]
        %v2387 = vld [vmem:[%s876 + $0xe4] sm:$0xf]
        %v2388 = vld [vmem:[%s876 + $0xe8] sm:$0xf]
        %v2389 = vld [vmem:[%s876 + $0xec] sm:$0xf]
        %v2390 = vld [vmem:[%s876 + $0xf0] sm:$0xf]
        %v2391 = vld [vmem:[%s876 + $0xf4] sm:$0xf]
        %v2392 = vld [vmem:[%s876 + $0xf8] sm:$0xf]
        %v2393 = vld [vmem:[%s876 + $0xfc] sm:$0xf]
        %v2394 = vld [vmem:[%s876 + $0x100] sm:$0xf]
        %v2395 = vld [vmem:[%s876 + $0x104] sm:$0xf]
        %v2396 = vld [vmem:[%s876 + $0x108] sm:$0xf]
        %v2397 = vld [vmem:[%s876 + $0x10c] sm:$0xf]
        %v2398 = vld [vmem:[%s876 + $0x110] sm:$0xf]
        %v2399 = vld [vmem:[%s876 + $0x114] sm:$0xf]
        %v2400 = vld [vmem:[%s876 + $0x118] sm:$0xf]
        %v2401 = vld [vmem:[%s876 + $0x11c] sm:$0xf]
        %v2402 = vld [vmem:[%s876 + $0x120] sm:$0xf]
        %v2403 = vld [vmem:[%s876 + $0x124] sm:$0xf]
        %v2404 = vld [vmem:[%s876 + $0x128] sm:$0xf]
        %v2405 = vld [vmem:[%s876 + $0x12c] sm:$0xf]
        %v2406 = vld [vmem:[%s876 + $0x130] sm:$0xf]
        %v2407 = vld [vmem:[%s876 + $0x134] sm:$0xf]
        %v2408 = vld [vmem:[%s876 + $0x138] sm:$0xf]
        %v2409 = vld [vmem:[%s876 + $0x13c] sm:$0xf]
        %v2410 = vld [vmem:[%s876 + $0x140] sm:$0xf]
        %v2411 = vld [vmem:[%s876 + $0x144] sm:$0xf]
        %v2412 = vld [vmem:[%s876 + $0x148] sm:$0xf]
        %v2413 = vld [vmem:[%s876 + $0x14c] sm:$0xf]
        %v2414 = vld [vmem:[%s876 + $0x150] sm:$0xf]
        %v2415 = vld [vmem:[%s876 + $0x154] sm:$0xf]
        %v2416 = vld [vmem:[%s876 + $0x158] sm:$0xf]
        %v2417 = vld [vmem:[%s876 + $0x15c] sm:$0xf]
        %v2418 = vld [vmem:[%s876 + $0x160] sm:$0xf]
        %v2419 = vld [vmem:[%s876 + $0x164] sm:$0xf]
        %v2420 = vld [vmem:[%s876 + $0x168] sm:$0xf]
        %v2421 = vld [vmem:[%s876 + $0x16c] sm:$0xf]
        %v2422 = vld [vmem:[%s876 + $0x170] sm:$0xf]
        %v2423 = vld [vmem:[%s876 + $0x174] sm:$0xf]
        %v2424 = vld [vmem:[%s876 + $0x178] sm:$0xf]
        %v2425 = vld [vmem:[%s876 + $0x17c] sm:$0xf]
        %v2426 = vld [vmem:[%s876 + $0x180] sm:$0xf]
        %v2427 = vld [vmem:[%s876 + $0x184] sm:$0xf]
        %v2428 = vld [vmem:[%s876 + $0x188] sm:$0xf]
        %v2429 = vld [vmem:[%s876 + $0x18c] sm:$0xf]
        %v2430 = vld [vmem:[%s876 + $0x190] sm:$0xf]
        %v2431 = vld [vmem:[%s876 + $0x194] sm:$0xf]
        %v2432 = vld [vmem:[%s876 + $0x198] sm:$0xf]
        %v2433 = vld [vmem:[%s876 + $0x19c] sm:$0xf]
        %v2434 = vld [vmem:[%s876 + $0x1a0] sm:$0xf]
        %v2435 = vld [vmem:[%s876 + $0x1a4] sm:$0xf]
        %v2436 = vld [vmem:[%s876 + $0x1a8] sm:$0xf]
        %v2437 = vld [vmem:[%s876 + $0x1ac] sm:$0xf]
        %v2438 = vld [vmem:[%s876 + $0x1b0] sm:$0xf]
        %v2439 = vld [vmem:[%s876 + $0x1b4] sm:$0xf]
        %v2440 = vld [vmem:[%s876 + $0x1b8] sm:$0xf]
        %v2441 = vld [vmem:[%s876 + $0x1bc] sm:$0xf]
        %v2442 = vld [vmem:[%s876 + $0x1c0] sm:$0xf]
        %v2443 = vld [vmem:[%s876 + $0x1c4] sm:$0xf]
        %v2444 = vld [vmem:[%s876 + $0x1c8] sm:$0xf]
        %v2445 = vld [vmem:[%s876 + $0x1cc] sm:$0xf]
        %v2446 = vld [vmem:[%s876 + $0x1d0] sm:$0xf]
        %v2447 = vld [vmem:[%s876 + $0x1d4] sm:$0xf]
        %v2448 = vld [vmem:[%s876 + $0x1d8] sm:$0xf]
        %v2449 = vld [vmem:[%s876 + $0x1dc] sm:$0xf]
        %v2450 = vld [vmem:[%s876 + $0x1e0] sm:$0xf]
        %v2451 = vld [vmem:[%s876 + $0x1e4] sm:$0xf]
        %v2452 = vld [vmem:[%s876 + $0x1e8] sm:$0xf]
        %v2453 = vld [vmem:[%s876 + $0x1ec] sm:$0xf]
        %v2454 = vld [vmem:[%s876 + $0x1f0] sm:$0xf]
        %v2455 = vld [vmem:[%s876 + $0x1f4] sm:$0xf]
        %v2456 = vld [vmem:[%s876 + $0x1f8] sm:$0xf]
        %v2457 = vld [vmem:[%s876 + $0x1fc] sm:$0xf]
        %v2458 = vld [vmem:[%s876 + $0x200] sm:$0xf]
        %v2459 = vld [vmem:[%s876 + $0x204] sm:$0xf]
        %v2460 = vld [vmem:[%s876 + $0x208] sm:$0xf]
        %v2461 = vld [vmem:[%s876 + $0x20c] sm:$0xf]
        %v2462 = vld [vmem:[%s876 + $0x210] sm:$0xf]
        %v2463 = vld [vmem:[%s876 + $0x214] sm:$0xf]
        %v2464 = vld [vmem:[%s876 + $0x218] sm:$0xf]
        %v2465 = vld [vmem:[%s876 + $0x21c] sm:$0xf]
        %v2466 = vld [vmem:[%s876 + $0x220] sm:$0xf]
        %v2467 = vld [vmem:[%s876 + $0x224] sm:$0xf]
        %v2468 = vld [vmem:[%s876 + $0x228] sm:$0xf]
        %v2469 = vld [vmem:[%s876 + $0x22c] sm:$0xf]
        %v2470 = vld [vmem:[%s876 + $0x230] sm:$0xf]
        %v2471 = vld [vmem:[%s876 + $0x234] sm:$0xf]
        %v2472 = vld [vmem:[%s876 + $0x238] sm:$0xf]
        %v2473 = vld [vmem:[%s876 + $0x23c] sm:$0xf]
        %v2474 = vld [vmem:[%s876 + $0x240] sm:$0xf]
        %v2475 = vld [vmem:[%s876 + $0x244] sm:$0xf]
        %v2476 = vld [vmem:[%s876 + $0x248] sm:$0xf]
        %v2477 = vld [vmem:[%s876 + $0x24c] sm:$0xf]
        %v2478 = vld [vmem:[%s876 + $0x250] sm:$0xf]
        %v2479 = vld [vmem:[%s876 + $0x254] sm:$0xf]
        %v2480 = vld [vmem:[%s876 + $0x258] sm:$0xf]
        %v2481 = vld [vmem:[%s876 + $0x25c] sm:$0xf]
        %v2482 = vld [vmem:[%s876 + $0x260] sm:$0xf]
        %v2483 = vld [vmem:[%s876 + $0x264] sm:$0xf]
        %v2484 = vld [vmem:[%s876 + $0x268] sm:$0xf]
        %v2485 = vld [vmem:[%s876 + $0x26c] sm:$0xf]
        %v2486 = vld [vmem:[%s876 + $0x270] sm:$0xf]
        %v2487 = vld [vmem:[%s876 + $0x274] sm:$0xf]
        %v2488 = vld [vmem:[%s876 + $0x278] sm:$0xf]
        %v2489 = vld [vmem:[%s876 + $0x27c] sm:$0xf]
        %v2490 = vld [vmem:[%s876 + $0x280] sm:$0xf]
        %v2491 = vld [vmem:[%s876 + $0x284] sm:$0xf]
        %v2492 = vld [vmem:[%s876 + $0x288] sm:$0xf]
        %v2493 = vld [vmem:[%s876 + $0x28c] sm:$0xf]
        %v2494 = vld [vmem:[%s876 + $0x290] sm:$0xf]
        %v2495 = vld [vmem:[%s876 + $0x294] sm:$0xf]
        %v2496 = vld [vmem:[%s876 + $0x298] sm:$0xf]
        %v2497 = vld [vmem:[%s876 + $0x29c] sm:$0xf]
        %v2498 = vld [vmem:[%s876 + $0x2a0] sm:$0xf]
        %v2499 = vld [vmem:[%s876 + $0x2a4] sm:$0xf]
        %v2500 = vld [vmem:[%s876 + $0x2a8] sm:$0xf]
        %v2501 = vld [vmem:[%s876 + $0x2ac] sm:$0xf]
        %v2502 = vld [vmem:[%s876 + $0x2b0] sm:$0xf]
        %v2503 = vld [vmem:[%s876 + $0x2b4] sm:$0xf]
        %v2504 = vld [vmem:[%s876 + $0x2b8] sm:$0xf]
        %v2505 = vld [vmem:[%s876 + $0x2bc] sm:$0xf]
        %v2506 = vld [vmem:[%s876 + $0x2c0] sm:$0xf]
        %v2507 = vld [vmem:[%s876 + $0x2c4] sm:$0xf]
        %v2508 = vld [vmem:[%s876 + $0x2c8] sm:$0xf]
        %v2509 = vld [vmem:[%s876 + $0x2cc] sm:$0xf]
        %v2510 = vld [vmem:[%s876 + $0x2d0] sm:$0xf]
        %v2511 = vld [vmem:[%s876 + $0x2d4] sm:$0xf]
        %v2512 = vld [vmem:[%s876 + $0x2d8] sm:$0xf]
        %v2513 = vld [vmem:[%s876 + $0x2dc] sm:$0xf]
        %v2514 = vld [vmem:[%s876 + $0x2e0] sm:$0xf]
        %v2515 = vld [vmem:[%s876 + $0x2e4] sm:$0xf]
        %v2516 = vld [vmem:[%s876 + $0x2e8] sm:$0xf]
        %v2517 = vld [vmem:[%s876 + $0x2ec] sm:$0xf]
        %v2518 = vld [vmem:[%s876 + $0x2f0] sm:$0xf]
        %v2519 = vld [vmem:[%s876 + $0x2f4] sm:$0xf]
        %v2520 = vld [vmem:[%s876 + $0x2f8] sm:$0xf]
        %v2521 = vld [vmem:[%s876 + $0x2fc] sm:$0xf]
        %v2522 = vld [vmem:[%s876 + $0x300] sm:$0xf]
        %v2523 = vld [vmem:[%s876 + $0x304] sm:$0xf]
        %v2524 = vld [vmem:[%s876 + $0x308] sm:$0xf]
        %v2525 = vld [vmem:[%s876 + $0x30c] sm:$0xf]
        %v2526 = vld [vmem:[%s876 + $0x310] sm:$0xf]
        %v2527 = vld [vmem:[%s876 + $0x314] sm:$0xf]
        %v2528 = vld [vmem:[%s876 + $0x318] sm:$0xf]
        %v2529 = vld [vmem:[%s876 + $0x31c] sm:$0xf]
        %v2530 = vld [vmem:[%s876 + $0x320] sm:$0xf]
        %v2531 = vld [vmem:[%s876 + $0x324] sm:$0xf]
        %v2532 = vld [vmem:[%s876 + $0x328] sm:$0xf]
        %v2533 = vld [vmem:[%s876 + $0x32c] sm:$0xf]
        %v2534 = vld [vmem:[%s876 + $0x330] sm:$0xf]
        %v2535 = vld [vmem:[%s876 + $0x334] sm:$0xf]
        %v2536 = vld [vmem:[%s876 + $0x338] sm:$0xf]
        %v2537 = vld [vmem:[%s876 + $0x33c] sm:$0xf]
        %v2538 = vld [vmem:[%s876 + $0x340] sm:$0xf]
        %v2539 = vld [vmem:[%s876 + $0x344] sm:$0xf]
        %v2540 = vld [vmem:[%s876 + $0x348] sm:$0xf]
        %v2541 = vld [vmem:[%s876 + $0x34c] sm:$0xf]
        %v2542 = vld [vmem:[%s876 + $0x350] sm:$0xf]
        %v2543 = vld [vmem:[%s876 + $0x354] sm:$0xf]
        %v2544 = vld [vmem:[%s876 + $0x358] sm:$0xf]
        %v2545 = vld [vmem:[%s876 + $0x35c] sm:$0xf]
        %v2546 = vld [vmem:[%s876 + $0x360] sm:$0xf]
        %v2547 = vld [vmem:[%s876 + $0x364] sm:$0xf]
        %v2548 = vld [vmem:[%s876 + $0x368] sm:$0xf]
        %v2549 = vld [vmem:[%s876 + $0x36c] sm:$0xf]
        %v2550 = vld [vmem:[%s876 + $0x370] sm:$0xf]
        %v2551 = vld [vmem:[%s876 + $0x374] sm:$0xf]
        %v2552 = vld [vmem:[%s876 + $0x378] sm:$0xf]
        %v2553 = vld [vmem:[%s876 + $0x37c] sm:$0xf]
        %v2554 = vld [vmem:[%s876 + $0x380] sm:$0xf]
        %v2555 = vld [vmem:[%s876 + $0x384] sm:$0xf]
        %v2556 = vld [vmem:[%s876 + $0x388] sm:$0xf]
        %v2557 = vld [vmem:[%s876 + $0x38c] sm:$0xf]
        %v2558 = vld [vmem:[%s876 + $0x390] sm:$0xf]
        %v2559 = vld [vmem:[%s876 + $0x394] sm:$0xf]
        %v2560 = vld [vmem:[%s876 + $0x398] sm:$0xf]
        %v2561 = vld [vmem:[%s876 + $0x39c] sm:$0xf]
        %v2562 = vld [vmem:[%s876 + $0x3a0] sm:$0xf]
        %v2563 = vld [vmem:[%s876 + $0x3a4] sm:$0xf]
        %v2564 = vld [vmem:[%s876 + $0x3a8] sm:$0xf]
        %v2565 = vld [vmem:[%s876 + $0x3ac] sm:$0xf]
        %v2566 = vld [vmem:[%s876 + $0x3b0] sm:$0xf]
        %v2567 = vld [vmem:[%s876 + $0x3b4] sm:$0xf]
        %v2568 = vld [vmem:[%s876 + $0x3b8] sm:$0xf]
        %v2569 = vld [vmem:[%s876 + $0x3bc] sm:$0xf]
        %v2570 = vld [vmem:[%s876 + $0x3c0] sm:$0xf]
        %v2571 = vld [vmem:[%s876 + $0x3c4] sm:$0xf]
        %v2572 = vld [vmem:[%s876 + $0x3c8] sm:$0xf]
        %v2573 = vld [vmem:[%s876 + $0x3cc] sm:$0xf]
        %v2574 = vld [vmem:[%s876 + $0x3d0] sm:$0xf]
        %v2575 = vld [vmem:[%s876 + $0x3d4] sm:$0xf]
        %v2576 = vld [vmem:[%s876 + $0x3d8] sm:$0xf]
        %v2577 = vld [vmem:[%s876 + $0x3dc] sm:$0xf]
        %v2578 = vld [vmem:[%s876 + $0x3e0] sm:$0xf]
        %v2579 = vld [vmem:[%s876 + $0x3e4] sm:$0xf]
        %v2580 = vld [vmem:[%s876 + $0x3e8] sm:$0xf]
        %v2581 = vld [vmem:[%s876 + $0x3ec] sm:$0xf]
        %v2582 = vld [vmem:[%s876 + $0x3f0] sm:$0xf]
        %v2583 = vld [vmem:[%s876 + $0x3f4] sm:$0xf]
        %v2584 = vld [vmem:[%s876 + $0x3f8] sm:$0xf]
        %v2585 = vld [vmem:[%s876 + $0x3fc] sm:$0xf]
        %v2586 = vld [vmem:[%s880] sm:$0xff]
        %v2587 = vld [vmem:[%s880 + $0x8] sm:$0xff]
        %v2590 = vlaneseq
        %v2591 = vshrl.u32 %v2590, 7
        %v2592 = vsub.s32 0, %v2591
        %v2593 = vrot.slane %v2586, %v2592
        %v2594 = vlaneseq
        %v2595 = vshrl.u32 %v2594, 7
        %v2596 = vsub.s32 1, %v2595
        %v2597 = vrot.slane %v2586, %v2596
        %v2598 = vlaneseq
        %v2599 = vshrl.u32 %v2598, 7
        %v2600 = vsub.s32 2, %v2599
        %v2601 = vrot.slane %v2586, %v2600
        %v2602 = vlaneseq
        %v2603 = vshrl.u32 %v2602, 7
        %v2604 = vsub.s32 3, %v2603
        %v2605 = vrot.slane %v2586, %v2604
        %v2606 = vlaneseq
        %v2607 = vshrl.u32 %v2606, 7
        %v2608 = vsub.s32 4, %v2607
        %v2609 = vrot.slane %v2586, %v2608
        %v2610 = vlaneseq
        %v2611 = vshrl.u32 %v2610, 7
        %v2612 = vsub.s32 5, %v2611
        %v2613 = vrot.slane %v2586, %v2612
        %v2614 = vlaneseq
        %v2615 = vshrl.u32 %v2614, 7
        %v2616 = vsub.s32 6, %v2615
        %v2617 = vrot.slane %v2586, %v2616
        %v2618 = vlaneseq
        %v2619 = vshrl.u32 %v2618, 7
        %v2620 = vsub.s32 7, %v2619
        %v2621 = vrot.slane %v2586, %v2620
        %v2622 = vlaneseq
        %v2623 = vshrl.u32 %v2622, 7
        %v2624 = vsub.s32 0, %v2623
        %v2625 = vrot.slane %v2587, %v2624
        %v2626 = vlaneseq
        %v2627 = vshrl.u32 %v2626, 7
        %v2628 = vsub.s32 1, %v2627
        %v2629 = vrot.slane %v2587, %v2628
        %v2630 = vlaneseq
        %v2631 = vshrl.u32 %v2630, 7
        %v2632 = vsub.s32 2, %v2631
        %v2633 = vrot.slane %v2587, %v2632
        %v2634 = vlaneseq
        %v2635 = vshrl.u32 %v2634, 7
        %v2636 = vsub.s32 3, %v2635
        %v2637 = vrot.slane %v2587, %v2636
        %v2638 = vlaneseq
        %v2639 = vshrl.u32 %v2638, 7
        %v2640 = vsub.s32 4, %v2639
        %v2641 = vrot.slane %v2587, %v2640
        %v2642 = vlaneseq
        %v2643 = vshrl.u32 %v2642, 7
        %v2644 = vsub.s32 5, %v2643
        %v2645 = vrot.slane %v2587, %v2644
        %v2646 = vlaneseq
        %v2647 = vshrl.u32 %v2646, 7
        %v2648 = vsub.s32 6, %v2647
        %v2649 = vrot.slane %v2587, %v2648
        %v2650 = vlaneseq
        %v2651 = vshrl.u32 %v2650, 7
        %v2652 = vsub.s32 7, %v2651
        %v2653 = vrot.slane %v2587, %v2652
        %v2926 = vunpack.c.l.b16 %v2330
        %v2927 = vunpack.c.l.b16 %v2331
        %v2928 = vunpack.c.l.b16 %v2332
        %v2929 = vunpack.c.l.b16 %v2333
        %v2930 = vunpack.c.l.b16 %v2334
        %v2931 = vunpack.c.l.b16 %v2335
        %v2932 = vunpack.c.l.b16 %v2336
        %v2933 = vunpack.c.l.b16 %v2337
        %v2934 = vunpack.c.l.b16 %v2338
        %v2935 = vunpack.c.l.b16 %v2339
        %v2936 = vunpack.c.l.b16 %v2340
        %v2937 = vunpack.c.l.b16 %v2341
        %v2938 = vunpack.c.l.b16 %v2342
        %v2939 = vunpack.c.l.b16 %v2343
        %v2940 = vunpack.c.l.b16 %v2344
        %v2941 = vunpack.c.l.b16 %v2345
        %v2942 = vunpack.c.l.b16 %v2346
        %v2943 = vunpack.c.l.b16 %v2347
        %v2944 = vunpack.c.l.b16 %v2348
        %v2945 = vunpack.c.l.b16 %v2349
        %v2946 = vunpack.c.l.b16 %v2350
        %v2947 = vunpack.c.l.b16 %v2351
        %v2948 = vunpack.c.l.b16 %v2352
        %v2949 = vunpack.c.l.b16 %v2353
        %v2950 = vunpack.c.l.b16 %v2354
        %v2951 = vunpack.c.l.b16 %v2355
        %v2952 = vunpack.c.l.b16 %v2356
        %v2953 = vunpack.c.l.b16 %v2357
        %v2954 = vunpack.c.l.b16 %v2358
        %v2955 = vunpack.c.l.b16 %v2359
        %v2956 = vunpack.c.l.b16 %v2360
        %v2957 = vunpack.c.l.b16 %v2361
        %v2958 = vunpack.c.l.b16 %v2362
        %v2959 = vunpack.c.l.b16 %v2363
        %v2960 = vunpack.c.l.b16 %v2364
        %v2961 = vunpack.c.l.b16 %v2365
        %v2962 = vunpack.c.l.b16 %v2366
        %v2963 = vunpack.c.l.b16 %v2367
        %v2964 = vunpack.c.l.b16 %v2368
        %v2965 = vunpack.c.l.b16 %v2369
        %v2966 = vunpack.c.l.b16 %v2370
        %v2967 = vunpack.c.l.b16 %v2371
        %v2968 = vunpack.c.l.b16 %v2372
        %v2969 = vunpack.c.l.b16 %v2373
        %v2970 = vunpack.c.l.b16 %v2374
        %v2971 = vunpack.c.l.b16 %v2375
        %v2972 = vunpack.c.l.b16 %v2376
        %v2973 = vunpack.c.l.b16 %v2377
        %v2974 = vunpack.c.l.b16 %v2378
        %v2975 = vunpack.c.l.b16 %v2379
        %v2976 = vunpack.c.l.b16 %v2380
        %v2977 = vunpack.c.l.b16 %v2381
        %v2978 = vunpack.c.l.b16 %v2382
        %v2979 = vunpack.c.l.b16 %v2383
        %v2980 = vunpack.c.l.b16 %v2384
        %v2981 = vunpack.c.l.b16 %v2385
        %v2982 = vunpack.c.l.b16 %v2386
        %v2983 = vunpack.c.l.b16 %v2387
        %v2984 = vunpack.c.l.b16 %v2388
        %v2985 = vunpack.c.l.b16 %v2389
        %v2986 = vunpack.c.l.b16 %v2390
        %v2987 = vunpack.c.l.b16 %v2391
        %v2988 = vunpack.c.l.b16 %v2392
        %v2989 = vunpack.c.l.b16 %v2393
        %v2990 = vunpack.c.l.b16 %v2394
        %v2991 = vunpack.c.l.b16 %v2395
        %v2992 = vunpack.c.l.b16 %v2396
        %v2993 = vunpack.c.l.b16 %v2397
        %v2994 = vunpack.c.l.b16 %v2398
        %v2995 = vunpack.c.l.b16 %v2399
        %v2996 = vunpack.c.l.b16 %v2400
        %v2997 = vunpack.c.l.b16 %v2401
        %v2998 = vunpack.c.l.b16 %v2402
        %v2999 = vunpack.c.l.b16 %v2403
        %v3000 = vunpack.c.l.b16 %v2404
        %v3001 = vunpack.c.l.b16 %v2405
        %v3002 = vunpack.c.l.b16 %v2406
        %v3003 = vunpack.c.l.b16 %v2407
        %v3004 = vunpack.c.l.b16 %v2408
        %v3005 = vunpack.c.l.b16 %v2409
        %v3006 = vunpack.c.l.b16 %v2410
        %v3007 = vunpack.c.l.b16 %v2411
        %v3008 = vunpack.c.l.b16 %v2412
        %v3009 = vunpack.c.l.b16 %v2413
        %v3010 = vunpack.c.l.b16 %v2414
        %v3011 = vunpack.c.l.b16 %v2415
        %v3012 = vunpack.c.l.b16 %v2416
        %v3013 = vunpack.c.l.b16 %v2417
        %v3014 = vunpack.c.l.b16 %v2418
        %v3015 = vunpack.c.l.b16 %v2419
        %v3016 = vunpack.c.l.b16 %v2420
        %v3017 = vunpack.c.l.b16 %v2421
        %v3018 = vunpack.c.l.b16 %v2422
        %v3019 = vunpack.c.l.b16 %v2423
        %v3020 = vunpack.c.l.b16 %v2424
        %v3021 = vunpack.c.l.b16 %v2425
        %v3022 = vunpack.c.l.b16 %v2426
        %v3023 = vunpack.c.l.b16 %v2427
        %v3024 = vunpack.c.l.b16 %v2428
        %v3025 = vunpack.c.l.b16 %v2429
        %v3026 = vunpack.c.l.b16 %v2430
        %v3027 = vunpack.c.l.b16 %v2431
        %v3028 = vunpack.c.l.b16 %v2432
        %v3029 = vunpack.c.l.b16 %v2433
        %v3030 = vunpack.c.l.b16 %v2434
        %v3031 = vunpack.c.l.b16 %v2435
        %v3032 = vunpack.c.l.b16 %v2436
        %v3033 = vunpack.c.l.b16 %v2437
        %v3034 = vunpack.c.l.b16 %v2438
        %v3035 = vunpack.c.l.b16 %v2439
        %v3036 = vunpack.c.l.b16 %v2440
        %v3037 = vunpack.c.l.b16 %v2441
        %v3038 = vunpack.c.l.b16 %v2442
        %v3039 = vunpack.c.l.b16 %v2443
        %v3040 = vunpack.c.l.b16 %v2444
        %v3041 = vunpack.c.l.b16 %v2445
        %v3042 = vunpack.c.l.b16 %v2446
        %v3043 = vunpack.c.l.b16 %v2447
        %v3044 = vunpack.c.l.b16 %v2448
        %v3045 = vunpack.c.l.b16 %v2449
        %v3046 = vunpack.c.l.b16 %v2450
        %v3047 = vunpack.c.l.b16 %v2451
        %v3048 = vunpack.c.l.b16 %v2452
        %v3049 = vunpack.c.l.b16 %v2453
        %v3050 = vunpack.c.l.b16 %v2454
        %v3051 = vunpack.c.l.b16 %v2455
        %v3052 = vunpack.c.l.b16 %v2456
        %v3053 = vunpack.c.l.b16 %v2457
        %v3054 = vunpack.c.l.b16 %v2458
        %v3055 = vunpack.c.l.b16 %v2459
        %v3056 = vunpack.c.l.b16 %v2460
        %v3057 = vunpack.c.l.b16 %v2461
        %v3058 = vunpack.c.l.b16 %v2462
        %v3059 = vunpack.c.l.b16 %v2463
        %v3060 = vunpack.c.l.b16 %v2464
        %v3061 = vunpack.c.l.b16 %v2465
        %v3062 = vunpack.c.l.b16 %v2466
        %v3063 = vunpack.c.l.b16 %v2467
        %v3064 = vunpack.c.l.b16 %v2468
        %v3065 = vunpack.c.l.b16 %v2469
        %v3066 = vunpack.c.l.b16 %v2470
        %v3067 = vunpack.c.l.b16 %v2471
        %v3068 = vunpack.c.l.b16 %v2472
        %v3069 = vunpack.c.l.b16 %v2473
        %v3070 = vunpack.c.l.b16 %v2474
        %v3071 = vunpack.c.l.b16 %v2475
        %v3072 = vunpack.c.l.b16 %v2476
        %v3073 = vunpack.c.l.b16 %v2477
        %v3074 = vunpack.c.l.b16 %v2478
        %v3075 = vunpack.c.l.b16 %v2479
        %v3076 = vunpack.c.l.b16 %v2480
        %v3077 = vunpack.c.l.b16 %v2481
        %v3078 = vunpack.c.l.b16 %v2482
        %v3079 = vunpack.c.l.b16 %v2483
        %v3080 = vunpack.c.l.b16 %v2484
        %v3081 = vunpack.c.l.b16 %v2485
        %v3082 = vunpack.c.l.b16 %v2486
        %v3083 = vunpack.c.l.b16 %v2487
        %v3084 = vunpack.c.l.b16 %v2488
        %v3085 = vunpack.c.l.b16 %v2489
        %v3086 = vunpack.c.l.b16 %v2490
        %v3087 = vunpack.c.l.b16 %v2491
        %v3088 = vunpack.c.l.b16 %v2492
        %v3089 = vunpack.c.l.b16 %v2493
        %v3090 = vunpack.c.l.b16 %v2494
        %v3091 = vunpack.c.l.b16 %v2495
        %v3092 = vunpack.c.l.b16 %v2496
        %v3093 = vunpack.c.l.b16 %v2497
        %v3094 = vunpack.c.l.b16 %v2498
        %v3095 = vunpack.c.l.b16 %v2499
        %v3096 = vunpack.c.l.b16 %v2500
        %v3097 = vunpack.c.l.b16 %v2501
        %v3098 = vunpack.c.l.b16 %v2502
        %v3099 = vunpack.c.l.b16 %v2503
        %v3100 = vunpack.c.l.b16 %v2504
        %v3101 = vunpack.c.l.b16 %v2505
        %v3102 = vunpack.c.l.b16 %v2506
        %v3103 = vunpack.c.l.b16 %v2507
        %v3104 = vunpack.c.l.b16 %v2508
        %v3105 = vunpack.c.l.b16 %v2509
        %v3106 = vunpack.c.l.b16 %v2510
        %v3107 = vunpack.c.l.b16 %v2511
        %v3108 = vunpack.c.l.b16 %v2512
        %v3109 = vunpack.c.l.b16 %v2513
        %v3110 = vunpack.c.l.b16 %v2514
        %v3111 = vunpack.c.l.b16 %v2515
        %v3112 = vunpack.c.l.b16 %v2516
        %v3113 = vunpack.c.l.b16 %v2517
        %v3114 = vunpack.c.l.b16 %v2518
        %v3115 = vunpack.c.l.b16 %v2519
        %v3116 = vunpack.c.l.b16 %v2520
        %v3117 = vunpack.c.l.b16 %v2521
        %v3118 = vunpack.c.l.b16 %v2522
        %v3119 = vunpack.c.l.b16 %v2523
        %v3120 = vunpack.c.l.b16 %v2524
        %v3121 = vunpack.c.l.b16 %v2525
        %v3122 = vunpack.c.l.b16 %v2526
        %v3123 = vunpack.c.l.b16 %v2527
        %v3124 = vunpack.c.l.b16 %v2528
        %v3125 = vunpack.c.l.b16 %v2529
        %v3126 = vunpack.c.l.b16 %v2530
        %v3127 = vunpack.c.l.b16 %v2531
        %v3128 = vunpack.c.l.b16 %v2532
        %v3129 = vunpack.c.l.b16 %v2533
        %v3130 = vunpack.c.l.b16 %v2534
        %v3131 = vunpack.c.l.b16 %v2535
        %v3132 = vunpack.c.l.b16 %v2536
        %v3133 = vunpack.c.l.b16 %v2537
        %v3134 = vunpack.c.l.b16 %v2538
        %v3135 = vunpack.c.l.b16 %v2539
        %v3136 = vunpack.c.l.b16 %v2540
        %v3137 = vunpack.c.l.b16 %v2541
        %v3138 = vunpack.c.l.b16 %v2542
        %v3139 = vunpack.c.l.b16 %v2543
        %v3140 = vunpack.c.l.b16 %v2544
        %v3141 = vunpack.c.l.b16 %v2545
        %v3142 = vunpack.c.l.b16 %v2546
        %v3143 = vunpack.c.l.b16 %v2547
        %v3144 = vunpack.c.l.b16 %v2548
        %v3145 = vunpack.c.l.b16 %v2549
        %v3146 = vunpack.c.l.b16 %v2550
        %v3147 = vunpack.c.l.b16 %v2551
        %v3148 = vunpack.c.l.b16 %v2552
        %v3149 = vunpack.c.l.b16 %v2553
        %v3150 = vunpack.c.l.b16 %v2554
        %v3151 = vunpack.c.l.b16 %v2555
        %v3152 = vunpack.c.l.b16 %v2556
        %v3153 = vunpack.c.l.b16 %v2557
        %v3154 = vunpack.c.l.b16 %v2558
        %v3155 = vunpack.c.l.b16 %v2559
        %v3156 = vunpack.c.l.b16 %v2560
        %v3157 = vunpack.c.l.b16 %v2561
        %v3158 = vunpack.c.l.b16 %v2562
        %v3159 = vunpack.c.l.b16 %v2563
        %v3160 = vunpack.c.l.b16 %v2564
        %v3161 = vunpack.c.l.b16 %v2565
        %v3162 = vunpack.c.l.b16 %v2566
        %v3163 = vunpack.c.l.b16 %v2567
        %v3164 = vunpack.c.l.b16 %v2568
        %v3165 = vunpack.c.l.b16 %v2569
        %v3166 = vunpack.c.l.b16 %v2570
        %v3167 = vunpack.c.l.b16 %v2571
        %v3168 = vunpack.c.l.b16 %v2572
        %v3169 = vunpack.c.l.b16 %v2573
        %v3170 = vunpack.c.l.b16 %v2574
        %v3171 = vunpack.c.l.b16 %v2575
        %v3172 = vunpack.c.l.b16 %v2576
        %v3173 = vunpack.c.l.b16 %v2577
        %v3174 = vunpack.c.l.b16 %v2578
        %v3175 = vunpack.c.l.b16 %v2579
        %v3176 = vunpack.c.l.b16 %v2580
        %v3177 = vunpack.c.l.b16 %v2581
        %v3178 = vunpack.c.l.b16 %v2582
        %v3179 = vunpack.c.l.b16 %v2583
        %v3180 = vunpack.c.l.b16 %v2584
        %v3181 = vunpack.c.l.b16 %v2585
        %v3182 = vpack.c.b16 %v2927, %v2926
        %v3183 = vpack.c.b16 %v2929, %v2928
        %v3184 = vpack.c.b16 %v2931, %v2930
        %v3185 = vpack.c.b16 %v2933, %v2932
        %v3186 = vpack.c.b16 %v2935, %v2934
        %v3187 = vpack.c.b16 %v2937, %v2936
        %v3188 = vpack.c.b16 %v2939, %v2938
        %v3189 = vpack.c.b16 %v2941, %v2940
        %v3190 = vpack.c.b16 %v2943, %v2942
        %v3191 = vpack.c.b16 %v2945, %v2944
        %v3192 = vpack.c.b16 %v2947, %v2946
        %v3193 = vpack.c.b16 %v2949, %v2948
        %v3194 = vpack.c.b16 %v2951, %v2950
        %v3195 = vpack.c.b16 %v2953, %v2952
        %v3196 = vpack.c.b16 %v2955, %v2954
        %v3197 = vpack.c.b16 %v2957, %v2956
        %v3198 = vpack.c.b16 %v2959, %v2958
        %v3199 = vpack.c.b16 %v2961, %v2960
        %v3200 = vpack.c.b16 %v2963, %v2962
        %v3201 = vpack.c.b16 %v2965, %v2964
        %v3202 = vpack.c.b16 %v2967, %v2966
        %v3203 = vpack.c.b16 %v2969, %v2968
        %v3204 = vpack.c.b16 %v2971, %v2970
        %v3205 = vpack.c.b16 %v2973, %v2972
        %v3206 = vpack.c.b16 %v2975, %v2974
        %v3207 = vpack.c.b16 %v2977, %v2976
        %v3208 = vpack.c.b16 %v2979, %v2978
        %v3209 = vpack.c.b16 %v2981, %v2980
        %v3210 = vpack.c.b16 %v2983, %v2982
        %v3211 = vpack.c.b16 %v2985, %v2984
        %v3212 = vpack.c.b16 %v2987, %v2986
        %v3213 = vpack.c.b16 %v2989, %v2988
        %v3214 = vpack.c.b16 %v2991, %v2990
        %v3215 = vpack.c.b16 %v2993, %v2992
        %v3216 = vpack.c.b16 %v2995, %v2994
        %v3217 = vpack.c.b16 %v2997, %v2996
        %v3218 = vpack.c.b16 %v2999, %v2998
        %v3219 = vpack.c.b16 %v3001, %v3000
        %v3220 = vpack.c.b16 %v3003, %v3002
        %v3221 = vpack.c.b16 %v3005, %v3004
        %v3222 = vpack.c.b16 %v3007, %v3006
        %v3223 = vpack.c.b16 %v3009, %v3008
        %v3224 = vpack.c.b16 %v3011, %v3010
        %v3225 = vpack.c.b16 %v3013, %v3012
        %v3226 = vpack.c.b16 %v3015, %v3014
        %v3227 = vpack.c.b16 %v3017, %v3016
        %v3228 = vpack.c.b16 %v3019, %v3018
        %v3229 = vpack.c.b16 %v3021, %v3020
        %v3230 = vpack.c.b16 %v3023, %v3022
        %v3231 = vpack.c.b16 %v3025, %v3024
        %v3232 = vpack.c.b16 %v3027, %v3026
        %v3233 = vpack.c.b16 %v3029, %v3028
        %v3234 = vpack.c.b16 %v3031, %v3030
        %v3235 = vpack.c.b16 %v3033, %v3032
        %v3236 = vpack.c.b16 %v3035, %v3034
        %v3237 = vpack.c.b16 %v3037, %v3036
        %v3238 = vpack.c.b16 %v3039, %v3038
        %v3239 = vpack.c.b16 %v3041, %v3040
        %v3240 = vpack.c.b16 %v3043, %v3042
        %v3241 = vpack.c.b16 %v3045, %v3044
        %v3242 = vpack.c.b16 %v3047, %v3046
        %v3243 = vpack.c.b16 %v3049, %v3048
        %v3244 = vpack.c.b16 %v3051, %v3050
        %v3245 = vpack.c.b16 %v3053, %v3052
        %v3246 = vpack.c.b16 %v3055, %v3054
        %v3247 = vpack.c.b16 %v3057, %v3056
        %v3248 = vpack.c.b16 %v3059, %v3058
        %v3249 = vpack.c.b16 %v3061, %v3060
        %v3250 = vpack.c.b16 %v3063, %v3062
        %v3251 = vpack.c.b16 %v3065, %v3064
        %v3252 = vpack.c.b16 %v3067, %v3066
        %v3253 = vpack.c.b16 %v3069, %v3068
        %v3254 = vpack.c.b16 %v3071, %v3070
        %v3255 = vpack.c.b16 %v3073, %v3072
        %v3256 = vpack.c.b16 %v3075, %v3074
        %v3257 = vpack.c.b16 %v3077, %v3076
        %v3258 = vpack.c.b16 %v3079, %v3078
        %v3259 = vpack.c.b16 %v3081, %v3080
        %v3260 = vpack.c.b16 %v3083, %v3082
        %v3261 = vpack.c.b16 %v3085, %v3084
        %v3262 = vpack.c.b16 %v3087, %v3086
        %v3263 = vpack.c.b16 %v3089, %v3088
        %v3264 = vpack.c.b16 %v3091, %v3090
        %v3265 = vpack.c.b16 %v3093, %v3092
        %v3266 = vpack.c.b16 %v3095, %v3094
        %v3267 = vpack.c.b16 %v3097, %v3096
        %v3268 = vpack.c.b16 %v3099, %v3098
        %v3269 = vpack.c.b16 %v3101, %v3100
        %v3270 = vpack.c.b16 %v3103, %v3102
        %v3271 = vpack.c.b16 %v3105, %v3104
        %v3272 = vpack.c.b16 %v3107, %v3106
        %v3273 = vpack.c.b16 %v3109, %v3108
        %v3274 = vpack.c.b16 %v3111, %v3110
        %v3275 = vpack.c.b16 %v3113, %v3112
        %v3276 = vpack.c.b16 %v3115, %v3114
        %v3277 = vpack.c.b16 %v3117, %v3116
        %v3278 = vpack.c.b16 %v3119, %v3118
        %v3279 = vpack.c.b16 %v3121, %v3120
        %v3280 = vpack.c.b16 %v3123, %v3122
        %v3281 = vpack.c.b16 %v3125, %v3124
        %v3282 = vpack.c.b16 %v3127, %v3126
        %v3283 = vpack.c.b16 %v3129, %v3128
        %v3284 = vpack.c.b16 %v3131, %v3130
        %v3285 = vpack.c.b16 %v3133, %v3132
        %v3286 = vpack.c.b16 %v3135, %v3134
        %v3287 = vpack.c.b16 %v3137, %v3136
        %v3288 = vpack.c.b16 %v3139, %v3138
        %v3289 = vpack.c.b16 %v3141, %v3140
        %v3290 = vpack.c.b16 %v3143, %v3142
        %v3291 = vpack.c.b16 %v3145, %v3144
        %v3292 = vpack.c.b16 %v3147, %v3146
        %v3293 = vpack.c.b16 %v3149, %v3148
        %v3294 = vpack.c.b16 %v3151, %v3150
        %v3295 = vpack.c.b16 %v3153, %v3152
        %v3296 = vpack.c.b16 %v3155, %v3154
        %v3297 = vpack.c.b16 %v3157, %v3156
        %v3298 = vpack.c.b16 %v3159, %v3158
        %v3299 = vpack.c.b16 %v3161, %v3160
        %v3300 = vpack.c.b16 %v3163, %v3162
        %v3301 = vpack.c.b16 %v3165, %v3164
        %v3302 = vpack.c.b16 %v3167, %v3166
        %v3303 = vpack.c.b16 %v3169, %v3168
        %v3304 = vpack.c.b16 %v3171, %v3170
        %v3305 = vpack.c.b16 %v3173, %v3172
        %v3306 = vpack.c.b16 %v3175, %v3174
        %v3307 = vpack.c.b16 %v3177, %v3176
        %v3308 = vpack.c.b16 %v3179, %v3178
        %v3309 = vpack.c.b16 %v3181, %v3180
        %v3311 = vsel %vm1009, %v2329, 0
        %v3314 = vsel %vm1009, %v3182, 0
        %v3317 = vsel %vm1009, %v3183, 0
        %v3320 = vsel %vm1009, %v3184, 0
        %v3323 = vsel %vm1009, %v3185, 0
        %v3326 = vsel %vm1009, %v3186, 0
        %v3329 = vsel %vm1009, %v3187, 0
        %v3332 = vsel %vm1009, %v3188, 0
        %v3335 = vsel %vm1009, %v3189, 0
        %v3338 = vsel %vm1009, %v3190, 0
        %v3341 = vsel %vm1009, %v3191, 0
        %v3344 = vsel %vm1009, %v3192, 0
        %v3347 = vsel %vm1009, %v3193, 0
        %v3350 = vsel %vm1009, %v3194, 0
        %v3353 = vsel %vm1009, %v3195, 0
        %v3356 = vsel %vm1009, %v3196, 0
        %v3359 = vsel %vm1009, %v3197, 0
        %v3362 = vsel %vm1009, %v3198, 0
        %v3365 = vsel %vm1009, %v3199, 0
        %v3368 = vsel %vm1009, %v3200, 0
        %v3371 = vsel %vm1009, %v3201, 0
        %v3374 = vsel %vm1009, %v3202, 0
        %v3377 = vsel %vm1009, %v3203, 0
        %v3380 = vsel %vm1009, %v3204, 0
        %v3383 = vsel %vm1009, %v3205, 0
        %v3386 = vsel %vm1009, %v3206, 0
        %v3389 = vsel %vm1009, %v3207, 0
        %v3392 = vsel %vm1009, %v3208, 0
        %v3395 = vsel %vm1009, %v3209, 0
        %v3398 = vsel %vm1009, %v3210, 0
        %v3401 = vsel %vm1009, %v3211, 0
        %v3404 = vsel %vm1009, %v3212, 0
        %v3407 = vsel %vm1009, %v3213, 0
        %v3410 = vsel %vm1009, %v3214, 0
        %v3413 = vsel %vm1009, %v3215, 0
        %v3416 = vsel %vm1009, %v3216, 0
        %v3419 = vsel %vm1009, %v3217, 0
        %v3422 = vsel %vm1009, %v3218, 0
        %v3425 = vsel %vm1009, %v3219, 0
        %v3428 = vsel %vm1009, %v3220, 0
        %v3431 = vsel %vm1009, %v3221, 0
        %v3434 = vsel %vm1009, %v3222, 0
        %v3437 = vsel %vm1009, %v3223, 0
        %v3440 = vsel %vm1009, %v3224, 0
        %v3443 = vsel %vm1009, %v3225, 0
        %v3446 = vsel %vm1009, %v3226, 0
        %v3449 = vsel %vm1009, %v3227, 0
        %v3452 = vsel %vm1009, %v3228, 0
        %v3455 = vsel %vm1009, %v3229, 0
        %v3458 = vsel %vm1009, %v3230, 0
        %v3461 = vsel %vm1009, %v3231, 0
        %v3464 = vsel %vm1009, %v3232, 0
        %v3467 = vsel %vm1009, %v3233, 0
        %v3470 = vsel %vm1009, %v3234, 0
        %v3473 = vsel %vm1009, %v3235, 0
        %v3476 = vsel %vm1009, %v3236, 0
        %v3479 = vsel %vm1009, %v3237, 0
        %v3482 = vsel %vm1009, %v3238, 0
        %v3485 = vsel %vm1009, %v3239, 0
        %v3488 = vsel %vm1009, %v3240, 0
        %v3491 = vsel %vm1009, %v3241, 0
        %v3494 = vsel %vm1009, %v3242, 0
        %v3497 = vsel %vm1009, %v3243, 0
        %v3500 = vsel %vm1009, %v3244, 0
        %v3503 = vsel %vm1009, %v3245, 0
        %v3506 = vsel %vm1009, %v3246, 0
        %v3509 = vsel %vm1009, %v3247, 0
        %v3512 = vsel %vm1009, %v3248, 0
        %v3515 = vsel %vm1009, %v3249, 0
        %v3518 = vsel %vm1009, %v3250, 0
        %v3521 = vsel %vm1009, %v3251, 0
        %v3524 = vsel %vm1009, %v3252, 0
        %v3527 = vsel %vm1009, %v3253, 0
        %v3530 = vsel %vm1009, %v3254, 0
        %v3533 = vsel %vm1009, %v3255, 0
        %v3536 = vsel %vm1009, %v3256, 0
        %v3539 = vsel %vm1009, %v3257, 0
        %v3542 = vsel %vm1009, %v3258, 0
        %v3545 = vsel %vm1009, %v3259, 0
        %v3548 = vsel %vm1009, %v3260, 0
        %v3551 = vsel %vm1009, %v3261, 0
        %v3554 = vsel %vm1009, %v3262, 0
        %v3557 = vsel %vm1009, %v3263, 0
        %v3560 = vsel %vm1009, %v3264, 0
        %v3563 = vsel %vm1009, %v3265, 0
        %v3566 = vsel %vm1009, %v3266, 0
        %v3569 = vsel %vm1009, %v3267, 0
        %v3572 = vsel %vm1009, %v3268, 0
        %v3575 = vsel %vm1009, %v3269, 0
        %v3578 = vsel %vm1009, %v3270, 0
        %v3581 = vsel %vm1009, %v3271, 0
        %v3584 = vsel %vm1009, %v3272, 0
        %v3587 = vsel %vm1009, %v3273, 0
        %v3590 = vsel %vm1009, %v3274, 0
        %v3593 = vsel %vm1009, %v3275, 0
        %v3596 = vsel %vm1009, %v3276, 0
        %v3599 = vsel %vm1009, %v3277, 0
        %v3602 = vsel %vm1009, %v3278, 0
        %v3605 = vsel %vm1009, %v3279, 0
        %v3608 = vsel %vm1009, %v3280, 0
        %v3611 = vsel %vm1009, %v3281, 0
        %v3614 = vsel %vm1009, %v3282, 0
        %v3617 = vsel %vm1009, %v3283, 0
        %v3620 = vsel %vm1009, %v3284, 0
        %v3623 = vsel %vm1009, %v3285, 0
        %v3626 = vsel %vm1009, %v3286, 0
        %v3629 = vsel %vm1009, %v3287, 0
        %v3632 = vsel %vm1009, %v3288, 0
        %v3635 = vsel %vm1009, %v3289, 0
        %v3638 = vsel %vm1009, %v3290, 0
        %v3641 = vsel %vm1009, %v3291, 0
        %v3644 = vsel %vm1009, %v3292, 0
        %v3647 = vsel %vm1009, %v3293, 0
        %v3650 = vsel %vm1009, %v3294, 0
        %v3653 = vsel %vm1009, %v3295, 0
        %v3656 = vsel %vm1009, %v3296, 0
        %v3659 = vsel %vm1009, %v3297, 0
        %v3662 = vsel %vm1009, %v3298, 0
        %v3665 = vsel %vm1009, %v3299, 0
        %v3668 = vsel %vm1009, %v3300, 0
        %v3671 = vsel %vm1009, %v3301, 0
        %v3674 = vsel %vm1009, %v3302, 0
        %v3677 = vsel %vm1009, %v3303, 0
        %v3680 = vsel %vm1009, %v3304, 0
        %v3683 = vsel %vm1009, %v3305, 0
        %v3686 = vsel %vm1009, %v3306, 0
        %v3689 = vsel %vm1009, %v3307, 0
        %v3692 = vsel %vm1009, %v3308, 0
        %v3695 = vsel %vm1009, %v3309, 0
        %3697 = vmatprep.subr.bf16.mxu0 0
        %3698 = vmatpush1.bf16.xpose.msra.mxu0 %v3314
        %3699 = vmatprep.subr.bf16.mxu0 0
        %3700 = vmatpush1.bf16.xpose.msra.mxu0 %v3317
        %3701 = vmatprep.subr.bf16.mxu0 0
        %3702 = vmatpush1.bf16.xpose.msra.mxu0 %v3320
        %3703 = vmatprep.subr.bf16.mxu0 0
        %3704 = vmatpush1.bf16.xpose.msra.mxu0 %v3323
        %3705 = vmatprep.subr.bf16.mxu0 0
        %3706 = vmatpush1.bf16.xpose.msra.mxu0 %v3326
        %3707 = vmatprep.subr.bf16.mxu0 0
        %3708 = vmatpush1.bf16.xpose.msra.mxu0 %v3329
        %3709 = vmatprep.subr.bf16.mxu0 0
        %3710 = vmatpush1.bf16.xpose.msra.mxu0 %v3332
        %3711 = vmatprep.subr.bf16.mxu0 0
        %3712 = vmatpush1.bf16.xpose.msra.mxu0 %v3335
        %3713 = vmatprep.subr.bf16.mxu0 0
        %3714 = vmatpush1.bf16.xpose.msra.mxu0 %v3338
        %3715 = vmatprep.subr.bf16.mxu0 0
        %3716 = vmatpush1.bf16.xpose.msra.mxu0 %v3341
        %3717 = vmatprep.subr.bf16.mxu0 0
        %3718 = vmatpush1.bf16.xpose.msra.mxu0 %v3344
        %3719 = vmatprep.subr.bf16.mxu0 0
        %3720 = vmatpush1.bf16.xpose.msra.mxu0 %v3347
        %3721 = vmatprep.subr.bf16.mxu0 0
        %3722 = vmatpush1.bf16.xpose.msra.mxu0 %v3350
        %3723 = vmatprep.subr.bf16.mxu0 0
        %3724 = vmatpush1.bf16.xpose.msra.mxu0 %v3353
        %3725 = vmatprep.subr.bf16.mxu0 0
        %3726 = vmatpush1.bf16.xpose.msra.mxu0 %v3356
        %3727 = vmatprep.subr.bf16.mxu0 0
        %3728 = vmatpush1.bf16.xpose.msra.mxu0 %v3359
        %3729 = vmatprep.mubr.bf16.mxu0 0
        %3730 = vmatmul.mubr.bf16.gmra.mrb[0].mxu0 %v3311
        %v3731 = vpop.f32.mrb[0].mxu0
        %v3732 = vadd.f32 %v2593, %v3731
        %v3733 = vpop.f32.mrb[0].mxu0
        %v3734 = vadd.f32 %v2597, %v3733
        %v3735 = vpop.f32.mrb[0].mxu0
        %v3736 = vpop.f32.mrb[0].mxu0
        %3737 = vdwg.mxu0
        %3738 = vmatprep.subr.bf16.mxu0 0
        %3739 = vmatpush1.bf16.xpose.msra.mxu0 %v3362
        %3740 = vmatprep.subr.bf16.mxu0 0
        %3741 = vmatpush1.bf16.xpose.msra.mxu0 %v3365
        %3742 = vmatprep.subr.bf16.mxu0 0
        %3743 = vmatpush1.bf16.xpose.msra.mxu0 %v3368
        %3744 = vmatprep.subr.bf16.mxu0 0
        %3745 = vmatpush1.bf16.xpose.msra.mxu0 %v3371
        %3746 = vmatprep.subr.bf16.mxu0 0
        %3747 = vmatpush1.bf16.xpose.msra.mxu0 %v3374
        %3748 = vmatprep.subr.bf16.mxu0 0
        %3749 = vmatpush1.bf16.xpose.msra.mxu0 %v3377
        %3750 = vmatprep.subr.bf16.mxu0 0
        %3751 = vmatpush1.bf16.xpose.msra.mxu0 %v3380
        %3752 = vmatprep.subr.bf16.mxu0 0
        %3753 = vmatpush1.bf16.xpose.msra.mxu0 %v3383
        %3754 = vmatprep.subr.bf16.mxu0 0
        %3755 = vmatpush1.bf16.xpose.msra.mxu0 %v3386
        %3756 = vmatprep.subr.bf16.mxu0 0
        %3757 = vmatpush1.bf16.xpose.msra.mxu0 %v3389
        %3758 = vmatprep.subr.bf16.mxu0 0
        %3759 = vmatpush1.bf16.xpose.msra.mxu0 %v3392
        %3760 = vmatprep.subr.bf16.mxu0 0
        %3761 = vmatpush1.bf16.xpose.msra.mxu0 %v3395
        %3762 = vmatprep.subr.bf16.mxu0 0
        %3763 = vmatpush1.bf16.xpose.msra.mxu0 %v3398
        %3764 = vmatprep.subr.bf16.mxu0 0
        %3765 = vmatpush1.bf16.xpose.msra.mxu0 %v3401
        %3766 = vmatprep.subr.bf16.mxu0 0
        %3767 = vmatpush1.bf16.xpose.msra.mxu0 %v3404
        %3768 = vmatprep.subr.bf16.mxu0 0
        %3769 = vmatpush1.bf16.xpose.msra.mxu0 %v3407
        %3770 = vmatprep.mubr.bf16.mxu0 0
        %3771 = vmatmul.mubr.bf16.gmra.mrb[0].mxu0 %v3311
        %v3772 = vpop.f32.mrb[0].mxu0
        %v3773 = vadd.f32 %v2601, %v3772
        %v3774 = vpop.f32.mrb[0].mxu0
        %v3775 = vadd.f32 %v2605, %v3774
        %v3776 = vpop.f32.mrb[0].mxu0
        %v3777 = vpop.f32.mrb[0].mxu0
        %3778 = vdwg.mxu0
        %3779 = vmatprep.subr.bf16.mxu0 0
        %3780 = vmatpush1.bf16.xpose.msra.mxu0 %v3410
        %3781 = vmatprep.subr.bf16.mxu0 0
        %3782 = vmatpush1.bf16.xpose.msra.mxu0 %v3413
        %3783 = vmatprep.subr.bf16.mxu0 0
        %3784 = vmatpush1.bf16.xpose.msra.mxu0 %v3416
        %3785 = vmatprep.subr.bf16.mxu0 0
        %3786 = vmatpush1.bf16.xpose.msra.mxu0 %v3419
        %3787 = vmatprep.subr.bf16.mxu0 0
        %3788 = vmatpush1.bf16.xpose.msra.mxu0 %v3422
        %3789 = vmatprep.subr.bf16.mxu0 0
        %3790 = vmatpush1.bf16.xpose.msra.mxu0 %v3425
        %3791 = vmatprep.subr.bf16.mxu0 0
        %3792 = vmatpush1.bf16.xpose.msra.mxu0 %v3428
        %3793 = vmatprep.subr.bf16.mxu0 0
        %3794 = vmatpush1.bf16.xpose.msra.mxu0 %v3431
        %3795 = vmatprep.subr.bf16.mxu0 0
        %3796 = vmatpush1.bf16.xpose.msra.mxu0 %v3434
        %3797 = vmatprep.subr.bf16.mxu0 0
        %3798 = vmatpush1.bf16.xpose.msra.mxu0 %v3437
        %3799 = vmatprep.subr.bf16.mxu0 0
        %3800 = vmatpush1.bf16.xpose.msra.mxu0 %v3440
        %3801 = vmatprep.subr.bf16.mxu0 0
        %3802 = vmatpush1.bf16.xpose.msra.mxu0 %v3443
        %3803 = vmatprep.subr.bf16.mxu0 0
        %3804 = vmatpush1.bf16.xpose.msra.mxu0 %v3446
        %3805 = vmatprep.subr.bf16.mxu0 0
        %3806 = vmatpush1.bf16.xpose.msra.mxu0 %v3449
        %3807 = vmatprep.subr.bf16.mxu0 0
        %3808 = vmatpush1.bf16.xpose.msra.mxu0 %v3452
        %3809 = vmatprep.subr.bf16.mxu0 0
        %3810 = vmatpush1.bf16.xpose.msra.mxu0 %v3455
        %3811 = vmatprep.mubr.bf16.mxu0 0
        %3812 = vmatmul.mubr.bf16.gmra.mrb[0].mxu0 %v3311
        %v3813 = vpop.f32.mrb[0].mxu0
        %v3814 = vadd.f32 %v2609, %v3813
        %v3815 = vpop.f32.mrb[0].mxu0
        %v3816 = vadd.f32 %v2613, %v3815
        %v3817 = vpop.f32.mrb[0].mxu0
        %v3818 = vpop.f32.mrb[0].mxu0
        %3819 = vdwg.mxu0
        %3820 = vmatprep.subr.bf16.mxu0 0
        %3821 = vmatpush1.bf16.xpose.msra.mxu0 %v3458
        %3822 = vmatprep.subr.bf16.mxu0 0
        %3823 = vmatpush1.bf16.xpose.msra.mxu0 %v3461
        %3824 = vmatprep.subr.bf16.mxu0 0
        %3825 = vmatpush1.bf16.xpose.msra.mxu0 %v3464
        %3826 = vmatprep.subr.bf16.mxu0 0
        %3827 = vmatpush1.bf16.xpose.msra.mxu0 %v3467
        %3828 = vmatprep.subr.bf16.mxu0 0
        %3829 = vmatpush1.bf16.xpose.msra.mxu0 %v3470
        %3830 = vmatprep.subr.bf16.mxu0 0
        %3831 = vmatpush1.bf16.xpose.msra.mxu0 %v3473
        %3832 = vmatprep.subr.bf16.mxu0 0
        %3833 = vmatpush1.bf16.xpose.msra.mxu0 %v3476
        %3834 = vmatprep.subr.bf16.mxu0 0
        %3835 = vmatpush1.bf16.xpose.msra.mxu0 %v3479
        %3836 = vmatprep.subr.bf16.mxu0 0
        %3837 = vmatpush1.bf16.xpose.msra.mxu0 %v3482
        %3838 = vmatprep.subr.bf16.mxu0 0
        %3839 = vmatpush1.bf16.xpose.msra.mxu0 %v3485
        %3840 = vmatprep.subr.bf16.mxu0 0
        %3841 = vmatpush1.bf16.xpose.msra.mxu0 %v3488
        %3842 = vmatprep.subr.bf16.mxu0 0
        %3843 = vmatpush1.bf16.xpose.msra.mxu0 %v3491
        %3844 = vmatprep.subr.bf16.mxu0 0
        %3845 = vmatpush1.bf16.xpose.msra.mxu0 %v3494
        %3846 = vmatprep.subr.bf16.mxu0 0
        %3847 = vmatpush1.bf16.xpose.msra.mxu0 %v3497
        %3848 = vmatprep.subr.bf16.mxu0 0
        %3849 = vmatpush1.bf16.xpose.msra.mxu0 %v3500
        %3850 = vmatprep.subr.bf16.mxu0 0
        %3851 = vmatpush1.bf16.xpose.msra.mxu0 %v3503
        %3852 = vmatprep.mubr.bf16.mxu0 0
        %3853 = vmatmul.mubr.bf16.gmra.mrb[0].mxu0 %v3311
        %v3854 = vpop.f32.mrb[0].mxu0
        %v3855 = vadd.f32 %v2617, %v3854
        %v3856 = vpop.f32.mrb[0].mxu0
        %v3857 = vadd.f32 %v2621, %v3856
        %v3858 = vpop.f32.mrb[0].mxu0
        %v3859 = vpop.f32.mrb[0].mxu0
        %3860 = vdwg.mxu0
        %3861 = vmatprep.subr.bf16.mxu0 0
        %3862 = vmatpush1.bf16.xpose.msra.mxu0 %v3506
        %3863 = vmatprep.subr.bf16.mxu0 0
        %3864 = vmatpush1.bf16.xpose.msra.mxu0 %v3509
        %3865 = vmatprep.subr.bf16.mxu0 0
        %3866 = vmatpush1.bf16.xpose.msra.mxu0 %v3512
        %3867 = vmatprep.subr.bf16.mxu0 0
        %3868 = vmatpush1.bf16.xpose.msra.mxu0 %v3515
        %3869 = vmatprep.subr.bf16.mxu0 0
        %3870 = vmatpush1.bf16.xpose.msra.mxu0 %v3518
        %3871 = vmatprep.subr.bf16.mxu0 0
        %3872 = vmatpush1.bf16.xpose.msra.mxu0 %v3521
        %3873 = vmatprep.subr.bf16.mxu0 0
        %3874 = vmatpush1.bf16.xpose.msra.mxu0 %v3524
        %3875 = vmatprep.subr.bf16.mxu0 0
        %3876 = vmatpush1.bf16.xpose.msra.mxu0 %v3527
        %3877 = vmatprep.subr.bf16.mxu0 0
        %3878 = vmatpush1.bf16.xpose.msra.mxu0 %v3530
        %3879 = vmatprep.subr.bf16.mxu0 0
        %3880 = vmatpush1.bf16.xpose.msra.mxu0 %v3533
        %3881 = vmatprep.subr.bf16.mxu0 0
        %3882 = vmatpush1.bf16.xpose.msra.mxu0 %v3536
        %3883 = vmatprep.subr.bf16.mxu0 0
        %3884 = vmatpush1.bf16.xpose.msra.mxu0 %v3539
        %3885 = vmatprep.subr.bf16.mxu0 0
        %3886 = vmatpush1.bf16.xpose.msra.mxu0 %v3542
        %3887 = vmatprep.subr.bf16.mxu0 0
        %3888 = vmatpush1.bf16.xpose.msra.mxu0 %v3545
        %3889 = vmatprep.subr.bf16.mxu0 0
        %3890 = vmatpush1.bf16.xpose.msra.mxu0 %v3548
        %3891 = vmatprep.subr.bf16.mxu0 0
        %3892 = vmatpush1.bf16.xpose.msra.mxu0 %v3551
        %3893 = vmatprep.mubr.bf16.mxu0 0
        %3894 = vmatmul.mubr.bf16.gmra.mrb[0].mxu0 %v3311
        %v3895 = vpop.f32.mrb[0].mxu0
        %v3896 = vadd.f32 %v2625, %v3895
        %v3897 = vpop.f32.mrb[0].mxu0
        %v3898 = vadd.f32 %v2629, %v3897
        %v3899 = vpop.f32.mrb[0].mxu0
        %v3900 = vpop.f32.mrb[0].mxu0
        %3901 = vdwg.mxu0
        %3902 = vmatprep.subr.bf16.mxu0 0
        %3903 = vmatpush1.bf16.xpose.msra.mxu0 %v3554
        %3904 = vmatprep.subr.bf16.mxu0 0
        %3905 = vmatpush1.bf16.xpose.msra.mxu0 %v3557
        %3906 = vmatprep.subr.bf16.mxu0 0
        %3907 = vmatpush1.bf16.xpose.msra.mxu0 %v3560
        %3908 = vmatprep.subr.bf16.mxu0 0
        %3909 = vmatpush1.bf16.xpose.msra.mxu0 %v3563
        %3910 = vmatprep.subr.bf16.mxu0 0
        %3911 = vmatpush1.bf16.xpose.msra.mxu0 %v3566
        %3912 = vmatprep.subr.bf16.mxu0 0
        %3913 = vmatpush1.bf16.xpose.msra.mxu0 %v3569
        %3914 = vmatprep.subr.bf16.mxu0 0
        %3915 = vmatpush1.bf16.xpose.msra.mxu0 %v3572
        %3916 = vmatprep.subr.bf16.mxu0 0
        %3917 = vmatpush1.bf16.xpose.msra.mxu0 %v3575
        %3918 = vmatprep.subr.bf16.mxu0 0
        %3919 = vmatpush1.bf16.xpose.msra.mxu0 %v3578
        %3920 = vmatprep.subr.bf16.mxu0 0
        %3921 = vmatpush1.bf16.xpose.msra.mxu0 %v3581
        %3922 = vmatprep.subr.bf16.mxu0 0
        %3923 = vmatpush1.bf16.xpose.msra.mxu0 %v3584
        %3924 = vmatprep.subr.bf16.mxu0 0
        %3925 = vmatpush1.bf16.xpose.msra.mxu0 %v3587
        %3926 = vmatprep.subr.bf16.mxu0 0
        %3927 = vmatpush1.bf16.xpose.msra.mxu0 %v3590
        %3928 = vmatprep.subr.bf16.mxu0 0
        %3929 = vmatpush1.bf16.xpose.msra.mxu0 %v3593
        %3930 = vmatprep.subr.bf16.mxu0 0
        %3931 = vmatpush1.bf16.xpose.msra.mxu0 %v3596
        %3932 = vmatprep.subr.bf16.mxu0 0
        %3933 = vmatpush1.bf16.xpose.msra.mxu0 %v3599
        %3934 = vmatprep.mubr.bf16.mxu0 0
        %3935 = vmatmul.mubr.bf16.gmra.mrb[0].mxu0 %v3311
        %v3936 = vpop.f32.mrb[0].mxu0
        %v3937 = vadd.f32 %v2633, %v3936
        %v3938 = vpop.f32.mrb[0].mxu0
        %v3939 = vadd.f32 %v2637, %v3938
        %v3940 = vpop.f32.mrb[0].mxu0
        %v3941 = vpop.f32.mrb[0].mxu0
        %3942 = vdwg.mxu0
        %3943 = vmatprep.subr.bf16.mxu0 0
        %3944 = vmatpush1.bf16.xpose.msra.mxu0 %v3602
        %3945 = vmatprep.subr.bf16.mxu0 0
        %3946 = vmatpush1.bf16.xpose.msra.mxu0 %v3605
        %3947 = vmatprep.subr.bf16.mxu0 0
        %3948 = vmatpush1.bf16.xpose.msra.mxu0 %v3608
        %3949 = vmatprep.subr.bf16.mxu0 0
        %3950 = vmatpush1.bf16.xpose.msra.mxu0 %v3611
        %3951 = vmatprep.subr.bf16.mxu0 0
        %3952 = vmatpush1.bf16.xpose.msra.mxu0 %v3614
        %3953 = vmatprep.subr.bf16.mxu0 0
        %3954 = vmatpush1.bf16.xpose.msra.mxu0 %v3617
        %3955 = vmatprep.subr.bf16.mxu0 0
        %3956 = vmatpush1.bf16.xpose.msra.mxu0 %v3620
        %3957 = vmatprep.subr.bf16.mxu0 0
        %3958 = vmatpush1.bf16.xpose.msra.mxu0 %v3623
        %3959 = vmatprep.subr.bf16.mxu0 0
        %3960 = vmatpush1.bf16.xpose.msra.mxu0 %v3626
        %3961 = vmatprep.subr.bf16.mxu0 0
        %3962 = vmatpush1.bf16.xpose.msra.mxu0 %v3629
        %3963 = vmatprep.subr.bf16.mxu0 0
        %3964 = vmatpush1.bf16.xpose.msra.mxu0 %v3632
        %3965 = vmatprep.subr.bf16.mxu0 0
        %3966 = vmatpush1.bf16.xpose.msra.mxu0 %v3635
        %3967 = vmatprep.subr.bf16.mxu0 0
        %3968 = vmatpush1.bf16.xpose.msra.mxu0 %v3638
        %3969 = vmatprep.subr.bf16.mxu0 0
        %3970 = vmatpush1.bf16.xpose.msra.mxu0 %v3641
        %3971 = vmatprep.subr.bf16.mxu0 0
        %3972 = vmatpush1.bf16.xpose.msra.mxu0 %v3644
        %3973 = vmatprep.subr.bf16.mxu0 0
        %3974 = vmatpush1.bf16.xpose.msra.mxu0 %v3647
        %3975 = vmatprep.mubr.bf16.mxu0 0
        %3976 = vmatmul.mubr.bf16.gmra.mrb[0].mxu0 %v3311
        %v3977 = vpop.f32.mrb[0].mxu0
        %v3978 = vadd.f32 %v2641, %v3977
        %v3979 = vpop.f32.mrb[0].mxu0
        %v3980 = vadd.f32 %v2645, %v3979
        %v3981 = vpop.f32.mrb[0].mxu0
        %v3982 = vpop.f32.mrb[0].mxu0
        %3983 = vdwg.mxu0
        %3984 = vmatprep.subr.bf16.mxu0 0
        %3985 = vmatpush1.bf16.xpose.msra.mxu0 %v3650
        %3986 = vmatprep.subr.bf16.mxu0 0
        %3987 = vmatpush1.bf16.xpose.msra.mxu0 %v3653
        %3988 = vmatprep.subr.bf16.mxu0 0
        %3989 = vmatpush1.bf16.xpose.msra.mxu0 %v3656
        %3990 = vmatprep.subr.bf16.mxu0 0
        %3991 = vmatpush1.bf16.xpose.msra.mxu0 %v3659
        %3992 = vmatprep.subr.bf16.mxu0 0
        %3993 = vmatpush1.bf16.xpose.msra.mxu0 %v3662
        %3994 = vmatprep.subr.bf16.mxu0 0
        %3995 = vmatpush1.bf16.xpose.msra.mxu0 %v3665
        %3996 = vmatprep.subr.bf16.mxu0 0
        %3997 = vmatpush1.bf16.xpose.msra.mxu0 %v3668
        %3998 = vmatprep.subr.bf16.mxu0 0
        %3999 = vmatpush1.bf16.xpose.msra.mxu0 %v3671
        %4000 = vmatprep.subr.bf16.mxu0 0
        %4001 = vmatpush1.bf16.xpose.msra.mxu0 %v3674
        %4002 = vmatprep.subr.bf16.mxu0 0
        %4003 = vmatpush1.bf16.xpose.msra.mxu0 %v3677
        %4004 = vmatprep.subr.bf16.mxu0 0
        %4005 = vmatpush1.bf16.xpose.msra.mxu0 %v3680
        %4006 = vmatprep.subr.bf16.mxu0 0
        %4007 = vmatpush1.bf16.xpose.msra.mxu0 %v3683
        %4008 = vmatprep.subr.bf16.mxu0 0
        %4009 = vmatpush1.bf16.xpose.msra.mxu0 %v3686
        %4010 = vmatprep.subr.bf16.mxu0 0
        %4011 = vmatpush1.bf16.xpose.msra.mxu0 %v3689
        %4012 = vmatprep.subr.bf16.mxu0 0
        %4013 = vmatpush1.bf16.xpose.msra.mxu0 %v3692
        %4014 = vmatprep.subr.bf16.mxu0 0
        %4015 = vmatpush1.bf16.xpose.msra.mxu0 %v3695
        %4016 = vmatprep.mubr.bf16.mxu0 0
        %4017 = vmatmul.mubr.bf16.gmra.mrb[0].mxu0 %v3311
        %v4018 = vpop.f32.mrb[0].mxu0
        %v4019 = vadd.f32 %v2649, %v4018
        %v4020 = vpop.f32.mrb[0].mxu0
        %v4021 = vadd.f32 %v2653, %v4020
        %v4022 = vpop.f32.mrb[0].mxu0
        %v4023 = vpop.f32.mrb[0].mxu0
        %4024 = vdwg.mxu0
        %v4025 = vmax.f32 %v3732, 0.0
        %v4026 = vmax.f32 %v3734, 0.0
        %v4027 = vmax.f32 %v3773, 0.0
        %v4028 = vmax.f32 %v3775, 0.0
        %v4029 = vmax.f32 %v3814, 0.0
        %v4030 = vmax.f32 %v3816, 0.0
        %v4031 = vmax.f32 %v3855, 0.0
        %v4032 = vmax.f32 %v3857, 0.0
        %v4033 = vmax.f32 %v3896, 0.0
        %v4034 = vmax.f32 %v3898, 0.0
        %v4035 = vmax.f32 %v3937, 0.0
        %v4036 = vmax.f32 %v3939, 0.0
        %v4037 = vmax.f32 %v3978, 0.0
        %v4038 = vmax.f32 %v3980, 0.0
        %v4039 = vmax.f32 %v4019, 0.0
        %v4040 = vmax.f32 %v4021, 0.0
        %v4041 = vpack.c.bf16 %v4025, %v4025
        %v4042 = vpack.c.bf16 %v4026, %v4026
        %v4043 = vpack.c.bf16 %v4027, %v4027
        %v4044 = vpack.c.bf16 %v4028, %v4028
        %v4045 = vpack.c.bf16 %v4029, %v4029
        %v4046 = vpack.c.bf16 %v4030, %v4030
        %v4047 = vpack.c.bf16 %v4031, %v4031
        %v4048 = vpack.c.bf16 %v4032, %v4032
        %v4049 = vpack.c.bf16 %v4033, %v4033
        %v4050 = vpack.c.bf16 %v4034, %v4034
        %v4051 = vpack.c.bf16 %v4035, %v4035
        %v4052 = vpack.c.bf16 %v4036, %v4036
        %v4053 = vpack.c.bf16 %v4037, %v4037
        %v4054 = vpack.c.bf16 %v4038, %v4038
        %v4055 = vpack.c.bf16 %v4039, %v4039
        %v4056 = vpack.c.bf16 %v4040, %v4040
        %v4057 = vld [vmem:[%s885] sm:$0xff]
        %v4058 = vld [vmem:[%s885 + $0x8] sm:$0xff]
        %v4059 = vld [vmem:[%s885 + $0x10] sm:$0xff]
        %v4060 = vld [vmem:[%s885 + $0x18] sm:$0xff]
        %v4061 = vld [vmem:[%s885 + $0x20] sm:$0xff]
        %v4062 = vld [vmem:[%s885 + $0x28] sm:$0xff]
        %v4063 = vld [vmem:[%s885 + $0x30] sm:$0xff]
        %v4064 = vld [vmem:[%s885 + $0x38] sm:$0xff]
        %v4065 = vld [vmem:[%s885 + $0x40] sm:$0xff]
        %v4066 = vld [vmem:[%s885 + $0x48] sm:$0xff]
        %v4067 = vld [vmem:[%s885 + $0x50] sm:$0xff]
        %v4068 = vld [vmem:[%s885 + $0x58] sm:$0xff]
        %v4069 = vld [vmem:[%s885 + $0x60] sm:$0xff]
        %v4070 = vld [vmem:[%s885 + $0x68] sm:$0xff]
        %v4071 = vld [vmem:[%s885 + $0x70] sm:$0xff]
        %v4072 = vld [vmem:[%s885 + $0x78] sm:$0xff]
        %v4073 = vld [vmem:[%s885 + $0x80] sm:$0xff]
        %v4074 = vld [vmem:[%s885 + $0x88] sm:$0xff]
        %v4075 = vld [vmem:[%s885 + $0x90] sm:$0xff]
        %v4076 = vld [vmem:[%s885 + $0x98] sm:$0xff]
        %v4077 = vld [vmem:[%s885 + $0xa0] sm:$0xff]
        %v4078 = vld [vmem:[%s885 + $0xa8] sm:$0xff]
        %v4079 = vld [vmem:[%s885 + $0xb0] sm:$0xff]
        %v4080 = vld [vmem:[%s885 + $0xb8] sm:$0xff]
        %v4081 = vld [vmem:[%s885 + $0xc0] sm:$0xff]
        %v4082 = vld [vmem:[%s885 + $0xc8] sm:$0xff]
        %v4083 = vld [vmem:[%s885 + $0xd0] sm:$0xff]
        %v4084 = vld [vmem:[%s885 + $0xd8] sm:$0xff]
        %v4085 = vld [vmem:[%s885 + $0xe0] sm:$0xff]
        %v4086 = vld [vmem:[%s885 + $0xe8] sm:$0xff]
        %v4087 = vld [vmem:[%s885 + $0xf0] sm:$0xff]
        %v4088 = vld [vmem:[%s885 + $0xf8] sm:$0xff]
        %v4089 = vld [vmem:[%s888] sm:$0x1]
        %v4091 = vlaneseq
        %v4092 = vshrl.u32 %v4091, 7
        %v4093 = vsub.s32 0, %v4092
        %v4094 = vrot.slane %v4089, %v4093
        %v4128 = vunpack.c.l.b16 %v4057
        %v4129 = vunpack.c.h.b16 %v4057
        %v4130 = vunpack.c.l.b16 %v4058
        %v4131 = vunpack.c.h.b16 %v4058
        %v4132 = vunpack.c.l.b16 %v4059
        %v4133 = vunpack.c.h.b16 %v4059
        %v4134 = vunpack.c.l.b16 %v4060
        %v4135 = vunpack.c.h.b16 %v4060
        %v4136 = vunpack.c.l.b16 %v4061
        %v4137 = vunpack.c.h.b16 %v4061
        %v4138 = vunpack.c.l.b16 %v4062
        %v4139 = vunpack.c.h.b16 %v4062
        %v4140 = vunpack.c.l.b16 %v4063
        %v4141 = vunpack.c.h.b16 %v4063
        %v4142 = vunpack.c.l.b16 %v4064
        %v4143 = vunpack.c.h.b16 %v4064
        %v4144 = vunpack.c.l.b16 %v4065
        %v4145 = vunpack.c.h.b16 %v4065
        %v4146 = vunpack.c.l.b16 %v4066
        %v4147 = vunpack.c.h.b16 %v4066
        %v4148 = vunpack.c.l.b16 %v4067
        %v4149 = vunpack.c.h.b16 %v4067
        %v4150 = vunpack.c.l.b16 %v4068
        %v4151 = vunpack.c.h.b16 %v4068
        %v4152 = vunpack.c.l.b16 %v4069
        %v4153 = vunpack.c.h.b16 %v4069
        %v4154 = vunpack.c.l.b16 %v4070
        %v4155 = vunpack.c.h.b16 %v4070
        %v4156 = vunpack.c.l.b16 %v4071
        %v4157 = vunpack.c.h.b16 %v4071
        %v4158 = vunpack.c.l.b16 %v4072
        %v4159 = vunpack.c.h.b16 %v4072
        %v4160 = vunpack.c.l.b16 %v4073
        %v4161 = vunpack.c.h.b16 %v4073
        %v4162 = vunpack.c.l.b16 %v4074
        %v4163 = vunpack.c.h.b16 %v4074
        %v4164 = vunpack.c.l.b16 %v4075
        %v4165 = vunpack.c.h.b16 %v4075
        %v4166 = vunpack.c.l.b16 %v4076
        %v4167 = vunpack.c.h.b16 %v4076
        %v4168 = vunpack.c.l.b16 %v4077
        %v4169 = vunpack.c.h.b16 %v4077
        %v4170 = vunpack.c.l.b16 %v4078
        %v4171 = vunpack.c.h.b16 %v4078
        %v4172 = vunpack.c.l.b16 %v4079
        %v4173 = vunpack.c.h.b16 %v4079
        %v4174 = vunpack.c.l.b16 %v4080
        %v4175 = vunpack.c.h.b16 %v4080
        %v4176 = vunpack.c.l.b16 %v4081
        %v4177 = vunpack.c.h.b16 %v4081
        %v4178 = vunpack.c.l.b16 %v4082
        %v4179 = vunpack.c.h.b16 %v4082
        %v4180 = vunpack.c.l.b16 %v4083
        %v4181 = vunpack.c.h.b16 %v4083
        %v4182 = vunpack.c.l.b16 %v4084
        %v4183 = vunpack.c.h.b16 %v4084
        %v4184 = vunpack.c.l.b16 %v4085
        %v4185 = vunpack.c.h.b16 %v4085
        %v4186 = vunpack.c.l.b16 %v4086
        %v4187 = vunpack.c.h.b16 %v4086
        %v4188 = vunpack.c.l.b16 %v4087
        %v4189 = vunpack.c.h.b16 %v4087
        %v4190 = vunpack.c.l.b16 %v4088
        %v4191 = vunpack.c.h.b16 %v4088
        %v4192 = vpack.c.b16 %v4144, %v4128
        %v4193 = vpack.c.b16 %v4145, %v4129
        %v4194 = vpack.c.b16 %v4146, %v4130
        %v4195 = vpack.c.b16 %v4147, %v4131
        %v4196 = vpack.c.b16 %v4148, %v4132
        %v4197 = vpack.c.b16 %v4149, %v4133
        %v4198 = vpack.c.b16 %v4150, %v4134
        %v4199 = vpack.c.b16 %v4151, %v4135
        %v4200 = vpack.c.b16 %v4152, %v4136
        %v4201 = vpack.c.b16 %v4153, %v4137
        %v4202 = vpack.c.b16 %v4154, %v4138
        %v4203 = vpack.c.b16 %v4155, %v4139
        %v4204 = vpack.c.b16 %v4156, %v4140
        %v4205 = vpack.c.b16 %v4157, %v4141
        %v4206 = vpack.c.b16 %v4158, %v4142
        %v4207 = vpack.c.b16 %v4159, %v4143
        %v4208 = vpack.c.b16 %v4176, %v4160
        %v4209 = vpack.c.b16 %v4177, %v4161
        %v4210 = vpack.c.b16 %v4178, %v4162
        %v4211 = vpack.c.b16 %v4179, %v4163
        %v4212 = vpack.c.b16 %v4180, %v4164
        %v4213 = vpack.c.b16 %v4181, %v4165
        %v4214 = vpack.c.b16 %v4182, %v4166
        %v4215 = vpack.c.b16 %v4183, %v4167
        %v4216 = vpack.c.b16 %v4184, %v4168
        %v4217 = vpack.c.b16 %v4185, %v4169
        %v4218 = vpack.c.b16 %v4186, %v4170
        %v4219 = vpack.c.b16 %v4187, %v4171
        %v4220 = vpack.c.b16 %v4188, %v4172
        %v4221 = vpack.c.b16 %v4189, %v4173
        %v4222 = vpack.c.b16 %v4190, %v4174
        %v4223 = vpack.c.b16 %v4191, %v4175
        %4256 = vmatprep.subr.bf16.mxu0 %v4193
        %4257 = vmatpush1.bf16.xpose.msra.mxu0 %v4192
        %4258 = vmatprep.subr.bf16.mxu0 %v4209
        %4259 = vmatpush1.bf16.xpose.msra.mxu0 %v4208
        %4260 = vmatprep.subr.bf16.mxu0 0
        %4261 = vmatpush1.bf16.xpose.msra.mxu0 0
        %4262 = vmatprep.subr.bf16.mxu0 0
        %4263 = vmatpush1.bf16.xpose.msra.mxu0 0
        %4264 = vmatprep.subr.bf16.mxu0 0
        %4265 = vmatpush1.bf16.xpose.msra.mxu0 0
        %4266 = vmatprep.subr.bf16.mxu0 0
        %4267 = vmatpush1.bf16.xpose.msra.mxu0 0
        %4268 = vmatprep.subr.bf16.mxu0 0
        %4269 = vmatpush1.bf16.xpose.msra.mxu0 0
        %4270 = vmatprep.subr.bf16.mxu0 0
        %4271 = vmatpush1.bf16.xpose.msra.mxu0 0
        %4272 = vmatprep.subr.bf16.mxu0 0
        %4273 = vmatpush1.bf16.xpose.msra.mxu0 0
        %4274 = vmatprep.subr.bf16.mxu0 0
        %4275 = vmatpush1.bf16.xpose.msra.mxu0 0
        %4276 = vmatprep.subr.bf16.mxu0 0
        %4277 = vmatpush1.bf16.xpose.msra.mxu0 0
        %4278 = vmatprep.subr.bf16.mxu0 0
        %4279 = vmatpush1.bf16.xpose.msra.mxu0 0
        %4280 = vmatprep.subr.bf16.mxu0 0
        %4281 = vmatpush1.bf16.xpose.msra.mxu0 0
        %4282 = vmatprep.subr.bf16.mxu0 0
        %4283 = vmatpush1.bf16.xpose.msra.mxu0 0
        %4284 = vmatprep.subr.bf16.mxu0 0
        %4285 = vmatpush1.bf16.xpose.msra.mxu0 0
        %4286 = vmatprep.subr.bf16.mxu0 0
        %4287 = vmatpush1.bf16.xpose.msra.mxu0 0
        %4288 = vmatprep.mubr.bf16.mxu0 %v4042
        %4289 = vmatmul.mubr.bf16.gmra.mrb[0].mxu0 %v4041
        %v4290 = vpop.f32.mrb[0].mxu0
        %v4291 = vadd.f32 %v4094, %v4290
        %v4292 = vpop.f32.mrb[0].mxu0
        %v4293 = vpop.f32.mrb[0].mxu0
        %v4294 = vpop.f32.mrb[0].mxu0
        %4295 = vdwg.mxu0
        %4296 = vmatprep.subr.bf16.mxu0 %v4195
        %4297 = vmatpush1.bf16.xpose.msra.mxu0 %v4194
        %4298 = vmatprep.subr.bf16.mxu0 %v4211
        %4299 = vmatpush1.bf16.xpose.msra.mxu0 %v4210
        %4300 = vmatprep.subr.bf16.mxu0 0
        %4301 = vmatpush1.bf16.xpose.msra.mxu0 0
        %4302 = vmatprep.subr.bf16.mxu0 0
        %4303 = vmatpush1.bf16.xpose.msra.mxu0 0
        %4304 = vmatprep.subr.bf16.mxu0 0
        %4305 = vmatpush1.bf16.xpose.msra.mxu0 0
        %4306 = vmatprep.subr.bf16.mxu0 0
        %4307 = vmatpush1.bf16.xpose.msra.mxu0 0
        %4308 = vmatprep.subr.bf16.mxu0 0
        %4309 = vmatpush1.bf16.xpose.msra.mxu0 0
        %4310 = vmatprep.subr.bf16.mxu0 0
        %4311 = vmatpush1.bf16.xpose.msra.mxu0 0
        %4312 = vmatprep.subr.bf16.mxu0 0
        %4313 = vmatpush1.bf16.xpose.msra.mxu0 0
        %4314 = vmatprep.subr.bf16.mxu0 0
        %4315 = vmatpush1.bf16.xpose.msra.mxu0 0
        %4316 = vmatprep.subr.bf16.mxu0 0
        %4317 = vmatpush1.bf16.xpose.msra.mxu0 0
        %4318 = vmatprep.subr.bf16.mxu0 0
        %4319 = vmatpush1.bf16.xpose.msra.mxu0 0
        %4320 = vmatprep.subr.bf16.mxu0 0
        %4321 = vmatpush1.bf16.xpose.msra.mxu0 0
        %4322 = vmatprep.subr.bf16.mxu0 0
        %4323 = vmatpush1.bf16.xpose.msra.mxu0 0
        %4324 = vmatprep.subr.bf16.mxu0 0
        %4325 = vmatpush1.bf16.xpose.msra.mxu0 0
        %4326 = vmatprep.subr.bf16.mxu0 0
        %4327 = vmatpush1.bf16.xpose.msra.mxu0 0
        %4328 = vmatprep.mubr.bf16.mxu0 %v4044
        %4329 = vmatmul.mubr.bf16.gmra.mrb[0].mxu0 %v4043
        %v4330 = vpop.f32.mrb[0].mxu0
        %v4331 = vadd.f32 %v4291, %v4330
        %v4332 = vpop.f32.mrb[0].mxu0
        %v4333 = vpop.f32.mrb[0].mxu0
        %v4334 = vpop.f32.mrb[0].mxu0
        %4335 = vdwg.mxu0
        %4336 = vmatprep.subr.bf16.mxu0 %v4197
        %4337 = vmatpush1.bf16.xpose.msra.mxu0 %v4196
        %4338 = vmatprep.subr.bf16.mxu0 %v4213
        %4339 = vmatpush1.bf16.xpose.msra.mxu0 %v4212
        %4340 = vmatprep.subr.bf16.mxu0 0
        %4341 = vmatpush1.bf16.xpose.msra.mxu0 0
        %4342 = vmatprep.subr.bf16.mxu0 0
        %4343 = vmatpush1.bf16.xpose.msra.mxu0 0
        %4344 = vmatprep.subr.bf16.mxu0 0
        %4345 = vmatpush1.bf16.xpose.msra.mxu0 0
        %4346 = vmatprep.subr.bf16.mxu0 0
        %4347 = vmatpush1.bf16.xpose.msra.mxu0 0
        %4348 = vmatprep.subr.bf16.mxu0 0
        %4349 = vmatpush1.bf16.xpose.msra.mxu0 0
        %4350 = vmatprep.subr.bf16.mxu0 0
        %4351 = vmatpush1.bf16.xpose.msra.mxu0 0
        %4352 = vmatprep.subr.bf16.mxu0 0
        %4353 = vmatpush1.bf16.xpose.msra.mxu0 0
        %4354 = vmatprep.subr.bf16.mxu0 0
        %4355 = vmatpush1.bf16.xpose.msra.mxu0 0
        %4356 = vmatprep.subr.bf16.mxu0 0
        %4357 = vmatpush1.bf16.xpose.msra.mxu0 0
        %4358 = vmatprep.subr.bf16.mxu0 0
        %4359 = vmatpush1.bf16.xpose.msra.mxu0 0
        %4360 = vmatprep.subr.bf16.mxu0 0
        %4361 = vmatpush1.bf16.xpose.msra.mxu0 0
        %4362 = vmatprep.subr.bf16.mxu0 0
        %4363 = vmatpush1.bf16.xpose.msra.mxu0 0
        %4364 = vmatprep.subr.bf16.mxu0 0
        %4365 = vmatpush1.bf16.xpose.msra.mxu0 0
        %4366 = vmatprep.subr.bf16.mxu0 0
        %4367 = vmatpush1.bf16.xpose.msra.mxu0 0
        %4368 = vmatprep.mubr.bf16.mxu0 %v4046
        %4369 = vmatmul.mubr.bf16.gmra.mrb[0].mxu0 %v4045
        %v4370 = vpop.f32.mrb[0].mxu0
        %v4371 = vadd.f32 %v4331, %v4370
        %v4372 = vpop.f32.mrb[0].mxu0
        %v4373 = vpop.f32.mrb[0].mxu0
        %v4374 = vpop.f32.mrb[0].mxu0
        %4375 = vdwg.mxu0
        %4376 = vmatprep.subr.bf16.mxu0 %v4199
        %4377 = vmatpush1.bf16.xpose.msra.mxu0 %v4198
        %4378 = vmatprep.subr.bf16.mxu0 %v4215
        %4379 = vmatpush1.bf16.xpose.msra.mxu0 %v4214
        %4380 = vmatprep.subr.bf16.mxu0 0
        %4381 = vmatpush1.bf16.xpose.msra.mxu0 0
        %4382 = vmatprep.subr.bf16.mxu0 0
        %4383 = vmatpush1.bf16.xpose.msra.mxu0 0
        %4384 = vmatprep.subr.bf16.mxu0 0
        %4385 = vmatpush1.bf16.xpose.msra.mxu0 0
        %4386 = vmatprep.subr.bf16.mxu0 0
        %4387 = vmatpush1.bf16.xpose.msra.mxu0 0
        %4388 = vmatprep.subr.bf16.mxu0 0
        %4389 = vmatpush1.bf16.xpose.msra.mxu0 0
        %4390 = vmatprep.subr.bf16.mxu0 0
        %4391 = vmatpush1.bf16.xpose.msra.mxu0 0
        %4392 = vmatprep.subr.bf16.mxu0 0
        %4393 = vmatpush1.bf16.xpose.msra.mxu0 0
        %4394 = vmatprep.subr.bf16.mxu0 0
        %4395 = vmatpush1.bf16.xpose.msra.mxu0 0
        %4396 = vmatprep.subr.bf16.mxu0 0
        %4397 = vmatpush1.bf16.xpose.msra.mxu0 0
        %4398 = vmatprep.subr.bf16.mxu0 0
        %4399 = vmatpush1.bf16.xpose.msra.mxu0 0
        %4400 = vmatprep.subr.bf16.mxu0 0
        %4401 = vmatpush1.bf16.xpose.msra.mxu0 0
        %4402 = vmatprep.subr.bf16.mxu0 0
        %4403 = vmatpush1.bf16.xpose.msra.mxu0 0
        %4404 = vmatprep.subr.bf16.mxu0 0
        %4405 = vmatpush1.bf16.xpose.msra.mxu0 0
        %4406 = vmatprep.subr.bf16.mxu0 0
        %4407 = vmatpush1.bf16.xpose.msra.mxu0 0
        %4408 = vmatprep.mubr.bf16.mxu0 %v4048
        %4409 = vmatmul.mubr.bf16.gmra.mrb[0].mxu0 %v4047
        %v4410 = vpop.f32.mrb[0].mxu0
        %v4411 = vadd.f32 %v4371, %v4410
        %v4412 = vpop.f32.mrb[0].mxu0
        %v4413 = vpop.f32.mrb[0].mxu0
        %v4414 = vpop.f32.mrb[0].mxu0
        %4415 = vdwg.mxu0
        %4416 = vmatprep.subr.bf16.mxu0 %v4201
        %4417 = vmatpush1.bf16.xpose.msra.mxu0 %v4200
        %4418 = vmatprep.subr.bf16.mxu0 %v4217
        %4419 = vmatpush1.bf16.xpose.msra.mxu0 %v4216
        %4420 = vmatprep.subr.bf16.mxu0 0
        %4421 = vmatpush1.bf16.xpose.msra.mxu0 0
        %4422 = vmatprep.subr.bf16.mxu0 0
        %4423 = vmatpush1.bf16.xpose.msra.mxu0 0
        %4424 = vmatprep.subr.bf16.mxu0 0
        %4425 = vmatpush1.bf16.xpose.msra.mxu0 0
        %4426 = vmatprep.subr.bf16.mxu0 0
        %4427 = vmatpush1.bf16.xpose.msra.mxu0 0
        %4428 = vmatprep.subr.bf16.mxu0 0
        %4429 = vmatpush1.bf16.xpose.msra.mxu0 0
        %4430 = vmatprep.subr.bf16.mxu0 0
        %4431 = vmatpush1.bf16.xpose.msra.mxu0 0
        %4432 = vmatprep.subr.bf16.mxu0 0
        %4433 = vmatpush1.bf16.xpose.msra.mxu0 0
        %4434 = vmatprep.subr.bf16.mxu0 0
        %4435 = vmatpush1.bf16.xpose.msra.mxu0 0
        %4436 = vmatprep.subr.bf16.mxu0 0
        %4437 = vmatpush1.bf16.xpose.msra.mxu0 0
        %4438 = vmatprep.subr.bf16.mxu0 0
        %4439 = vmatpush1.bf16.xpose.msra.mxu0 0
        %4440 = vmatprep.subr.bf16.mxu0 0
        %4441 = vmatpush1.bf16.xpose.msra.mxu0 0
        %4442 = vmatprep.subr.bf16.mxu0 0
        %4443 = vmatpush1.bf16.xpose.msra.mxu0 0
        %4444 = vmatprep.subr.bf16.mxu0 0
        %4445 = vmatpush1.bf16.xpose.msra.mxu0 0
        %4446 = vmatprep.subr.bf16.mxu0 0
        %4447 = vmatpush1.bf16.xpose.msra.mxu0 0
        %4448 = vmatprep.mubr.bf16.mxu0 %v4050
        %4449 = vmatmul.mubr.bf16.gmra.mrb[0].mxu0 %v4049
        %v4450 = vpop.f32.mrb[0].mxu0
        %v4451 = vadd.f32 %v4411, %v4450
        %v4452 = vpop.f32.mrb[0].mxu0
        %v4453 = vpop.f32.mrb[0].mxu0
        %v4454 = vpop.f32.mrb[0].mxu0
        %4455 = vdwg.mxu0
        %4456 = vmatprep.subr.bf16.mxu0 %v4203
        %4457 = vmatpush1.bf16.xpose.msra.mxu0 %v4202
        %4458 = vmatprep.subr.bf16.mxu0 %v4219
        %4459 = vmatpush1.bf16.xpose.msra.mxu0 %v4218
        %4460 = vmatprep.subr.bf16.mxu0 0
        %4461 = vmatpush1.bf16.xpose.msra.mxu0 0
        %4462 = vmatprep.subr.bf16.mxu0 0
        %4463 = vmatpush1.bf16.xpose.msra.mxu0 0
        %4464 = vmatprep.subr.bf16.mxu0 0
        %4465 = vmatpush1.bf16.xpose.msra.mxu0 0
        %4466 = vmatprep.subr.bf16.mxu0 0
        %4467 = vmatpush1.bf16.xpose.msra.mxu0 0
        %4468 = vmatprep.subr.bf16.mxu0 0
        %4469 = vmatpush1.bf16.xpose.msra.mxu0 0
        %4470 = vmatprep.subr.bf16.mxu0 0
        %4471 = vmatpush1.bf16.xpose.msra.mxu0 0
        %4472 = vmatprep.subr.bf16.mxu0 0
        %4473 = vmatpush1.bf16.xpose.msra.mxu0 0
        %4474 = vmatprep.subr.bf16.mxu0 0
        %4475 = vmatpush1.bf16.xpose.msra.mxu0 0
        %4476 = vmatprep.subr.bf16.mxu0 0
        %4477 = vmatpush1.bf16.xpose.msra.mxu0 0
        %4478 = vmatprep.subr.bf16.mxu0 0
        %4479 = vmatpush1.bf16.xpose.msra.mxu0 0
        %4480 = vmatprep.subr.bf16.mxu0 0
        %4481 = vmatpush1.bf16.xpose.msra.mxu0 0
        %4482 = vmatprep.subr.bf16.mxu0 0
        %4483 = vmatpush1.bf16.xpose.msra.mxu0 0
        %4484 = vmatprep.subr.bf16.mxu0 0
        %4485 = vmatpush1.bf16.xpose.msra.mxu0 0
        %4486 = vmatprep.subr.bf16.mxu0 0
        %4487 = vmatpush1.bf16.xpose.msra.mxu0 0
        %4488 = vmatprep.mubr.bf16.mxu0 %v4052
        %4489 = vmatmul.mubr.bf16.gmra.mrb[0].mxu0 %v4051
        %v4490 = vpop.f32.mrb[0].mxu0
        %v4491 = vadd.f32 %v4451, %v4490
        %v4492 = vpop.f32.mrb[0].mxu0
        %v4493 = vpop.f32.mrb[0].mxu0
        %v4494 = vpop.f32.mrb[0].mxu0
        %4495 = vdwg.mxu0
        %4496 = vmatprep.subr.bf16.mxu0 %v4205
        %4497 = vmatpush1.bf16.xpose.msra.mxu0 %v4204
        %4498 = vmatprep.subr.bf16.mxu0 %v4221
        %4499 = vmatpush1.bf16.xpose.msra.mxu0 %v4220
        %4500 = vmatprep.subr.bf16.mxu0 0
        %4501 = vmatpush1.bf16.xpose.msra.mxu0 0
        %4502 = vmatprep.subr.bf16.mxu0 0
        %4503 = vmatpush1.bf16.xpose.msra.mxu0 0
        %4504 = vmatprep.subr.bf16.mxu0 0
        %4505 = vmatpush1.bf16.xpose.msra.mxu0 0
        %4506 = vmatprep.subr.bf16.mxu0 0
        %4507 = vmatpush1.bf16.xpose.msra.mxu0 0
        %4508 = vmatprep.subr.bf16.mxu0 0
        %4509 = vmatpush1.bf16.xpose.msra.mxu0 0
        %4510 = vmatprep.subr.bf16.mxu0 0
        %4511 = vmatpush1.bf16.xpose.msra.mxu0 0
        %4512 = vmatprep.subr.bf16.mxu0 0
        %4513 = vmatpush1.bf16.xpose.msra.mxu0 0
        %4514 = vmatprep.subr.bf16.mxu0 0
        %4515 = vmatpush1.bf16.xpose.msra.mxu0 0
        %4516 = vmatprep.subr.bf16.mxu0 0
        %4517 = vmatpush1.bf16.xpose.msra.mxu0 0
        %4518 = vmatprep.subr.bf16.mxu0 0
        %4519 = vmatpush1.bf16.xpose.msra.mxu0 0
        %4520 = vmatprep.subr.bf16.mxu0 0
        %4521 = vmatpush1.bf16.xpose.msra.mxu0 0
        %4522 = vmatprep.subr.bf16.mxu0 0
        %4523 = vmatpush1.bf16.xpose.msra.mxu0 0
        %4524 = vmatprep.subr.bf16.mxu0 0
        %4525 = vmatpush1.bf16.xpose.msra.mxu0 0
        %4526 = vmatprep.subr.bf16.mxu0 0
        %4527 = vmatpush1.bf16.xpose.msra.mxu0 0
        %4528 = vmatprep.mubr.bf16.mxu0 %v4054
        %4529 = vmatmul.mubr.bf16.gmra.mrb[0].mxu0 %v4053
        %v4530 = vpop.f32.mrb[0].mxu0
        %v4531 = vadd.f32 %v4491, %v4530
        %v4532 = vpop.f32.mrb[0].mxu0
        %v4533 = vpop.f32.mrb[0].mxu0
        %v4534 = vpop.f32.mrb[0].mxu0
        %4535 = vdwg.mxu0
        %4536 = vmatprep.subr.bf16.mxu0 %v4207
        %4537 = vmatpush1.bf16.xpose.msra.mxu0 %v4206
        %4538 = vmatprep.subr.bf16.mxu0 %v4223
        %4539 = vmatpush1.bf16.xpose.msra.mxu0 %v4222
        %4540 = vmatprep.subr.bf16.mxu0 0
        %4541 = vmatpush1.bf16.xpose.msra.mxu0 0
        %4542 = vmatprep.subr.bf16.mxu0 0
        %4543 = vmatpush1.bf16.xpose.msra.mxu0 0
        %4544 = vmatprep.subr.bf16.mxu0 0
        %4545 = vmatpush1.bf16.xpose.msra.mxu0 0
        %4546 = vmatprep.subr.bf16.mxu0 0
        %4547 = vmatpush1.bf16.xpose.msra.mxu0 0
        %4548 = vmatprep.subr.bf16.mxu0 0
        %4549 = vmatpush1.bf16.xpose.msra.mxu0 0
        %4550 = vmatprep.subr.bf16.mxu0 0
        %4551 = vmatpush1.bf16.xpose.msra.mxu0 0
        %4552 = vmatprep.subr.bf16.mxu0 0
        %4553 = vmatpush1.bf16.xpose.msra.mxu0 0
        %4554 = vmatprep.subr.bf16.mxu0 0
        %4555 = vmatpush1.bf16.xpose.msra.mxu0 0
        %4556 = vmatprep.subr.bf16.mxu0 0
        %4557 = vmatpush1.bf16.xpose.msra.mxu0 0
        %4558 = vmatprep.subr.bf16.mxu0 0
        %4559 = vmatpush1.bf16.xpose.msra.mxu0 0
        %4560 = vmatprep.subr.bf16.mxu0 0
        %4561 = vmatpush1.bf16.xpose.msra.mxu0 0
        %4562 = vmatprep.subr.bf16.mxu0 0
        %4563 = vmatpush1.bf16.xpose.msra.mxu0 0
        %4564 = vmatprep.subr.bf16.mxu0 0
        %4565 = vmatpush1.bf16.xpose.msra.mxu0 0
        %4566 = vmatprep.subr.bf16.mxu0 0
        %4567 = vmatpush1.bf16.xpose.msra.mxu0 0
        %4568 = vmatprep.mubr.bf16.mxu0 %v4056
        %4569 = vmatmul.mubr.bf16.gmra.mrb[0].mxu0 %v4055
        %v4570 = vpop.f32.mrb[0].mxu0
        %v4571 = vadd.f32 %v4531, %v4570
        %v4572 = vpop.f32.mrb[0].mxu0
        %v4573 = vpop.f32.mrb[0].mxu0
        %v4574 = vpop.f32.mrb[0].mxu0
        %4575 = vdwg.mxu0
        %v4576 = vadd.f32 %v2328, %v4571
        %v4577 = vld [vmem:[%s891] sm:$0x1]
        %v4578 = vld [vmem:[%s894] sm:$0x1]
        %v4579 = vsel %vm1009, %v4576, 0.0
        %4580 = vadd.xlane.f32.xlu0 %v4579
        %v4581 = vpop.xlane.xlu0 %4580
        %v4582 = vmul.f32 %v4581, %v2304
        %v4583 = vsub.f32 %v4576, %v4582
        %v4584 = vmul.f32 %v4583, %v4583
        %v4585 = vsel %vm1009, %v4584, 0.0
        %4586 = vadd.xlane.f32.xlu0 %v4585
        %v4587 = vpop.xlane.xlu0 %4586
        %v4588 = vmul.f32 %v4587, %v2304
        %v4589 = vadd.f32 %v4588, 1e-05
        %v4590 = vrsqrt.pop %v4589
        %v4591 = vmul.f32 %v4583, %v4590
        %v4593 = vlaneseq
        %v4594 = vshrl.u32 %v4593, 7
        %v4595 = vsub.s32 0, %v4594
        %v4596 = vrot.slane %v4577, %v4595
        %v4598 = vmul.f32 %v4591, %v4596
        %v4600 = vlaneseq
        %v4601 = vshrl.u32 %v4600, 7
        %v4602 = vsub.s32 0, %v4601
        %v4603 = vrot.slane %v4578, %v4602
        %v4605 = vadd.f32 %v4598, %v4603
        %4606 = vst.msk [vmem:[#allocation2] sm:$0xff] %vm1009, %v4605
        %p4607 = scmp.eq.s32.totalorder %s33, 1
        // Predicated region
        $region109: #{tpu_custom_call.1} parent=103 // pred_check
          %p4608 = pneg %p4607
        $region110: #{tpu_custom_call.1} parent=103 // pred_check_branch
          %4610 = sbr.rel (%p4608) target = $region112
        $region111: #{tpu_custom_call.1} parent=103 // pred_region
          %v4611 = vpack.c.bf16 %v4605, %v4605
          %v4612 = vld [vmem:[%s19] sm:$0xf]
          %v4613 = vld [vmem:[%s19 + $0x4] sm:$0xf]
          %v4614 = vld [vmem:[%s19 + $0x8] sm:$0xf]
          %v4615 = vld [vmem:[%s19 + $0xc] sm:$0xf]
          %v4616 = vld [vmem:[%s19 + $0x10] sm:$0xf]
          %v4617 = vld [vmem:[%s19 + $0x14] sm:$0xf]
          %v4618 = vld [vmem:[%s19 + $0x18] sm:$0xf]
          %v4619 = vld [vmem:[%s19 + $0x1c] sm:$0xf]
          %v4620 = vld [vmem:[%s19 + $0x20] sm:$0xf]
          %v4621 = vld [vmem:[%s19 + $0x24] sm:$0xf]
          %v4622 = vld [vmem:[%s19 + $0x28] sm:$0xf]
          %v4623 = vld [vmem:[%s19 + $0x2c] sm:$0xf]
          %v4624 = vld [vmem:[%s19 + $0x30] sm:$0xf]
          %v4625 = vld [vmem:[%s19 + $0x34] sm:$0xf]
          %v4626 = vld [vmem:[%s19 + $0x38] sm:$0xf]
          %v4627 = vld [vmem:[%s19 + $0x3c] sm:$0xf]
          %v4628 = vld [vmem:[%s20] sm:$0x1]
          %v4630 = vlaneseq
          %v4631 = vshrl.u32 %v4630, 7
          %v4632 = vsub.s32 0, %v4631
          %v4633 = vrot.slane %v4628, %v4632
          %v4651 = vunpack.c.l.b16 %v4612
          %v4652 = vunpack.c.l.b16 %v4613
          %v4653 = vunpack.c.l.b16 %v4614
          %v4654 = vunpack.c.l.b16 %v4615
          %v4655 = vunpack.c.l.b16 %v4616
          %v4656 = vunpack.c.l.b16 %v4617
          %v4657 = vunpack.c.l.b16 %v4618
          %v4658 = vunpack.c.l.b16 %v4619
          %v4659 = vunpack.c.l.b16 %v4620
          %v4660 = vunpack.c.l.b16 %v4621
          %v4661 = vunpack.c.l.b16 %v4622
          %v4662 = vunpack.c.l.b16 %v4623
          %v4663 = vunpack.c.l.b16 %v4624
          %v4664 = vunpack.c.l.b16 %v4625
          %v4665 = vunpack.c.l.b16 %v4626
          %v4666 = vunpack.c.l.b16 %v4627
          %v4667 = vpack.c.b16 %v4652, %v4651
          %v4668 = vpack.c.b16 %v4654, %v4653
          %v4669 = vpack.c.b16 %v4656, %v4655
          %v4670 = vpack.c.b16 %v4658, %v4657
          %v4671 = vpack.c.b16 %v4660, %v4659
          %v4672 = vpack.c.b16 %v4662, %v4661
          %v4673 = vpack.c.b16 %v4664, %v4663
          %v4674 = vpack.c.b16 %v4666, %v4665
          %v4676 = vsel %vm1009, %v4611, 0
          %v4679 = vsel %vm1009, %v4667, 0
          %v4682 = vsel %vm1009, %v4668, 0
          %v4685 = vsel %vm1009, %v4669, 0
          %v4688 = vsel %vm1009, %v4670, 0
          %v4691 = vsel %vm1009, %v4671, 0
          %v4694 = vsel %vm1009, %v4672, 0
          %v4697 = vsel %vm1009, %v4673, 0
          %v4700 = vsel %vm1009, %v4674, 0
          %4702 = vmatprep.subr.bf16.mxu0 0
          %4703 = vmatpush1.bf16.xpose.msra.mxu0 %v4679
          %4704 = vmatprep.subr.bf16.mxu0 0
          %4705 = vmatpush1.bf16.xpose.msra.mxu0 %v4682
          %4706 = vmatprep.subr.bf16.mxu0 0
          %4707 = vmatpush1.bf16.xpose.msra.mxu0 %v4685
          %4708 = vmatprep.subr.bf16.mxu0 0
          %4709 = vmatpush1.bf16.xpose.msra.mxu0 %v4688
          %4710 = vmatprep.subr.bf16.mxu0 0
          %4711 = vmatpush1.bf16.xpose.msra.mxu0 %v4691
          %4712 = vmatprep.subr.bf16.mxu0 0
          %4713 = vmatpush1.bf16.xpose.msra.mxu0 %v4694
          %4714 = vmatprep.subr.bf16.mxu0 0
          %4715 = vmatpush1.bf16.xpose.msra.mxu0 %v4697
          %4716 = vmatprep.subr.bf16.mxu0 0
          %4717 = vmatpush1.bf16.xpose.msra.mxu0 %v4700
          %4718 = vmatprep.subr.bf16.mxu0 0
          %4719 = vmatpush1.bf16.xpose.msra.mxu0 0
          %4720 = vmatprep.subr.bf16.mxu0 0
          %4721 = vmatpush1.bf16.xpose.msra.mxu0 0
          %4722 = vmatprep.subr.bf16.mxu0 0
          %4723 = vmatpush1.bf16.xpose.msra.mxu0 0
          %4724 = vmatprep.subr.bf16.mxu0 0
          %4725 = vmatpush1.bf16.xpose.msra.mxu0 0
          %4726 = vmatprep.subr.bf16.mxu0 0
          %4727 = vmatpush1.bf16.xpose.msra.mxu0 0
          %4728 = vmatprep.subr.bf16.mxu0 0
          %4729 = vmatpush1.bf16.xpose.msra.mxu0 0
          %4730 = vmatprep.subr.bf16.mxu0 0
          %4731 = vmatpush1.bf16.xpose.msra.mxu0 0
          %4732 = vmatprep.subr.bf16.mxu0 0
          %4733 = vmatpush1.bf16.xpose.msra.mxu0 0
          %4734 = vmatprep.mubr.bf16.mxu0 0
          %4735 = vmatmul.mubr.bf16.gmra.mrb[0].mxu0 %v4676
          %v4736 = vpop.f32.mrb[0].mxu0
          %v4737 = vadd.f32 %v4633, %v4736
          %v4738 = vpop.f32.mrb[0].mxu0
          %v4739 = vpop.f32.mrb[0].mxu0
          %v4740 = vpop.f32.mrb[0].mxu0
          %4741 = vdwg.mxu0
          %4742 = vst [vmem:[#allocation3] sm:$0xff] %v4737
        $region112: #{tpu_custom_call.1} parent=103 // pred_fallthru
          _
        // Predicated region
        $region113: #{tpu_custom_call.1} parent=103 // pred_check
          %p4743 = pneg %p567
        $region114: #{tpu_custom_call.1} parent=103 // pred_check_branch
          %4745 = sbr.rel (%p4743) target = $region116
        $region115: #{tpu_custom_call.1} parent=103 // pred_region
          %s4747 = ssub.s32 128, 128
          %4748 = vsyncadd [#allocation4], %s4747
          %s4750 = sshll.u32 [#allocation3], 4
          %s4751 = int_to_ptr.vmem [resolvable:$true] %s4750
          %4753 = dma.vmem_to_hbm [thread:$0]  %s4751, 128, %s21, [#allocation4]
        $region116: #{tpu_custom_call.1} parent=103 // pred_fallthru
          _
        // Predicated region
        $region117: #{tpu_custom_call.1} parent=103 // pred_check
          %p4754 = pneg %p567
        $region118: #{tpu_custom_call.1} parent=103 // pred_check_branch
          %4756 = sbr.rel (%p4754) target = $region120
        $region119: #{tpu_custom_call.1} parent=103 // pred_region
          %4757 = dma.done [#allocation4], 128
        $region120: #{tpu_custom_call.1} parent=103 // pred_fallthru
          _
      $region104: #{tpu_custom_call.1} parent=5 // pred_fallthru
        _
      %p4758 = scmp.le.s32.totalorder 2, %s28
      // Predicated region
      $region121: #{tpu_custom_call.1} parent=5 // pred_check
        %p4759 = pneg %p4758
      $region122: #{tpu_custom_call.1} parent=5 // pred_check_branch
        %4761 = sbr.rel (%p4759) target = $region124
      $region123: #{tpu_custom_call.1} parent=5 // pred_region
        %s4762 = ssub.s32 %s28, 2
      $region124: #{tpu_custom_call.1} parent=5 // pred_fallthru
        _
    $region6: #{tpu_custom_call.1} parent=1 // loop_footer
      %s32 = sadd.s32 1, %s28
    $region7: #{tpu_custom_call.1} parent=1 // loop_footer_branch
      %27 = sbr.rel target = $region3
    $region8: #{tpu_custom_call.1} parent=1 // loop_exit
      _
    %4763 = vsyncpa [#allocation4], 1
    %s4764 = scalar_lea.sflag [#allocation4], 1
    %4765 = vsyncpa %s4764, 1

</llo_original>
